<compile_context>
chip_gen: v6e
topology: v6e:2x2x1
jax: 0.10.0
libtpu: 0.0.40
codegen_flags: <defaults>
</compile_context>

<pallas_src>
import math
import functools

import jax
import jax.numpy as jnp
from jax import lax
from jax.experimental import pallas as pl
from jax.experimental.pallas import tpu as pltpu


# ------------------------------- fused kernel ------------------------------ #

def _fused_encoder_kernel(
    x_ref,                      # [R, 1]     f32  R = G*S rows of this block
    pe_ref,                     # [R, D]     f32  pre-tiled positional encoding
    in_w_ref, in_b_ref,         # [1, D]     f32  input_projection (torch W.T, b)
    qkv_w_ref, qkv_b_ref,       # [L, D, 3D] bf16 / [L, 1, 3D] f32  (Q cols pre-scaled)
    out_w_ref, out_b_ref,       # [L, D, D]  bf16 / [L, 1, D]   f32
    ff1_w_ref, ff1_b_ref,       # [L, D, 4D] bf16 / [L, 1, 4D]  f32
    ff2_w_ref, ff2_b_ref,       # [L, 4D, D] bf16 / [L, 1, D]   f32
    ln1_g_ref, ln1_b_ref,       # [L, 1, D]  f32
    ln2_g_ref, ln2_b_ref,       # [L, 1, D]  f32
    o_ref,                      # [R, D]     f32  encoder output for this row block
    *, G, S, D, H, L, eps,
):
    Dh = D // H
    bf16 = jnp.bfloat16

    # ---- input projection (Linear(1, D)) fused with positional-encoding add ----
    x = x_ref[...] * in_w_ref[...] + in_b_ref[...] + pe_ref[...]        # [R, D] f32

    def layer_norm(y, g, b):
        mu = jnp.mean(y, axis=-1, keepdims=True)
        c = y - mu
        var = jnp.mean(c * c, axis=-1, keepdims=True)
        return c * lax.rsqrt(var + eps) * g + b

    # ---- num_layers post-norm encoder layers (unrolled, weights VMEM-resident) ----
    for l in range(L):
        # fused QKV projection: [R, D] @ [D, 3D]  (bf16 MXU, f32 accumulate).
        # Attention scale is already folded into the Q columns of W/b.
        qkv = jnp.dot(x.astype(bf16), qkv_w_ref[l],
                      preferred_element_type=jnp.float32) + qkv_b_ref[l]   # [R, 3D] f32
        # one bf16 cast + leading-dim split (cheap view) for the whole slab
        qkv_b3 = qkv.astype(bf16).reshape(G, S, 3 * D)                     # [G, S, 3D]

        # scaled dot-product attention, batched over the G (channel, batch) groups
        head_outs = []
        for h in range(H):
            q_h = qkv_b3[:, :, h * Dh:(h + 1) * Dh]                        # [G, S, Dh]
            k_h = qkv_b3[:, :, D + h * Dh:D + (h + 1) * Dh]
            v_h = qkv_b3[:, :, 2 * D + h * Dh:2 * D + (h + 1) * Dh]

            s_h = jnp.einsum('gqd,gkd->gqk', q_h, k_h,
                             preferred_element_type=jnp.float32)           # [G, S, S]
            m = jnp.max(s_h, axis=-1, keepdims=True)
            p = jnp.exp(s_h - m)
            inv = pl.reciprocal(jnp.sum(p, axis=-1, keepdims=True), approx=True)
            o_h = jnp.einsum('gqk,gkd->gqd', p.astype(bf16), v_h,
                             preferred_element_type=jnp.float32) * inv     # [G, S, Dh]
            head_outs.append(o_h)

        # concat heads along lanes (H masked writes), then ONE output projection
        attn = jnp.concatenate(head_outs, axis=-1).reshape(G * S, D)       # [R, D] f32
        attn = jnp.dot(attn.astype(bf16), out_w_ref[l],
                       preferred_element_type=jnp.float32) + out_b_ref[l]  # [R, D]

        x = layer_norm(x + attn, ln1_g_ref[l], ln1_b_ref[l])

        # feed-forward (relu); intermediate is lane-dense (4*D = 128 lanes)
        ff = jnp.dot(x.astype(bf16), ff1_w_ref[l],
                     preferred_element_type=jnp.float32) + ff1_b_ref[l]    # [R, 4D]
        ff = jnp.maximum(ff, 0.0)
        ff = jnp.dot(ff.astype(bf16), ff2_w_ref[l],
                     preferred_element_type=jnp.float32) + ff2_b_ref[l]    # [R, D]

        x = layer_norm(x + ff, ln2_g_ref[l], ln2_b_ref[l])

    o_ref[...] = x.astype(o_ref.dtype)


def _full_spec(a):
    nd = a.ndim
    return pl.BlockSpec(a.shape, lambda i, _nd=nd: (0,) * _nd)


# --------------------------- parameter construction ------------------------ #

def _dense(key, fan_in, fan_out):
    kw, kb = jax.random.split(key)
    w = jax.random.normal(kw, (fan_in, fan_out), jnp.float32) * 0.05
    b = jax.random.normal(kb, (fan_out,), jnp.float32) * 0.01
    return w, b


def init_params(key, seq_len, pred_len, d_model, nhead, num_layers, max_len=5000):
    del nhead  # head count only affects the forward reshapes
    keys = jax.random.split(key, 3 + num_layers)
    params = {}
    params["in_w"], params["in_b"] = _dense(keys[0], 1, d_model)

    # PositionalEncoding buffer (same construction as the torch module).
    position = jnp.arange(max_len, dtype=jnp.float32)[:, None]
    div_term = jnp.exp(
        jnp.arange(0, d_model, 2, dtype=jnp.float32) * (-math.log(10000.0) / d_model)
    )
    pe = jnp.zeros((max_len, d_model), jnp.float32)
    pe = pe.at[:, 0::2].set(jnp.sin(position * div_term))
    pe = pe.at[:, 1::2].set(jnp.cos(position * div_term))
    params["pe"] = pe

    layers = []
    for l in range(num_layers):
        kl = jax.random.split(keys[1 + l], 4)
        layer = {}
        layer["qkv_w"], layer["qkv_b"] = _dense(kl[0], d_model, 3 * d_model)
        layer["out_w"], layer["out_b"] = _dense(kl[1], d_model, d_model)
        layer["ff1_w"], layer["ff1_b"] = _dense(kl[2], d_model, 4 * d_model)
        layer["ff2_w"], layer["ff2_b"] = _dense(kl[3], 4 * d_model, d_model)
        layer["ln1_g"] = jnp.ones((d_model,), jnp.float32)
        layer["ln1_b"] = jnp.zeros((d_model,), jnp.float32)
        layer["ln2_g"] = jnp.ones((d_model,), jnp.float32)
        layer["ln2_b"] = jnp.zeros((d_model,), jnp.float32)
        layers.append(layer)
    params["layers"] = layers

    params["dec1_w"], params["dec1_b"] = _dense(keys[1 + num_layers],
                                                d_model * seq_len, pred_len * 2)
    params["dec2_w"], params["dec2_b"] = _dense(keys[2 + num_layers],
                                                pred_len * 2, pred_len)
    return params


# -------------------------------- forward ---------------------------------- #

def transformer_network_forward(params, s, t, *, seq_len, pred_len, d_model,
                                nhead, num_layers):
    del t  # `t` is accepted but unused by the torch forward as well
    B, S, C = s.shape
    D, L = d_model, num_layers
    H = nhead
    Dh = D // H
    assert S == seq_len and D % H == 0
    bf16 = jnp.bfloat16

    # Fold channels into the row axis: row index = c*(B*S) + b*S + s_pos.
    groups = C * B                       # independent attention groups of S rows
    R_total = groups * S
    x_in = jnp.transpose(s, (2, 0, 1)).reshape(R_total, 1)

    # Balanced 2-way row split over whole (c, b) groups for v7x megacore;
    # single step otherwise.
    n_split = 2 if (groups % 2 == 0 and groups >= 2) else 1
    Gb = groups // n_split               # groups per grid step
    Rb = Gb * S                          # rows per grid step

    # host-side pre-tiled positional encoding (repeats every S rows)
    pe_tiled = jnp.tile(params["pe"][:S], (groups, 1))              # [R_total, D]

    stack = lambda name: jnp.stack([ly[name] for ly in params["layers"]], axis=0)

    # fold the 1/sqrt(Dh) attention scale into the Q columns of W_qkv / b_qkv
    scale = 1.0 / math.sqrt(Dh)
    q_col_scale = jnp.concatenate(
        [jnp.full((D,), scale, jnp.float32), jnp.ones((2 * D,), jnp.float32)])
    qkv_w = (stack("qkv_w") * q_col_scale[None, None, :]).astype(bf16)   # [L, D, 3D]
    qkv_b = (stack("qkv_b") * q_col_scale[None, :]).reshape(L, 1, 3 * D)
    out_w = stack("out_w").astype(bf16)                                   # [L, D, D]
    out_b = stack("out_b").reshape(L, 1, D)
    ff1_w = stack("ff1_w").astype(bf16)                                   # [L, D, 4D]
    ff1_b = stack("ff1_b").reshape(L, 1, 4 * D)
    ff2_w = stack("ff2_w").astype(bf16)                                   # [L, 4D, D]
    ff2_b = stack("ff2_b").reshape(L, 1, D)
    ln1_g = stack("ln1_g").reshape(L, 1, D)
    ln1_b = stack("ln1_b").reshape(L, 1, D)
    ln2_g = stack("ln2_g").reshape(L, 1, D)
    ln2_b = stack("ln2_b").reshape(L, 1, D)
    in_w = params["in_w"].reshape(1, D)
    in_b = params["in_b"].reshape(1, D)

    weights = (in_w, in_b, qkv_w, qkv_b, out_w, out_b,
               ff1_w, ff1_b, ff2_w, ff2_b, ln1_g, ln1_b, ln2_g, ln2_b)

    kernel = functools.partial(_fused_encoder_kernel, G=Gb, S=S, D=D, H=H,
                               L=L, eps=1e-5)

    enc = pl.pallas_call(
        kernel,
        out_shape=jax.ShapeDtypeStruct((R_total, D), jnp.float32),
        grid=(n_split,),
        in_specs=[pl.BlockSpec((Rb, 1), lambda i: (i, 0)),
                  pl.BlockSpec((Rb, D), lambda i: (i, 0))]
                 + [_full_spec(w) for w in weights],
        out_specs=pl.BlockSpec((Rb, D), lambda i: (i, 0)),
        compiler_params=pltpu.CompilerParams(dimension_semantics=("parallel",)),
    )(x_in, pe_tiled, *weights)                                      # [C*B*S, D]

    # ---- decoder tail on tiny [C, B, *] tensors --------------------------------
    # TODO(synk): exact erf-GELU (torch nn.GELU default) between the two decoder
    # linears is kept as plain-JAX glue so numerics match the reference exactly.
    h = enc.reshape(C, B, S * D)
    h = jnp.dot(h, params["dec1_w"]) + params["dec1_b"]              # [C, B, 2P]
    h = jax.nn.gelu(h, approximate=False)
    h = jnp.dot(h, params["dec2_w"]) + params["dec2_b"]              # [C, B, P]
    return jnp.transpose(h, (1, 2, 0))                               # [B, P, C]


# --------------------------------- driver ---------------------------------- #

if __name__ == "__main__":
    seq_len, pred_len = 8, 4
    d_model, nhead, num_layers = 32, 4, 2
    B, C = 2, 3

    key = jax.random.PRNGKey(0)
    kp, ks, kt = jax.random.split(key, 3)

    params = init_params(kp, seq_len, pred_len, d_model, nhead, num_layers)
    s = jax.random.normal(ks, (B, seq_len, C), jnp.float32)
    t = jax.random.normal(kt, (B, seq_len), jnp.float32)   # unused, mirrors signature

    fwd = jax.jit(functools.partial(
        transformer_network_forward,
        seq_len=seq_len, pred_len=pred_len, d_model=d_model,
        nhead=nhead, num_layers=num_layers))

    out = fwd(params, s, t)
    jax.block_until_ready(out)
    assert out.shape == (B, pred_len, C), out.shape
    assert bool(jnp.all(jnp.isfinite(out)))
    print("KERNEL_OK")
</pallas_src>

<mosaic_0001>
module attributes {stable_mosaic.version = 11 : i64} {
  func.func @_fused_encoder_kernel(%arg0: i32, %arg1: memref<24x1xf32, #tpu.memory_space<vmem>>, %arg2: memref<24x32xf32, #tpu.memory_space<vmem>>, %arg3: memref<1x32xf32, #tpu.memory_space<vmem>>, %arg4: memref<1x32xf32, #tpu.memory_space<vmem>>, %arg5: memref<2x32x96xbf16, #tpu.memory_space<vmem>>, %arg6: memref<2x1x96xf32, #tpu.memory_space<vmem>>, %arg7: memref<2x32x32xbf16, #tpu.memory_space<vmem>>, %arg8: memref<2x1x32xf32, #tpu.memory_space<vmem>>, %arg9: memref<2x32x128xbf16, #tpu.memory_space<vmem>>, %arg10: memref<2x1x128xf32, #tpu.memory_space<vmem>>, %arg11: memref<2x128x32xbf16, #tpu.memory_space<vmem>>, %arg12: memref<2x1x32xf32, #tpu.memory_space<vmem>>, %arg13: memref<2x1x32xf32, #tpu.memory_space<vmem>>, %arg14: memref<2x1x32xf32, #tpu.memory_space<vmem>>, %arg15: memref<2x1x32xf32, #tpu.memory_space<vmem>>, %arg16: memref<2x1x32xf32, #tpu.memory_space<vmem>>, %arg17: memref<24x32xf32, #tpu.memory_space<vmem>>) attributes {dimension_semantics = [#tpu.dimension_semantics<parallel>], iteration_bounds = array<i64: 2>, scalar_prefetch = 0 : i64, scratch_operands = 0 : i64, tpu.core_type = #tpu.core_type<tc>, window_params = [{transform_indices = @transform_0, window_bounds = array<i64: 24, 1>}, {transform_indices = @transform_1, window_bounds = array<i64: 24, 32>}, {pipeline_mode = #tpu.pipeline_mode<synchronous>, transform_indices = @transform_2, window_bounds = array<i64: 1, 32>}, {pipeline_mode = #tpu.pipeline_mode<synchronous>, transform_indices = @transform_3, window_bounds = array<i64: 1, 32>}, {pipeline_mode = #tpu.pipeline_mode<synchronous>, transform_indices = @transform_4, window_bounds = array<i64: 2, 32, 96>}, {pipeline_mode = #tpu.pipeline_mode<synchronous>, transform_indices = @transform_5, window_bounds = array<i64: 2, 1, 96>}, {pipeline_mode = #tpu.pipeline_mode<synchronous>, transform_indices = @transform_6, window_bounds = array<i64: 2, 32, 32>}, {pipeline_mode = #tpu.pipeline_mode<synchronous>, transform_indices = @transform_7, window_bounds = array<i64: 2, 1, 32>}, {pipeline_mode = #tpu.pipeline_mode<synchronous>, transform_indices = @transform_8, window_bounds = array<i64: 2, 32, 128>}, {pipeline_mode = #tpu.pipeline_mode<synchronous>, transform_indices = @transform_9, window_bounds = array<i64: 2, 1, 128>}, {pipeline_mode = #tpu.pipeline_mode<synchronous>, transform_indices = @transform_10, window_bounds = array<i64: 2, 128, 32>}, {pipeline_mode = #tpu.pipeline_mode<synchronous>, transform_indices = @transform_11, window_bounds = array<i64: 2, 1, 32>}, {pipeline_mode = #tpu.pipeline_mode<synchronous>, transform_indices = @transform_12, window_bounds = array<i64: 2, 1, 32>}, {pipeline_mode = #tpu.pipeline_mode<synchronous>, transform_indices = @transform_13, window_bounds = array<i64: 2, 1, 32>}, {pipeline_mode = #tpu.pipeline_mode<synchronous>, transform_indices = @transform_14, window_bounds = array<i64: 2, 1, 32>}, {pipeline_mode = #tpu.pipeline_mode<synchronous>, transform_indices = @transform_15, window_bounds = array<i64: 2, 1, 32>}, {transform_indices = @transform_16, window_bounds = array<i64: 24, 32>}]} {
    %c0 = arith.constant 0 : index
    %c0_0 = arith.constant 0 : index
    %0 = vector.load %arg1[%c0, %c0_0] : memref<24x1xf32, #tpu.memory_space<vmem>>, vector<24x1xf32>
    %c0_1 = arith.constant 0 : index
    %c0_2 = arith.constant 0 : index
    %1 = vector.load %arg3[%c0_1, %c0_2] : memref<1x32xf32, #tpu.memory_space<vmem>>, vector<1x32xf32>
    %2 = vector.broadcast %0 : vector<24x1xf32> to vector<24x32xf32>
    %3 = vector.broadcast %1 : vector<1x32xf32> to vector<24x32xf32>
    %4 = arith.mulf %2, %3 : vector<24x32xf32>
    %c0_3 = arith.constant 0 : index
    %c0_4 = arith.constant 0 : index
    %5 = vector.load %arg4[%c0_3, %c0_4] : memref<1x32xf32, #tpu.memory_space<vmem>>, vector<1x32xf32>
    %6 = vector.broadcast %5 : vector<1x32xf32> to vector<24x32xf32>
    %7 = arith.addf %4, %6 : vector<24x32xf32>
    %c0_5 = arith.constant 0 : index
    %c0_6 = arith.constant 0 : index
    %8 = vector.load %arg2[%c0_5, %c0_6] : memref<24x32xf32, #tpu.memory_space<vmem>>, vector<24x32xf32>
    %9 = arith.addf %7, %8 : vector<24x32xf32>
    %10 = arith.truncf %9 : vector<24x32xf32> to vector<24x32xbf16>
    %c0_7 = arith.constant 0 : index
    %c0_8 = arith.constant 0 : index
    %c0_9 = arith.constant 0 : index
    %11 = vector.load %arg5[%c0_7, %c0_8, %c0_9] : memref<2x32x96xbf16, #tpu.memory_space<vmem>>, vector<1x32x96xbf16>
    %12 = vector.shape_cast %11 : vector<1x32x96xbf16> to vector<32x96xbf16>
    %cst = arith.constant dense<0.000000e+00> : vector<24x96xf32>
    %13 = tpu.matmul %10, %12, %cst {dimension_numbers = #tpu.dot_dimension_numbers<[1], [0], [0], [1], [0, 0, 1, 1], [], []>} : vector<24x32xbf16>, vector<32x96xbf16>, vector<24x96xf32> -> vector<24x96xf32>
    %c0_10 = arith.constant 0 : index
    %c0_11 = arith.constant 0 : index
    %c0_12 = arith.constant 0 : index
    %14 = vector.load %arg6[%c0_10, %c0_11, %c0_12] : memref<2x1x96xf32, #tpu.memory_space<vmem>>, vector<1x1x96xf32>
    %15 = vector.shape_cast %14 : vector<1x1x96xf32> to vector<1x96xf32>
    %16 = vector.broadcast %15 : vector<1x96xf32> to vector<24x96xf32>
    %17 = arith.addf %13, %16 : vector<24x96xf32>
    %18 = arith.truncf %17 : vector<24x96xf32> to vector<24x96xbf16>
    %19 = vector.shape_cast %18 : vector<24x96xbf16> to vector<3x8x96xbf16>
    %20 = vector.extract_strided_slice %19 {offsets = [0, 0, 0], sizes = [3, 8, 8], strides = [1, 1, 1]} : vector<3x8x96xbf16> to vector<3x8x8xbf16>
    %21 = vector.extract_strided_slice %19 {offsets = [0, 0, 32], sizes = [3, 8, 8], strides = [1, 1, 1]} : vector<3x8x96xbf16> to vector<3x8x8xbf16>
    %22 = vector.extract_strided_slice %19 {offsets = [0, 0, 64], sizes = [3, 8, 8], strides = [1, 1, 1]} : vector<3x8x96xbf16> to vector<3x8x8xbf16>
    "tpu.trace_start"() <{level = 10 : i32, message = "gqd,gkd->gqk"}> : () -> ()
    %cst_13 = arith.constant dense<0.000000e+00> : vector<3x8x8xf32>
    %23 = tpu.matmul %20, %21, %cst_13 {dimension_numbers = #tpu.dot_dimension_numbers<[2], [2], [1], [1], [0, 0, 0, 1, 1, 1], [0], [0]>} : vector<3x8x8xbf16>, vector<3x8x8xbf16>, vector<3x8x8xf32> -> vector<3x8x8xf32>
    "tpu.trace_stop"() : () -> ()
    %cst_14 = arith.constant dense<0xFF800000> : vector<3x8xf32>
    %24 = vector.multi_reduction <maximumf>, %23, %cst_14 [2] : vector<3x8x8xf32> to vector<3x8xf32>
    %25 = vector.shape_cast %24 : vector<3x8xf32> to vector<3x8x1xf32>
    %26 = vector.broadcast %25 : vector<3x8x1xf32> to vector<3x8x8xf32>
    %27 = arith.subf %23, %26 : vector<3x8x8xf32>
    %28 = math.exp %27 : vector<3x8x8xf32>
    %cst_15 = arith.constant dense<0.000000e+00> : vector<3x8xf32>
    %29 = vector.multi_reduction <add>, %28, %cst_15 [2] : vector<3x8x8xf32> to vector<3x8xf32>
    %30 = vector.shape_cast %29 : vector<3x8xf32> to vector<3x8x1xf32>
    %31 = tpu.reciprocal %30 {approx = true} : vector<3x8x1xf32> -> vector<3x8x1xf32>
    %32 = arith.truncf %28 : vector<3x8x8xf32> to vector<3x8x8xbf16>
    "tpu.trace_start"() <{level = 10 : i32, message = "gqk,gkd->gqd"}> : () -> ()
    %cst_16 = arith.constant dense<0.000000e+00> : vector<3x8x8xf32>
    %33 = tpu.matmul %32, %22, %cst_16 {dimension_numbers = #tpu.dot_dimension_numbers<[2], [1], [1], [2], [0, 0, 0, 1, 1, 2], [0], [0]>} : vector<3x8x8xbf16>, vector<3x8x8xbf16>, vector<3x8x8xf32> -> vector<3x8x8xf32>
    "tpu.trace_stop"() : () -> ()
    %34 = vector.broadcast %31 : vector<3x8x1xf32> to vector<3x8x8xf32>
    %35 = arith.mulf %33, %34 : vector<3x8x8xf32>
    %36 = vector.extract_strided_slice %19 {offsets = [0, 0, 8], sizes = [3, 8, 8], strides = [1, 1, 1]} : vector<3x8x96xbf16> to vector<3x8x8xbf16>
    %37 = vector.extract_strided_slice %19 {offsets = [0, 0, 40], sizes = [3, 8, 8], strides = [1, 1, 1]} : vector<3x8x96xbf16> to vector<3x8x8xbf16>
    %38 = vector.extract_strided_slice %19 {offsets = [0, 0, 72], sizes = [3, 8, 8], strides = [1, 1, 1]} : vector<3x8x96xbf16> to vector<3x8x8xbf16>
    "tpu.trace_start"() <{level = 10 : i32, message = "gqd,gkd->gqk"}> : () -> ()
    %cst_17 = arith.constant dense<0.000000e+00> : vector<3x8x8xf32>
    %39 = tpu.matmul %36, %37, %cst_17 {dimension_numbers = #tpu.dot_dimension_numbers<[2], [2], [1], [1], [0, 0, 0, 1, 1, 1], [0], [0]>} : vector<3x8x8xbf16>, vector<3x8x8xbf16>, vector<3x8x8xf32> -> vector<3x8x8xf32>
    "tpu.trace_stop"() : () -> ()
    %cst_18 = arith.constant dense<0xFF800000> : vector<3x8xf32>
    %40 = vector.multi_reduction <maximumf>, %39, %cst_18 [2] : vector<3x8x8xf32> to vector<3x8xf32>
    %41 = vector.shape_cast %40 : vector<3x8xf32> to vector<3x8x1xf32>
    %42 = vector.broadcast %41 : vector<3x8x1xf32> to vector<3x8x8xf32>
    %43 = arith.subf %39, %42 : vector<3x8x8xf32>
    %44 = math.exp %43 : vector<3x8x8xf32>
    %cst_19 = arith.constant dense<0.000000e+00> : vector<3x8xf32>
    %45 = vector.multi_reduction <add>, %44, %cst_19 [2] : vector<3x8x8xf32> to vector<3x8xf32>
    %46 = vector.shape_cast %45 : vector<3x8xf32> to vector<3x8x1xf32>
    %47 = tpu.reciprocal %46 {approx = true} : vector<3x8x1xf32> -> vector<3x8x1xf32>
    %48 = arith.truncf %44 : vector<3x8x8xf32> to vector<3x8x8xbf16>
    "tpu.trace_start"() <{level = 10 : i32, message = "gqk,gkd->gqd"}> : () -> ()
    %cst_20 = arith.constant dense<0.000000e+00> : vector<3x8x8xf32>
    %49 = tpu.matmul %48, %38, %cst_20 {dimension_numbers = #tpu.dot_dimension_numbers<[2], [1], [1], [2], [0, 0, 0, 1, 1, 2], [0], [0]>} : vector<3x8x8xbf16>, vector<3x8x8xbf16>, vector<3x8x8xf32> -> vector<3x8x8xf32>
    "tpu.trace_stop"() : () -> ()
    %50 = vector.broadcast %47 : vector<3x8x1xf32> to vector<3x8x8xf32>
    %51 = arith.mulf %49, %50 : vector<3x8x8xf32>
    %52 = vector.extract_strided_slice %19 {offsets = [0, 0, 16], sizes = [3, 8, 8], strides = [1, 1, 1]} : vector<3x8x96xbf16> to vector<3x8x8xbf16>
    %53 = vector.extract_strided_slice %19 {offsets = [0, 0, 48], sizes = [3, 8, 8], strides = [1, 1, 1]} : vector<3x8x96xbf16> to vector<3x8x8xbf16>
    %54 = vector.extract_strided_slice %19 {offsets = [0, 0, 80], sizes = [3, 8, 8], strides = [1, 1, 1]} : vector<3x8x96xbf16> to vector<3x8x8xbf16>
    "tpu.trace_start"() <{level = 10 : i32, message = "gqd,gkd->gqk"}> : () -> ()
    %cst_21 = arith.constant dense<0.000000e+00> : vector<3x8x8xf32>
    %55 = tpu.matmul %52, %53, %cst_21 {dimension_numbers = #tpu.dot_dimension_numbers<[2], [2], [1], [1], [0, 0, 0, 1, 1, 1], [0], [0]>} : vector<3x8x8xbf16>, vector<3x8x8xbf16>, vector<3x8x8xf32> -> vector<3x8x8xf32>
    "tpu.trace_stop"() : () -> ()
    %cst_22 = arith.constant dense<0xFF800000> : vector<3x8xf32>
    %56 = vector.multi_reduction <maximumf>, %55, %cst_22 [2] : vector<3x8x8xf32> to vector<3x8xf32>
    %57 = vector.shape_cast %56 : vector<3x8xf32> to vector<3x8x1xf32>
    %58 = vector.broadcast %57 : vector<3x8x1xf32> to vector<3x8x8xf32>
    %59 = arith.subf %55, %58 : vector<3x8x8xf32>
    %60 = math.exp %59 : vector<3x8x8xf32>
    %cst_23 = arith.constant dense<0.000000e+00> : vector<3x8xf32>
    %61 = vector.multi_reduction <add>, %60, %cst_23 [2] : vector<3x8x8xf32> to vector<3x8xf32>
    %62 = vector.shape_cast %61 : vector<3x8xf32> to vector<3x8x1xf32>
    %63 = tpu.reciprocal %62 {approx = true} : vector<3x8x1xf32> -> vector<3x8x1xf32>
    %64 = arith.truncf %60 : vector<3x8x8xf32> to vector<3x8x8xbf16>
    "tpu.trace_start"() <{level = 10 : i32, message = "gqk,gkd->gqd"}> : () -> ()
    %cst_24 = arith.constant dense<0.000000e+00> : vector<3x8x8xf32>
    %65 = tpu.matmul %64, %54, %cst_24 {dimension_numbers = #tpu.dot_dimension_numbers<[2], [1], [1], [2], [0, 0, 0, 1, 1, 2], [0], [0]>} : vector<3x8x8xbf16>, vector<3x8x8xbf16>, vector<3x8x8xf32> -> vector<3x8x8xf32>
    "tpu.trace_stop"() : () -> ()
    %66 = vector.broadcast %63 : vector<3x8x1xf32> to vector<3x8x8xf32>
    %67 = arith.mulf %65, %66 : vector<3x8x8xf32>
    %68 = vector.extract_strided_slice %19 {offsets = [0, 0, 24], sizes = [3, 8, 8], strides = [1, 1, 1]} : vector<3x8x96xbf16> to vector<3x8x8xbf16>
    %69 = vector.extract_strided_slice %19 {offsets = [0, 0, 56], sizes = [3, 8, 8], strides = [1, 1, 1]} : vector<3x8x96xbf16> to vector<3x8x8xbf16>
    %70 = vector.extract_strided_slice %19 {offsets = [0, 0, 88], sizes = [3, 8, 8], strides = [1, 1, 1]} : vector<3x8x96xbf16> to vector<3x8x8xbf16>
    "tpu.trace_start"() <{level = 10 : i32, message = "gqd,gkd->gqk"}> : () -> ()
    %cst_25 = arith.constant dense<0.000000e+00> : vector<3x8x8xf32>
    %71 = tpu.matmul %68, %69, %cst_25 {dimension_numbers = #tpu.dot_dimension_numbers<[2], [2], [1], [1], [0, 0, 0, 1, 1, 1], [0], [0]>} : vector<3x8x8xbf16>, vector<3x8x8xbf16>, vector<3x8x8xf32> -> vector<3x8x8xf32>
    "tpu.trace_stop"() : () -> ()
    %cst_26 = arith.constant dense<0xFF800000> : vector<3x8xf32>
    %72 = vector.multi_reduction <maximumf>, %71, %cst_26 [2] : vector<3x8x8xf32> to vector<3x8xf32>
    %73 = vector.shape_cast %72 : vector<3x8xf32> to vector<3x8x1xf32>
    %74 = vector.broadcast %73 : vector<3x8x1xf32> to vector<3x8x8xf32>
    %75 = arith.subf %71, %74 : vector<3x8x8xf32>
    %76 = math.exp %75 : vector<3x8x8xf32>
    %cst_27 = arith.constant dense<0.000000e+00> : vector<3x8xf32>
    %77 = vector.multi_reduction <add>, %76, %cst_27 [2] : vector<3x8x8xf32> to vector<3x8xf32>
    %78 = vector.shape_cast %77 : vector<3x8xf32> to vector<3x8x1xf32>
    %79 = tpu.reciprocal %78 {approx = true} : vector<3x8x1xf32> -> vector<3x8x1xf32>
    %80 = arith.truncf %76 : vector<3x8x8xf32> to vector<3x8x8xbf16>
    "tpu.trace_start"() <{level = 10 : i32, message = "gqk,gkd->gqd"}> : () -> ()
    %cst_28 = arith.constant dense<0.000000e+00> : vector<3x8x8xf32>
    %81 = tpu.matmul %80, %70, %cst_28 {dimension_numbers = #tpu.dot_dimension_numbers<[2], [1], [1], [2], [0, 0, 0, 1, 1, 2], [0], [0]>} : vector<3x8x8xbf16>, vector<3x8x8xbf16>, vector<3x8x8xf32> -> vector<3x8x8xf32>
    "tpu.trace_stop"() : () -> ()
    %82 = vector.broadcast %79 : vector<3x8x1xf32> to vector<3x8x8xf32>
    %83 = arith.mulf %81, %82 : vector<3x8x8xf32>
    %84 = tpu.concatenate %35, %51, %67, %83 in 2 : vector<3x8x8xf32>, vector<3x8x8xf32>, vector<3x8x8xf32>, vector<3x8x8xf32> -> vector<3x8x32xf32>
    %85 = vector.shape_cast %84 : vector<3x8x32xf32> to vector<24x32xf32>
    %86 = arith.truncf %85 : vector<24x32xf32> to vector<24x32xbf16>
    %c0_29 = arith.constant 0 : index
    %c0_30 = arith.constant 0 : index
    %c0_31 = arith.constant 0 : index
    %87 = vector.load %arg7[%c0_29, %c0_30, %c0_31] : memref<2x32x32xbf16, #tpu.memory_space<vmem>>, vector<1x32x32xbf16>
    %88 = vector.shape_cast %87 : vector<1x32x32xbf16> to vector<32x32xbf16>
    %cst_32 = arith.constant dense<0.000000e+00> : vector<24x32xf32>
    %89 = tpu.matmul %86, %88, %cst_32 {dimension_numbers = #tpu.dot_dimension_numbers<[1], [0], [0], [1], [0, 0, 1, 1], [], []>} : vector<24x32xbf16>, vector<32x32xbf16>, vector<24x32xf32> -> vector<24x32xf32>
    %c0_33 = arith.constant 0 : index
    %c0_34 = arith.constant 0 : index
    %c0_35 = arith.constant 0 : index
    %90 = vector.load %arg8[%c0_33, %c0_34, %c0_35] : memref<2x1x32xf32, #tpu.memory_space<vmem>>, vector<1x1x32xf32>
    %91 = vector.shape_cast %90 : vector<1x1x32xf32> to vector<1x32xf32>
    %92 = vector.broadcast %91 : vector<1x32xf32> to vector<24x32xf32>
    %93 = arith.addf %89, %92 : vector<24x32xf32>
    %94 = arith.addf %9, %93 : vector<24x32xf32>
    %c0_36 = arith.constant 0 : index
    %c0_37 = arith.constant 0 : index
    %c0_38 = arith.constant 0 : index
    %95 = vector.load %arg13[%c0_36, %c0_37, %c0_38] : memref<2x1x32xf32, #tpu.memory_space<vmem>>, vector<1x1x32xf32>
    %96 = vector.shape_cast %95 : vector<1x1x32xf32> to vector<1x32xf32>
    %c0_39 = arith.constant 0 : index
    %c0_40 = arith.constant 0 : index
    %c0_41 = arith.constant 0 : index
    %97 = vector.load %arg14[%c0_39, %c0_40, %c0_41] : memref<2x1x32xf32, #tpu.memory_space<vmem>>, vector<1x1x32xf32>
    %98 = vector.shape_cast %97 : vector<1x1x32xf32> to vector<1x32xf32>
    %cst_42 = arith.constant dense<0.000000e+00> : vector<24xf32>
    %99 = vector.multi_reduction <add>, %94, %cst_42 [1] : vector<24x32xf32> to vector<24xf32>
    %100 = vector.shape_cast %99 : vector<24xf32> to vector<24x1xf32>
    %cst_43 = arith.constant 3.200000e+01 : f32
    %101 = vector.broadcast %cst_43 : f32 to vector<24x1xf32>
    %102 = arith.divf %100, %101 : vector<24x1xf32>
    %103 = vector.broadcast %102 : vector<24x1xf32> to vector<24x32xf32>
    %104 = arith.subf %94, %103 : vector<24x32xf32>
    %105 = arith.mulf %104, %104 : vector<24x32xf32>
    %cst_44 = arith.constant dense<0.000000e+00> : vector<24xf32>
    %106 = vector.multi_reduction <add>, %105, %cst_44 [1] : vector<24x32xf32> to vector<24xf32>
    %107 = vector.shape_cast %106 : vector<24xf32> to vector<24x1xf32>
    %cst_45 = arith.constant 3.200000e+01 : f32
    %108 = vector.broadcast %cst_45 : f32 to vector<24x1xf32>
    %109 = arith.divf %107, %108 : vector<24x1xf32>
    %cst_46 = arith.constant 9.99999974E-6 : f32
    %110 = vector.broadcast %cst_46 : f32 to vector<24x1xf32>
    %111 = arith.addf %109, %110 : vector<24x1xf32>
    %112 = math.rsqrt %111 : vector<24x1xf32>
    %113 = vector.broadcast %112 : vector<24x1xf32> to vector<24x32xf32>
    %114 = arith.mulf %104, %113 : vector<24x32xf32>
    %115 = vector.broadcast %96 : vector<1x32xf32> to vector<24x32xf32>
    %116 = arith.mulf %114, %115 : vector<24x32xf32>
    %117 = vector.broadcast %98 : vector<1x32xf32> to vector<24x32xf32>
    %118 = arith.addf %116, %117 : vector<24x32xf32>
    %119 = arith.truncf %118 : vector<24x32xf32> to vector<24x32xbf16>
    %c0_47 = arith.constant 0 : index
    %c0_48 = arith.constant 0 : index
    %c0_49 = arith.constant 0 : index
    %120 = vector.load %arg9[%c0_47, %c0_48, %c0_49] : memref<2x32x128xbf16, #tpu.memory_space<vmem>>, vector<1x32x128xbf16>
    %121 = vector.shape_cast %120 : vector<1x32x128xbf16> to vector<32x128xbf16>
    %cst_50 = arith.constant dense<0.000000e+00> : vector<24x128xf32>
    %122 = tpu.matmul %119, %121, %cst_50 {dimension_numbers = #tpu.dot_dimension_numbers<[1], [0], [0], [1], [0, 0, 1, 1], [], []>} : vector<24x32xbf16>, vector<32x128xbf16>, vector<24x128xf32> -> vector<24x128xf32>
    %c0_51 = arith.constant 0 : index
    %c0_52 = arith.constant 0 : index
    %c0_53 = arith.constant 0 : index
    %123 = vector.load %arg10[%c0_51, %c0_52, %c0_53] : memref<2x1x128xf32, #tpu.memory_space<vmem>>, vector<1x1x128xf32>
    %124 = vector.shape_cast %123 : vector<1x1x128xf32> to vector<1x128xf32>
    %125 = vector.broadcast %124 : vector<1x128xf32> to vector<24x128xf32>
    %126 = arith.addf %122, %125 : vector<24x128xf32>
    %cst_54 = arith.constant 0.000000e+00 : f32
    %127 = vector.broadcast %cst_54 : f32 to vector<24x128xf32>
    %128 = arith.maximumf %126, %127 : vector<24x128xf32>
    %129 = arith.truncf %128 : vector<24x128xf32> to vector<24x128xbf16>
    %c0_55 = arith.constant 0 : index
    %c0_56 = arith.constant 0 : index
    %c0_57 = arith.constant 0 : index
    %130 = vector.load %arg11[%c0_55, %c0_56, %c0_57] : memref<2x128x32xbf16, #tpu.memory_space<vmem>>, vector<1x128x32xbf16>
    %131 = vector.shape_cast %130 : vector<1x128x32xbf16> to vector<128x32xbf16>
    %cst_58 = arith.constant dense<0.000000e+00> : vector<24x32xf32>
    %132 = tpu.matmul %129, %131, %cst_58 {dimension_numbers = #tpu.dot_dimension_numbers<[1], [0], [0], [1], [0, 0, 1, 1], [], []>} : vector<24x128xbf16>, vector<128x32xbf16>, vector<24x32xf32> -> vector<24x32xf32>
    %c0_59 = arith.constant 0 : index
    %c0_60 = arith.constant 0 : index
    %c0_61 = arith.constant 0 : index
    %133 = vector.load %arg12[%c0_59, %c0_60, %c0_61] : memref<2x1x32xf32, #tpu.memory_space<vmem>>, vector<1x1x32xf32>
    %134 = vector.shape_cast %133 : vector<1x1x32xf32> to vector<1x32xf32>
    %135 = vector.broadcast %134 : vector<1x32xf32> to vector<24x32xf32>
    %136 = arith.addf %132, %135 : vector<24x32xf32>
    %137 = arith.addf %118, %136 : vector<24x32xf32>
    %c0_62 = arith.constant 0 : index
    %c0_63 = arith.constant 0 : index
    %c0_64 = arith.constant 0 : index
    %138 = vector.load %arg15[%c0_62, %c0_63, %c0_64] : memref<2x1x32xf32, #tpu.memory_space<vmem>>, vector<1x1x32xf32>
    %139 = vector.shape_cast %138 : vector<1x1x32xf32> to vector<1x32xf32>
    %c0_65 = arith.constant 0 : index
    %c0_66 = arith.constant 0 : index
    %c0_67 = arith.constant 0 : index
    %140 = vector.load %arg16[%c0_65, %c0_66, %c0_67] : memref<2x1x32xf32, #tpu.memory_space<vmem>>, vector<1x1x32xf32>
    %141 = vector.shape_cast %140 : vector<1x1x32xf32> to vector<1x32xf32>
    %cst_68 = arith.constant dense<0.000000e+00> : vector<24xf32>
    %142 = vector.multi_reduction <add>, %137, %cst_68 [1] : vector<24x32xf32> to vector<24xf32>
    %143 = vector.shape_cast %142 : vector<24xf32> to vector<24x1xf32>
    %cst_69 = arith.constant 3.200000e+01 : f32
    %144 = vector.broadcast %cst_69 : f32 to vector<24x1xf32>
    %145 = arith.divf %143, %144 : vector<24x1xf32>
    %146 = vector.broadcast %145 : vector<24x1xf32> to vector<24x32xf32>
    %147 = arith.subf %137, %146 : vector<24x32xf32>
    %148 = arith.mulf %147, %147 : vector<24x32xf32>
    %cst_70 = arith.constant dense<0.000000e+00> : vector<24xf32>
    %149 = vector.multi_reduction <add>, %148, %cst_70 [1] : vector<24x32xf32> to vector<24xf32>
    %150 = vector.shape_cast %149 : vector<24xf32> to vector<24x1xf32>
    %cst_71 = arith.constant 3.200000e+01 : f32
    %151 = vector.broadcast %cst_71 : f32 to vector<24x1xf32>
    %152 = arith.divf %150, %151 : vector<24x1xf32>
    %cst_72 = arith.constant 9.99999974E-6 : f32
    %153 = vector.broadcast %cst_72 : f32 to vector<24x1xf32>
    %154 = arith.addf %152, %153 : vector<24x1xf32>
    %155 = math.rsqrt %154 : vector<24x1xf32>
    %156 = vector.broadcast %155 : vector<24x1xf32> to vector<24x32xf32>
    %157 = arith.mulf %147, %156 : vector<24x32xf32>
    %158 = vector.broadcast %139 : vector<1x32xf32> to vector<24x32xf32>
    %159 = arith.mulf %157, %158 : vector<24x32xf32>
    %160 = vector.broadcast %141 : vector<1x32xf32> to vector<24x32xf32>
    %161 = arith.addf %159, %160 : vector<24x32xf32>
    %162 = arith.truncf %161 : vector<24x32xf32> to vector<24x32xbf16>
    %c1 = arith.constant 1 : index
    %c0_73 = arith.constant 0 : index
    %c0_74 = arith.constant 0 : index
    %163 = vector.load %arg5[%c1, %c0_73, %c0_74] : memref<2x32x96xbf16, #tpu.memory_space<vmem>>, vector<1x32x96xbf16>
    %164 = vector.shape_cast %163 : vector<1x32x96xbf16> to vector<32x96xbf16>
    %cst_75 = arith.constant dense<0.000000e+00> : vector<24x96xf32>
    %165 = tpu.matmul %162, %164, %cst_75 {dimension_numbers = #tpu.dot_dimension_numbers<[1], [0], [0], [1], [0, 0, 1, 1], [], []>} : vector<24x32xbf16>, vector<32x96xbf16>, vector<24x96xf32> -> vector<24x96xf32>
    %c1_76 = arith.constant 1 : index
    %c0_77 = arith.constant 0 : index
    %c0_78 = arith.constant 0 : index
    %166 = vector.load %arg6[%c1_76, %c0_77, %c0_78] : memref<2x1x96xf32, #tpu.memory_space<vmem>>, vector<1x1x96xf32>
    %167 = vector.shape_cast %166 : vector<1x1x96xf32> to vector<1x96xf32>
    %168 = vector.broadcast %167 : vector<1x96xf32> to vector<24x96xf32>
    %169 = arith.addf %165, %168 : vector<24x96xf32>
    %170 = arith.truncf %169 : vector<24x96xf32> to vector<24x96xbf16>
    %171 = vector.shape_cast %170 : vector<24x96xbf16> to vector<3x8x96xbf16>
    %172 = vector.extract_strided_slice %171 {offsets = [0, 0, 0], sizes = [3, 8, 8], strides = [1, 1, 1]} : vector<3x8x96xbf16> to vector<3x8x8xbf16>
    %173 = vector.extract_strided_slice %171 {offsets = [0, 0, 32], sizes = [3, 8, 8], strides = [1, 1, 1]} : vector<3x8x96xbf16> to vector<3x8x8xbf16>
    %174 = vector.extract_strided_slice %171 {offsets = [0, 0, 64], sizes = [3, 8, 8], strides = [1, 1, 1]} : vector<3x8x96xbf16> to vector<3x8x8xbf16>
    "tpu.trace_start"() <{level = 10 : i32, message = "gqd,gkd->gqk"}> : () -> ()
    %cst_79 = arith.constant dense<0.000000e+00> : vector<3x8x8xf32>
    %175 = tpu.matmul %172, %173, %cst_79 {dimension_numbers = #tpu.dot_dimension_numbers<[2], [2], [1], [1], [0, 0, 0, 1, 1, 1], [0], [0]>} : vector<3x8x8xbf16>, vector<3x8x8xbf16>, vector<3x8x8xf32> -> vector<3x8x8xf32>
    "tpu.trace_stop"() : () -> ()
    %cst_80 = arith.constant dense<0xFF800000> : vector<3x8xf32>
    %176 = vector.multi_reduction <maximumf>, %175, %cst_80 [2] : vector<3x8x8xf32> to vector<3x8xf32>
    %177 = vector.shape_cast %176 : vector<3x8xf32> to vector<3x8x1xf32>
    %178 = vector.broadcast %177 : vector<3x8x1xf32> to vector<3x8x8xf32>
    %179 = arith.subf %175, %178 : vector<3x8x8xf32>
    %180 = math.exp %179 : vector<3x8x8xf32>
    %cst_81 = arith.constant dense<0.000000e+00> : vector<3x8xf32>
    %181 = vector.multi_reduction <add>, %180, %cst_81 [2] : vector<3x8x8xf32> to vector<3x8xf32>
    %182 = vector.shape_cast %181 : vector<3x8xf32> to vector<3x8x1xf32>
    %183 = tpu.reciprocal %182 {approx = true} : vector<3x8x1xf32> -> vector<3x8x1xf32>
    %184 = arith.truncf %180 : vector<3x8x8xf32> to vector<3x8x8xbf16>
    "tpu.trace_start"() <{level = 10 : i32, message = "gqk,gkd->gqd"}> : () -> ()
    %cst_82 = arith.constant dense<0.000000e+00> : vector<3x8x8xf32>
    %185 = tpu.matmul %184, %174, %cst_82 {dimension_numbers = #tpu.dot_dimension_numbers<[2], [1], [1], [2], [0, 0, 0, 1, 1, 2], [0], [0]>} : vector<3x8x8xbf16>, vector<3x8x8xbf16>, vector<3x8x8xf32> -> vector<3x8x8xf32>
    "tpu.trace_stop"() : () -> ()
    %186 = vector.broadcast %183 : vector<3x8x1xf32> to vector<3x8x8xf32>
    %187 = arith.mulf %185, %186 : vector<3x8x8xf32>
    %188 = vector.extract_strided_slice %171 {offsets = [0, 0, 8], sizes = [3, 8, 8], strides = [1, 1, 1]} : vector<3x8x96xbf16> to vector<3x8x8xbf16>
    %189 = vector.extract_strided_slice %171 {offsets = [0, 0, 40], sizes = [3, 8, 8], strides = [1, 1, 1]} : vector<3x8x96xbf16> to vector<3x8x8xbf16>
    %190 = vector.extract_strided_slice %171 {offsets = [0, 0, 72], sizes = [3, 8, 8], strides = [1, 1, 1]} : vector<3x8x96xbf16> to vector<3x8x8xbf16>
    "tpu.trace_start"() <{level = 10 : i32, message = "gqd,gkd->gqk"}> : () -> ()
    %cst_83 = arith.constant dense<0.000000e+00> : vector<3x8x8xf32>
    %191 = tpu.matmul %188, %189, %cst_83 {dimension_numbers = #tpu.dot_dimension_numbers<[2], [2], [1], [1], [0, 0, 0, 1, 1, 1], [0], [0]>} : vector<3x8x8xbf16>, vector<3x8x8xbf16>, vector<3x8x8xf32> -> vector<3x8x8xf32>
    "tpu.trace_stop"() : () -> ()
    %cst_84 = arith.constant dense<0xFF800000> : vector<3x8xf32>
    %192 = vector.multi_reduction <maximumf>, %191, %cst_84 [2] : vector<3x8x8xf32> to vector<3x8xf32>
    %193 = vector.shape_cast %192 : vector<3x8xf32> to vector<3x8x1xf32>
    %194 = vector.broadcast %193 : vector<3x8x1xf32> to vector<3x8x8xf32>
    %195 = arith.subf %191, %194 : vector<3x8x8xf32>
    %196 = math.exp %195 : vector<3x8x8xf32>
    %cst_85 = arith.constant dense<0.000000e+00> : vector<3x8xf32>
    %197 = vector.multi_reduction <add>, %196, %cst_85 [2] : vector<3x8x8xf32> to vector<3x8xf32>
    %198 = vector.shape_cast %197 : vector<3x8xf32> to vector<3x8x1xf32>
    %199 = tpu.reciprocal %198 {approx = true} : vector<3x8x1xf32> -> vector<3x8x1xf32>
    %200 = arith.truncf %196 : vector<3x8x8xf32> to vector<3x8x8xbf16>
    "tpu.trace_start"() <{level = 10 : i32, message = "gqk,gkd->gqd"}> : () -> ()
    %cst_86 = arith.constant dense<0.000000e+00> : vector<3x8x8xf32>
    %201 = tpu.matmul %200, %190, %cst_86 {dimension_numbers = #tpu.dot_dimension_numbers<[2], [1], [1], [2], [0, 0, 0, 1, 1, 2], [0], [0]>} : vector<3x8x8xbf16>, vector<3x8x8xbf16>, vector<3x8x8xf32> -> vector<3x8x8xf32>
    "tpu.trace_stop"() : () -> ()
    %202 = vector.broadcast %199 : vector<3x8x1xf32> to vector<3x8x8xf32>
    %203 = arith.mulf %201, %202 : vector<3x8x8xf32>
    %204 = vector.extract_strided_slice %171 {offsets = [0, 0, 16], sizes = [3, 8, 8], strides = [1, 1, 1]} : vector<3x8x96xbf16> to vector<3x8x8xbf16>
    %205 = vector.extract_strided_slice %171 {offsets = [0, 0, 48], sizes = [3, 8, 8], strides = [1, 1, 1]} : vector<3x8x96xbf16> to vector<3x8x8xbf16>
    %206 = vector.extract_strided_slice %171 {offsets = [0, 0, 80], sizes = [3, 8, 8], strides = [1, 1, 1]} : vector<3x8x96xbf16> to vector<3x8x8xbf16>
    "tpu.trace_start"() <{level = 10 : i32, message = "gqd,gkd->gqk"}> : () -> ()
    %cst_87 = arith.constant dense<0.000000e+00> : vector<3x8x8xf32>
    %207 = tpu.matmul %204, %205, %cst_87 {dimension_numbers = #tpu.dot_dimension_numbers<[2], [2], [1], [1], [0, 0, 0, 1, 1, 1], [0], [0]>} : vector<3x8x8xbf16>, vector<3x8x8xbf16>, vector<3x8x8xf32> -> vector<3x8x8xf32>
    "tpu.trace_stop"() : () -> ()
    %cst_88 = arith.constant dense<0xFF800000> : vector<3x8xf32>
    %208 = vector.multi_reduction <maximumf>, %207, %cst_88 [2] : vector<3x8x8xf32> to vector<3x8xf32>
    %209 = vector.shape_cast %208 : vector<3x8xf32> to vector<3x8x1xf32>
    %210 = vector.broadcast %209 : vector<3x8x1xf32> to vector<3x8x8xf32>
    %211 = arith.subf %207, %210 : vector<3x8x8xf32>
    %212 = math.exp %211 : vector<3x8x8xf32>
    %cst_89 = arith.constant dense<0.000000e+00> : vector<3x8xf32>
    %213 = vector.multi_reduction <add>, %212, %cst_89 [2] : vector<3x8x8xf32> to vector<3x8xf32>
    %214 = vector.shape_cast %213 : vector<3x8xf32> to vector<3x8x1xf32>
    %215 = tpu.reciprocal %214 {approx = true} : vector<3x8x1xf32> -> vector<3x8x1xf32>
    %216 = arith.truncf %212 : vector<3x8x8xf32> to vector<3x8x8xbf16>
    "tpu.trace_start"() <{level = 10 : i32, message = "gqk,gkd->gqd"}> : () -> ()
    %cst_90 = arith.constant dense<0.000000e+00> : vector<3x8x8xf32>
    %217 = tpu.matmul %216, %206, %cst_90 {dimension_numbers = #tpu.dot_dimension_numbers<[2], [1], [1], [2], [0, 0, 0, 1, 1, 2], [0], [0]>} : vector<3x8x8xbf16>, vector<3x8x8xbf16>, vector<3x8x8xf32> -> vector<3x8x8xf32>
    "tpu.trace_stop"() : () -> ()
    %218 = vector.broadcast %215 : vector<3x8x1xf32> to vector<3x8x8xf32>
    %219 = arith.mulf %217, %218 : vector<3x8x8xf32>
    %220 = vector.extract_strided_slice %171 {offsets = [0, 0, 24], sizes = [3, 8, 8], strides = [1, 1, 1]} : vector<3x8x96xbf16> to vector<3x8x8xbf16>
    %221 = vector.extract_strided_slice %171 {offsets = [0, 0, 56], sizes = [3, 8, 8], strides = [1, 1, 1]} : vector<3x8x96xbf16> to vector<3x8x8xbf16>
    %222 = vector.extract_strided_slice %171 {offsets = [0, 0, 88], sizes = [3, 8, 8], strides = [1, 1, 1]} : vector<3x8x96xbf16> to vector<3x8x8xbf16>
    "tpu.trace_start"() <{level = 10 : i32, message = "gqd,gkd->gqk"}> : () -> ()
    %cst_91 = arith.constant dense<0.000000e+00> : vector<3x8x8xf32>
    %223 = tpu.matmul %220, %221, %cst_91 {dimension_numbers = #tpu.dot_dimension_numbers<[2], [2], [1], [1], [0, 0, 0, 1, 1, 1], [0], [0]>} : vector<3x8x8xbf16>, vector<3x8x8xbf16>, vector<3x8x8xf32> -> vector<3x8x8xf32>
    "tpu.trace_stop"() : () -> ()
    %cst_92 = arith.constant dense<0xFF800000> : vector<3x8xf32>
    %224 = vector.multi_reduction <maximumf>, %223, %cst_92 [2] : vector<3x8x8xf32> to vector<3x8xf32>
    %225 = vector.shape_cast %224 : vector<3x8xf32> to vector<3x8x1xf32>
    %226 = vector.broadcast %225 : vector<3x8x1xf32> to vector<3x8x8xf32>
    %227 = arith.subf %223, %226 : vector<3x8x8xf32>
    %228 = math.exp %227 : vector<3x8x8xf32>
    %cst_93 = arith.constant dense<0.000000e+00> : vector<3x8xf32>
    %229 = vector.multi_reduction <add>, %228, %cst_93 [2] : vector<3x8x8xf32> to vector<3x8xf32>
    %230 = vector.shape_cast %229 : vector<3x8xf32> to vector<3x8x1xf32>
    %231 = tpu.reciprocal %230 {approx = true} : vector<3x8x1xf32> -> vector<3x8x1xf32>
    %232 = arith.truncf %228 : vector<3x8x8xf32> to vector<3x8x8xbf16>
    "tpu.trace_start"() <{level = 10 : i32, message = "gqk,gkd->gqd"}> : () -> ()
    %cst_94 = arith.constant dense<0.000000e+00> : vector<3x8x8xf32>
    %233 = tpu.matmul %232, %222, %cst_94 {dimension_numbers = #tpu.dot_dimension_numbers<[2], [1], [1], [2], [0, 0, 0, 1, 1, 2], [0], [0]>} : vector<3x8x8xbf16>, vector<3x8x8xbf16>, vector<3x8x8xf32> -> vector<3x8x8xf32>
    "tpu.trace_stop"() : () -> ()
    %234 = vector.broadcast %231 : vector<3x8x1xf32> to vector<3x8x8xf32>
    %235 = arith.mulf %233, %234 : vector<3x8x8xf32>
    %236 = tpu.concatenate %187, %203, %219, %235 in 2 : vector<3x8x8xf32>, vector<3x8x8xf32>, vector<3x8x8xf32>, vector<3x8x8xf32> -> vector<3x8x32xf32>
    %237 = vector.shape_cast %236 : vector<3x8x32xf32> to vector<24x32xf32>
    %238 = arith.truncf %237 : vector<24x32xf32> to vector<24x32xbf16>
    %c1_95 = arith.constant 1 : index
    %c0_96 = arith.constant 0 : index
    %c0_97 = arith.constant 0 : index
    %239 = vector.load %arg7[%c1_95, %c0_96, %c0_97] : memref<2x32x32xbf16, #tpu.memory_space<vmem>>, vector<1x32x32xbf16>
    %240 = vector.shape_cast %239 : vector<1x32x32xbf16> to vector<32x32xbf16>
    %cst_98 = arith.constant dense<0.000000e+00> : vector<24x32xf32>
    %241 = tpu.matmul %238, %240, %cst_98 {dimension_numbers = #tpu.dot_dimension_numbers<[1], [0], [0], [1], [0, 0, 1, 1], [], []>} : vector<24x32xbf16>, vector<32x32xbf16>, vector<24x32xf32> -> vector<24x32xf32>
    %c1_99 = arith.constant 1 : index
    %c0_100 = arith.constant 0 : index
    %c0_101 = arith.constant 0 : index
    %242 = vector.load %arg8[%c1_99, %c0_100, %c0_101] : memref<2x1x32xf32, #tpu.memory_space<vmem>>, vector<1x1x32xf32>
    %243 = vector.shape_cast %242 : vector<1x1x32xf32> to vector<1x32xf32>
    %244 = vector.broadcast %243 : vector<1x32xf32> to vector<24x32xf32>
    %245 = arith.addf %241, %244 : vector<24x32xf32>
    %246 = arith.addf %161, %245 : vector<24x32xf32>
    %c1_102 = arith.constant 1 : index
    %c0_103 = arith.constant 0 : index
    %c0_104 = arith.constant 0 : index
    %247 = vector.load %arg13[%c1_102, %c0_103, %c0_104] : memref<2x1x32xf32, #tpu.memory_space<vmem>>, vector<1x1x32xf32>
    %248 = vector.shape_cast %247 : vector<1x1x32xf32> to vector<1x32xf32>
    %c1_105 = arith.constant 1 : index
    %c0_106 = arith.constant 0 : index
    %c0_107 = arith.constant 0 : index
    %249 = vector.load %arg14[%c1_105, %c0_106, %c0_107] : memref<2x1x32xf32, #tpu.memory_space<vmem>>, vector<1x1x32xf32>
    %250 = vector.shape_cast %249 : vector<1x1x32xf32> to vector<1x32xf32>
    %cst_108 = arith.constant dense<0.000000e+00> : vector<24xf32>
    %251 = vector.multi_reduction <add>, %246, %cst_108 [1] : vector<24x32xf32> to vector<24xf32>
    %252 = vector.shape_cast %251 : vector<24xf32> to vector<24x1xf32>
    %cst_109 = arith.constant 3.200000e+01 : f32
    %253 = vector.broadcast %cst_109 : f32 to vector<24x1xf32>
    %254 = arith.divf %252, %253 : vector<24x1xf32>
    %255 = vector.broadcast %254 : vector<24x1xf32> to vector<24x32xf32>
    %256 = arith.subf %246, %255 : vector<24x32xf32>
    %257 = arith.mulf %256, %256 : vector<24x32xf32>
    %cst_110 = arith.constant dense<0.000000e+00> : vector<24xf32>
    %258 = vector.multi_reduction <add>, %257, %cst_110 [1] : vector<24x32xf32> to vector<24xf32>
    %259 = vector.shape_cast %258 : vector<24xf32> to vector<24x1xf32>
    %cst_111 = arith.constant 3.200000e+01 : f32
    %260 = vector.broadcast %cst_111 : f32 to vector<24x1xf32>
    %261 = arith.divf %259, %260 : vector<24x1xf32>
    %cst_112 = arith.constant 9.99999974E-6 : f32
    %262 = vector.broadcast %cst_112 : f32 to vector<24x1xf32>
    %263 = arith.addf %261, %262 : vector<24x1xf32>
    %264 = math.rsqrt %263 : vector<24x1xf32>
    %265 = vector.broadcast %264 : vector<24x1xf32> to vector<24x32xf32>
    %266 = arith.mulf %256, %265 : vector<24x32xf32>
    %267 = vector.broadcast %248 : vector<1x32xf32> to vector<24x32xf32>
    %268 = arith.mulf %266, %267 : vector<24x32xf32>
    %269 = vector.broadcast %250 : vector<1x32xf32> to vector<24x32xf32>
    %270 = arith.addf %268, %269 : vector<24x32xf32>
    %271 = arith.truncf %270 : vector<24x32xf32> to vector<24x32xbf16>
    %c1_113 = arith.constant 1 : index
    %c0_114 = arith.constant 0 : index
    %c0_115 = arith.constant 0 : index
    %272 = vector.load %arg9[%c1_113, %c0_114, %c0_115] : memref<2x32x128xbf16, #tpu.memory_space<vmem>>, vector<1x32x128xbf16>
    %273 = vector.shape_cast %272 : vector<1x32x128xbf16> to vector<32x128xbf16>
    %cst_116 = arith.constant dense<0.000000e+00> : vector<24x128xf32>
    %274 = tpu.matmul %271, %273, %cst_116 {dimension_numbers = #tpu.dot_dimension_numbers<[1], [0], [0], [1], [0, 0, 1, 1], [], []>} : vector<24x32xbf16>, vector<32x128xbf16>, vector<24x128xf32> -> vector<24x128xf32>
    %c1_117 = arith.constant 1 : index
    %c0_118 = arith.constant 0 : index
    %c0_119 = arith.constant 0 : index
    %275 = vector.load %arg10[%c1_117, %c0_118, %c0_119] : memref<2x1x128xf32, #tpu.memory_space<vmem>>, vector<1x1x128xf32>
    %276 = vector.shape_cast %275 : vector<1x1x128xf32> to vector<1x128xf32>
    %277 = vector.broadcast %276 : vector<1x128xf32> to vector<24x128xf32>
    %278 = arith.addf %274, %277 : vector<24x128xf32>
    %cst_120 = arith.constant 0.000000e+00 : f32
    %279 = vector.broadcast %cst_120 : f32 to vector<24x128xf32>
    %280 = arith.maximumf %278, %279 : vector<24x128xf32>
    %281 = arith.truncf %280 : vector<24x128xf32> to vector<24x128xbf16>
    %c1_121 = arith.constant 1 : index
    %c0_122 = arith.constant 0 : index
    %c0_123 = arith.constant 0 : index
    %282 = vector.load %arg11[%c1_121, %c0_122, %c0_123] : memref<2x128x32xbf16, #tpu.memory_space<vmem>>, vector<1x128x32xbf16>
    %283 = vector.shape_cast %282 : vector<1x128x32xbf16> to vector<128x32xbf16>
    %cst_124 = arith.constant dense<0.000000e+00> : vector<24x32xf32>
    %284 = tpu.matmul %281, %283, %cst_124 {dimension_numbers = #tpu.dot_dimension_numbers<[1], [0], [0], [1], [0, 0, 1, 1], [], []>} : vector<24x128xbf16>, vector<128x32xbf16>, vector<24x32xf32> -> vector<24x32xf32>
    %c1_125 = arith.constant 1 : index
    %c0_126 = arith.constant 0 : index
    %c0_127 = arith.constant 0 : index
    %285 = vector.load %arg12[%c1_125, %c0_126, %c0_127] : memref<2x1x32xf32, #tpu.memory_space<vmem>>, vector<1x1x32xf32>
    %286 = vector.shape_cast %285 : vector<1x1x32xf32> to vector<1x32xf32>
    %287 = vector.broadcast %286 : vector<1x32xf32> to vector<24x32xf32>
    %288 = arith.addf %284, %287 : vector<24x32xf32>
    %289 = arith.addf %270, %288 : vector<24x32xf32>
    %c1_128 = arith.constant 1 : index
    %c0_129 = arith.constant 0 : index
    %c0_130 = arith.constant 0 : index
    %290 = vector.load %arg15[%c1_128, %c0_129, %c0_130] : memref<2x1x32xf32, #tpu.memory_space<vmem>>, vector<1x1x32xf32>
    %291 = vector.shape_cast %290 : vector<1x1x32xf32> to vector<1x32xf32>
    %c1_131 = arith.constant 1 : index
    %c0_132 = arith.constant 0 : index
    %c0_133 = arith.constant 0 : index
    %292 = vector.load %arg16[%c1_131, %c0_132, %c0_133] : memref<2x1x32xf32, #tpu.memory_space<vmem>>, vector<1x1x32xf32>
    %293 = vector.shape_cast %292 : vector<1x1x32xf32> to vector<1x32xf32>
    %cst_134 = arith.constant dense<0.000000e+00> : vector<24xf32>
    %294 = vector.multi_reduction <add>, %289, %cst_134 [1] : vector<24x32xf32> to vector<24xf32>
    %295 = vector.shape_cast %294 : vector<24xf32> to vector<24x1xf32>
    %cst_135 = arith.constant 3.200000e+01 : f32
    %296 = vector.broadcast %cst_135 : f32 to vector<24x1xf32>
    %297 = arith.divf %295, %296 : vector<24x1xf32>
    %298 = vector.broadcast %297 : vector<24x1xf32> to vector<24x32xf32>
    %299 = arith.subf %289, %298 : vector<24x32xf32>
    %300 = arith.mulf %299, %299 : vector<24x32xf32>
    %cst_136 = arith.constant dense<0.000000e+00> : vector<24xf32>
    %301 = vector.multi_reduction <add>, %300, %cst_136 [1] : vector<24x32xf32> to vector<24xf32>
    %302 = vector.shape_cast %301 : vector<24xf32> to vector<24x1xf32>
    %cst_137 = arith.constant 3.200000e+01 : f32
    %303 = vector.broadcast %cst_137 : f32 to vector<24x1xf32>
    %304 = arith.divf %302, %303 : vector<24x1xf32>
    %cst_138 = arith.constant 9.99999974E-6 : f32
    %305 = vector.broadcast %cst_138 : f32 to vector<24x1xf32>
    %306 = arith.addf %304, %305 : vector<24x1xf32>
    %307 = math.rsqrt %306 : vector<24x1xf32>
    %308 = vector.broadcast %307 : vector<24x1xf32> to vector<24x32xf32>
    %309 = arith.mulf %299, %308 : vector<24x32xf32>
    %310 = vector.broadcast %291 : vector<1x32xf32> to vector<24x32xf32>
    %311 = arith.mulf %309, %310 : vector<24x32xf32>
    %312 = vector.broadcast %293 : vector<1x32xf32> to vector<24x32xf32>
    %313 = arith.addf %311, %312 : vector<24x32xf32>
    %c0_139 = arith.constant 0 : index
    %c0_140 = arith.constant 0 : index
    %314 = vector.load %arg17[%c0_139, %c0_140] : memref<24x32xf32, #tpu.memory_space<vmem>>, vector<24x32xf32>
    tpu.vector_store %arg17[%c0_139, %c0_140], %313 {strides = array<i32>} : memref<24x32xf32, #tpu.memory_space<vmem>>, vector<24x32xf32>,
    return
  }
  func.func @transform_0(%arg0: i32) -> (i32, i32) {
    %c0_i32 = arith.constant 0 : i32
    %c0_i32_0 = arith.constant 0 : i32
    return %arg0, %c0_i32 : i32, i32
  }
  func.func @transform_1(%arg0: i32) -> (i32, i32) {
    %c0_i32 = arith.constant 0 : i32
    %c0_i32_0 = arith.constant 0 : i32
    return %arg0, %c0_i32 : i32, i32
  }
  func.func @transform_2(%arg0: i32) -> (i32, i32) {
    %c0_i32 = arith.constant 0 : i32
    %c0_i32_0 = arith.constant 0 : i32
    %c0_i32_1 = arith.constant 0 : i32
    return %c0_i32, %c0_i32_0 : i32, i32
  }
  func.func @transform_3(%arg0: i32) -> (i32, i32) {
    %c0_i32 = arith.constant 0 : i32
    %c0_i32_0 = arith.constant 0 : i32
    %c0_i32_1 = arith.constant 0 : i32
    return %c0_i32, %c0_i32_0 : i32, i32
  }
  func.func @transform_4(%arg0: i32) -> (i32, i32, i32) {
    %c0_i32 = arith.constant 0 : i32
    %c0_i32_0 = arith.constant 0 : i32
    %c0_i32_1 = arith.constant 0 : i32
    %c0_i32_2 = arith.constant 0 : i32
    return %c0_i32, %c0_i32_0, %c0_i32_1 : i32, i32, i32
  }
  func.func @transform_5(%arg0: i32) -> (i32, i32, i32) {
    %c0_i32 = arith.constant 0 : i32
    %c0_i32_0 = arith.constant 0 : i32
    %c0_i32_1 = arith.constant 0 : i32
    %c0_i32_2 = arith.constant 0 : i32
    return %c0_i32, %c0_i32_0, %c0_i32_1 : i32, i32, i32
  }
  func.func @transform_6(%arg0: i32) -> (i32, i32, i32) {
    %c0_i32 = arith.constant 0 : i32
    %c0_i32_0 = arith.constant 0 : i32
    %c0_i32_1 = arith.constant 0 : i32
    %c0_i32_2 = arith.constant 0 : i32
    return %c0_i32, %c0_i32_0, %c0_i32_1 : i32, i32, i32
  }
  func.func @transform_7(%arg0: i32) -> (i32, i32, i32) {
    %c0_i32 = arith.constant 0 : i32
    %c0_i32_0 = arith.constant 0 : i32
    %c0_i32_1 = arith.constant 0 : i32
    %c0_i32_2 = arith.constant 0 : i32
    return %c0_i32, %c0_i32_0, %c0_i32_1 : i32, i32, i32
  }
  func.func @transform_8(%arg0: i32) -> (i32, i32, i32) {
    %c0_i32 = arith.constant 0 : i32
    %c0_i32_0 = arith.constant 0 : i32
    %c0_i32_1 = arith.constant 0 : i32
    %c0_i32_2 = arith.constant 0 : i32
    return %c0_i32, %c0_i32_0, %c0_i32_1 : i32, i32, i32
  }
  func.func @transform_9(%arg0: i32) -> (i32, i32, i32) {
    %c0_i32 = arith.constant 0 : i32
    %c0_i32_0 = arith.constant 0 : i32
    %c0_i32_1 = arith.constant 0 : i32
    %c0_i32_2 = arith.constant 0 : i32
    return %c0_i32, %c0_i32_0, %c0_i32_1 : i32, i32, i32
  }
  func.func @transform_10(%arg0: i32) -> (i32, i32, i32) {
    %c0_i32 = arith.constant 0 : i32
    %c0_i32_0 = arith.constant 0 : i32
    %c0_i32_1 = arith.constant 0 : i32
    %c0_i32_2 = arith.constant 0 : i32
    return %c0_i32, %c0_i32_0, %c0_i32_1 : i32, i32, i32
  }
  func.func @transform_11(%arg0: i32) -> (i32, i32, i32) {
    %c0_i32 = arith.constant 0 : i32
    %c0_i32_0 = arith.constant 0 : i32
    %c0_i32_1 = arith.constant 0 : i32
    %c0_i32_2 = arith.constant 0 : i32
    return %c0_i32, %c0_i32_0, %c0_i32_1 : i32, i32, i32
  }
  func.func @transform_12(%arg0: i32) -> (i32, i32, i32) {
    %c0_i32 = arith.constant 0 : i32
    %c0_i32_0 = arith.constant 0 : i32
    %c0_i32_1 = arith.constant 0 : i32
    %c0_i32_2 = arith.constant 0 : i32
    return %c0_i32, %c0_i32_0, %c0_i32_1 : i32, i32, i32
  }
  func.func @transform_13(%arg0: i32) -> (i32, i32, i32) {
    %c0_i32 = arith.constant 0 : i32
    %c0_i32_0 = arith.constant 0 : i32
    %c0_i32_1 = arith.constant 0 : i32
    %c0_i32_2 = arith.constant 0 : i32
    return %c0_i32, %c0_i32_0, %c0_i32_1 : i32, i32, i32
  }
  func.func @transform_14(%arg0: i32) -> (i32, i32, i32) {
    %c0_i32 = arith.constant 0 : i32
    %c0_i32_0 = arith.constant 0 : i32
    %c0_i32_1 = arith.constant 0 : i32
    %c0_i32_2 = arith.constant 0 : i32
    return %c0_i32, %c0_i32_0, %c0_i32_1 : i32, i32, i32
  }
  func.func @transform_15(%arg0: i32) -> (i32, i32, i32) {
    %c0_i32 = arith.constant 0 : i32
    %c0_i32_0 = arith.constant 0 : i32
    %c0_i32_1 = arith.constant 0 : i32
    %c0_i32_2 = arith.constant 0 : i32
    return %c0_i32, %c0_i32_0, %c0_i32_1 : i32, i32, i32
  }
  func.func @transform_16(%arg0: i32) -> (i32, i32) {
    %c0_i32 = arith.constant 0 : i32
    %c0_i32_0 = arith.constant 0 : i32
    return %arg0, %c0_i32 : i32, i32
  }
}

</mosaic_0001>

<llo_original>
// kernel: transformer_network_forward.1
$region0: #{transformer_network_forward.1}
  #allocation0 [shape = 'u32[]', space=smem, size = 0x4, offset = 0x4, fixed_abs, tag = 'smem constant byte address 0x4 - core index']
  #allocation1 [shape = 'u32[144,128]{1,0:T(1,128)}', space=vmem, size = 0x12000, scoped, tag = 'internal scratch']
  %s0 = inlined_call_operand.vmem [shape: f32[48,1], index: 0, kind: input, shape index: {}]
  %s1 = inlined_call_operand.vmem [shape: f32[48,32], index: 1, kind: input, shape index: {}]
  %s2 = inlined_call_operand.vmem [shape: f32[1,32], index: 2, kind: input, shape index: {}]
  %s3 = inlined_call_operand.vmem [shape: f32[1,32], index: 3, kind: input, shape index: {}]
  %s4 = inlined_call_operand.vmem [shape: bf16[2,32,96], index: 4, kind: input, shape index: {}]
  %s5 = inlined_call_operand.vmem [shape: f32[2,1,96], index: 5, kind: input, shape index: {}]
  %s6 = inlined_call_operand.vmem [shape: bf16[2,32,32], index: 6, kind: input, shape index: {}]
  %s7 = inlined_call_operand.vmem [shape: f32[2,1,32], index: 7, kind: input, shape index: {}]
  %s8 = inlined_call_operand.vmem [shape: bf16[2,32,128], index: 8, kind: input, shape index: {}]
  %s9 = inlined_call_operand.vmem [shape: f32[2,1,128], index: 9, kind: input, shape index: {}]
  %s10 = inlined_call_operand.vmem [shape: bf16[2,128,32], index: 10, kind: input, shape index: {}]
  %s11 = inlined_call_operand.vmem [shape: f32[2,1,32], index: 11, kind: input, shape index: {}]
  %s12 = inlined_call_operand.vmem [shape: f32[2,1,32], index: 12, kind: input, shape index: {}]
  %s13 = inlined_call_operand.vmem [shape: f32[2,1,32], index: 13, kind: input, shape index: {}]
  %s14 = inlined_call_operand.vmem [shape: f32[2,1,32], index: 14, kind: input, shape index: {}]
  %s15 = inlined_call_operand.vmem [shape: f32[2,1,32], index: 15, kind: input, shape index: {}]
  %s16 = inlined_call_operand.vmem [shape: f32[48,32], index: 16, kind: output, shape index: {}]
  %s17 = sld [smem:[#allocation0]]
  $region97: #{transformer_network_forward.1} parent=0
    _
  %s19 = ssub.s32 1, %s17
  %s20 = scalar_select 0, %s19, %s17
  loop: start=0, step=1, limit=4
  $region2: #{transformer_network_forward.1} parent=0 // loop_pre_header
    _
  $region3: #{transformer_network_forward.1} parent=0 // loop_header
    %s22 = sphi 0, %s26
    %p23 = scmp.ge.s32.totalorder %s22, 4
    %s32 = sphi 0, %s34
    %s35 = sphi 0, %s32
    %s36 = sphi 0, %s35
    %s52 = sphi 0, %s36
    %s58 = sphi 0, %s60
    %s61 = sphi 0, %s58
    %s62 = sphi 0, %s61
    %s78 = sphi 0, %s62
    %s82 = sphi 0, %s82
    %s84 = sphi 0, %s82
    %s85 = sphi 0, %s84
    %s99 = sphi 0, %s85
    %s103 = sphi 0, %s103
    %s105 = sphi 0, %s103
    %s106 = sphi 0, %s105
    %s120 = sphi 0, %s106
    %s124 = sphi 0, %s124
    %s126 = sphi 0, %s124
    %s127 = sphi 0, %s126
    %s141 = sphi 0, %s127
    %s145 = sphi 0, %s145
    %s147 = sphi 0, %s145
    %s148 = sphi 0, %s147
    %s162 = sphi 0, %s148
    %s166 = sphi 0, %s166
    %s168 = sphi 0, %s166
    %s169 = sphi 0, %s168
    %s183 = sphi 0, %s169
    %s187 = sphi 0, %s187
    %s189 = sphi 0, %s187
    %s190 = sphi 0, %s189
    %s204 = sphi 0, %s190
    %s208 = sphi 0, %s208
    %s210 = sphi 0, %s208
    %s211 = sphi 0, %s210
    %s225 = sphi 0, %s211
    %s229 = sphi 0, %s229
    %s231 = sphi 0, %s229
    %s232 = sphi 0, %s231
    %s246 = sphi 0, %s232
    %s250 = sphi 0, %s250
    %s252 = sphi 0, %s250
    %s253 = sphi 0, %s252
    %s267 = sphi 0, %s253
    %s271 = sphi 0, %s271
    %s273 = sphi 0, %s271
    %s274 = sphi 0, %s273
    %s288 = sphi 0, %s274
    %s292 = sphi 0, %s292
    %s294 = sphi 0, %s292
    %s295 = sphi 0, %s294
    %s309 = sphi 0, %s295
    %s313 = sphi 0, %s313
    %s315 = sphi 0, %s313
    %s316 = sphi 0, %s315
    %s330 = sphi 0, %s316
    %s334 = sphi 0, %s334
    %s336 = sphi 0, %s334
    %s337 = sphi 0, %s336
    %s351 = sphi 0, %s337
    %s355 = sphi 0, %s355
    %s357 = sphi 0, %s355
    %s358 = sphi 0, %s357
    %s372 = sphi 0, %s358
    %s378 = sphi 0, %s380
    %s381 = sphi 0, %s378
    %s382 = sphi 0, %s381
    %s398 = sphi 0, %s382
  $region4: #{transformer_network_forward.1} parent=0 // loop_header_branch
    %25 = sbr.rel (%p23) target = $region8
  $region5: #{transformer_network_forward.1} parent=0 // loop_body
    %s27 = ssub.s32 %s22, 1
    %s28 = ssub.s32 %s22, 2
    %s29 = sadd.s32 %s22, 1
    %s30 = ssub.s32 %s22, %s29
    %p31 = scmp.eq.s32.totalorder %s30, 0
    %s33 = sadd.s32 %s32, 1
    %s34 = scalar_select %p31, %s32, %s33
    %p37 = pneg %p31
    %p38 = scmp.eq.s32.totalorder %s22, 1
    %p39 = por %p37, %p38
    %p40 = scmp.ne.s32.totalorder %s32, %s35
    %p41 = scmp.eq.s32.totalorder %s22, 0
    %p42 = por %p40, %p41
    %p43 = scmp.ne.s32.totalorder %s32, %s35
    %p44 = scmp.eq.s32.totalorder %s27, 1
    %p45 = por %p43, %p44
    %p46 = scmp.ne.s32.totalorder %s35, %s36
    %p47 = scmp.eq.s32.totalorder %s27, 0
    %p48 = por %p46, %p47
    %p49 = scmp.ne.s32.totalorder %s35, %s36
    %p50 = scmp.eq.s32.totalorder %s28, 1
    %p51 = por %p49, %p50
    %p53 = scmp.ne.s32.totalorder %s36, %s52
    %p54 = scmp.eq.s32.totalorder %s28, 0
    %p55 = por %p53, %p54
    %s56 = ssub.s32 %s22, %s29
    %p57 = scmp.eq.s32.totalorder %s56, 0
    %s59 = sadd.s32 %s58, 1
    %s60 = scalar_select %p57, %s58, %s59
    %p63 = pneg %p57
    %p64 = scmp.eq.s32.totalorder %s22, 1
    %p65 = por %p63, %p64
    %p66 = scmp.ne.s32.totalorder %s58, %s61
    %p67 = scmp.eq.s32.totalorder %s22, 0
    %p68 = por %p66, %p67
    %p69 = scmp.ne.s32.totalorder %s58, %s61
    %p70 = scmp.eq.s32.totalorder %s27, 1
    %p71 = por %p69, %p70
    %p72 = scmp.ne.s32.totalorder %s61, %s62
    %p73 = scmp.eq.s32.totalorder %s27, 0
    %p74 = por %p72, %p73
    %p75 = scmp.ne.s32.totalorder %s61, %s62
    %p76 = scmp.eq.s32.totalorder %s28, 1
    %p77 = por %p75, %p76
    %p79 = scmp.ne.s32.totalorder %s62, %s78
    %p80 = scmp.eq.s32.totalorder %s28, 0
    %p81 = por %p79, %p80
    %s83 = sadd.s32 %s82, 1
    %p86 = scmp.eq.s32.totalorder %s22, 1
    %p87 = scmp.ne.s32.totalorder %s82, %s84
    %p88 = scmp.eq.s32.totalorder %s22, 0
    %p89 = por %p87, %p88
    %p90 = scmp.ne.s32.totalorder %s82, %s84
    %p91 = scmp.eq.s32.totalorder %s27, 1
    %p92 = por %p90, %p91
    %p93 = scmp.ne.s32.totalorder %s84, %s85
    %p94 = scmp.eq.s32.totalorder %s27, 0
    %p95 = por %p93, %p94
    %p96 = scmp.ne.s32.totalorder %s84, %s85
    %p97 = scmp.eq.s32.totalorder %s28, 1
    %p98 = por %p96, %p97
    %p100 = scmp.ne.s32.totalorder %s85, %s99
    %p101 = scmp.eq.s32.totalorder %s28, 0
    %p102 = por %p100, %p101
    %s104 = sadd.s32 %s103, 1
    %p107 = scmp.eq.s32.totalorder %s22, 1
    %p108 = scmp.ne.s32.totalorder %s103, %s105
    %p109 = scmp.eq.s32.totalorder %s22, 0
    %p110 = por %p108, %p109
    %p111 = scmp.ne.s32.totalorder %s103, %s105
    %p112 = scmp.eq.s32.totalorder %s27, 1
    %p113 = por %p111, %p112
    %p114 = scmp.ne.s32.totalorder %s105, %s106
    %p115 = scmp.eq.s32.totalorder %s27, 0
    %p116 = por %p114, %p115
    %p117 = scmp.ne.s32.totalorder %s105, %s106
    %p118 = scmp.eq.s32.totalorder %s28, 1
    %p119 = por %p117, %p118
    %p121 = scmp.ne.s32.totalorder %s106, %s120
    %p122 = scmp.eq.s32.totalorder %s28, 0
    %p123 = por %p121, %p122
    %s125 = sadd.s32 %s124, 1
    %p128 = scmp.eq.s32.totalorder %s22, 1
    %p129 = scmp.ne.s32.totalorder %s124, %s126
    %p130 = scmp.eq.s32.totalorder %s22, 0
    %p131 = por %p129, %p130
    %p132 = scmp.ne.s32.totalorder %s124, %s126
    %p133 = scmp.eq.s32.totalorder %s27, 1
    %p134 = por %p132, %p133
    %p135 = scmp.ne.s32.totalorder %s126, %s127
    %p136 = scmp.eq.s32.totalorder %s27, 0
    %p137 = por %p135, %p136
    %p138 = scmp.ne.s32.totalorder %s126, %s127
    %p139 = scmp.eq.s32.totalorder %s28, 1
    %p140 = por %p138, %p139
    %p142 = scmp.ne.s32.totalorder %s127, %s141
    %p143 = scmp.eq.s32.totalorder %s28, 0
    %p144 = por %p142, %p143
    %s146 = sadd.s32 %s145, 1
    %p149 = scmp.eq.s32.totalorder %s22, 1
    %p150 = scmp.ne.s32.totalorder %s145, %s147
    %p151 = scmp.eq.s32.totalorder %s22, 0
    %p152 = por %p150, %p151
    %p153 = scmp.ne.s32.totalorder %s145, %s147
    %p154 = scmp.eq.s32.totalorder %s27, 1
    %p155 = por %p153, %p154
    %p156 = scmp.ne.s32.totalorder %s147, %s148
    %p157 = scmp.eq.s32.totalorder %s27, 0
    %p158 = por %p156, %p157
    %p159 = scmp.ne.s32.totalorder %s147, %s148
    %p160 = scmp.eq.s32.totalorder %s28, 1
    %p161 = por %p159, %p160
    %p163 = scmp.ne.s32.totalorder %s148, %s162
    %p164 = scmp.eq.s32.totalorder %s28, 0
    %p165 = por %p163, %p164
    %s167 = sadd.s32 %s166, 1
    %p170 = scmp.eq.s32.totalorder %s22, 1
    %p171 = scmp.ne.s32.totalorder %s166, %s168
    %p172 = scmp.eq.s32.totalorder %s22, 0
    %p173 = por %p171, %p172
    %p174 = scmp.ne.s32.totalorder %s166, %s168
    %p175 = scmp.eq.s32.totalorder %s27, 1
    %p176 = por %p174, %p175
    %p177 = scmp.ne.s32.totalorder %s168, %s169
    %p178 = scmp.eq.s32.totalorder %s27, 0
    %p179 = por %p177, %p178
    %p180 = scmp.ne.s32.totalorder %s168, %s169
    %p181 = scmp.eq.s32.totalorder %s28, 1
    %p182 = por %p180, %p181
    %p184 = scmp.ne.s32.totalorder %s169, %s183
    %p185 = scmp.eq.s32.totalorder %s28, 0
    %p186 = por %p184, %p185
    %s188 = sadd.s32 %s187, 1
    %p191 = scmp.eq.s32.totalorder %s22, 1
    %p192 = scmp.ne.s32.totalorder %s187, %s189
    %p193 = scmp.eq.s32.totalorder %s22, 0
    %p194 = por %p192, %p193
    %p195 = scmp.ne.s32.totalorder %s187, %s189
    %p196 = scmp.eq.s32.totalorder %s27, 1
    %p197 = por %p195, %p196
    %p198 = scmp.ne.s32.totalorder %s189, %s190
    %p199 = scmp.eq.s32.totalorder %s27, 0
    %p200 = por %p198, %p199
    %p201 = scmp.ne.s32.totalorder %s189, %s190
    %p202 = scmp.eq.s32.totalorder %s28, 1
    %p203 = por %p201, %p202
    %p205 = scmp.ne.s32.totalorder %s190, %s204
    %p206 = scmp.eq.s32.totalorder %s28, 0
    %p207 = por %p205, %p206
    %s209 = sadd.s32 %s208, 1
    %p212 = scmp.eq.s32.totalorder %s22, 1
    %p213 = scmp.ne.s32.totalorder %s208, %s210
    %p214 = scmp.eq.s32.totalorder %s22, 0
    %p215 = por %p213, %p214
    %p216 = scmp.ne.s32.totalorder %s208, %s210
    %p217 = scmp.eq.s32.totalorder %s27, 1
    %p218 = por %p216, %p217
    %p219 = scmp.ne.s32.totalorder %s210, %s211
    %p220 = scmp.eq.s32.totalorder %s27, 0
    %p221 = por %p219, %p220
    %p222 = scmp.ne.s32.totalorder %s210, %s211
    %p223 = scmp.eq.s32.totalorder %s28, 1
    %p224 = por %p222, %p223
    %p226 = scmp.ne.s32.totalorder %s211, %s225
    %p227 = scmp.eq.s32.totalorder %s28, 0
    %p228 = por %p226, %p227
    %s230 = sadd.s32 %s229, 1
    %p233 = scmp.eq.s32.totalorder %s22, 1
    %p234 = scmp.ne.s32.totalorder %s229, %s231
    %p235 = scmp.eq.s32.totalorder %s22, 0
    %p236 = por %p234, %p235
    %p237 = scmp.ne.s32.totalorder %s229, %s231
    %p238 = scmp.eq.s32.totalorder %s27, 1
    %p239 = por %p237, %p238
    %p240 = scmp.ne.s32.totalorder %s231, %s232
    %p241 = scmp.eq.s32.totalorder %s27, 0
    %p242 = por %p240, %p241
    %p243 = scmp.ne.s32.totalorder %s231, %s232
    %p244 = scmp.eq.s32.totalorder %s28, 1
    %p245 = por %p243, %p244
    %p247 = scmp.ne.s32.totalorder %s232, %s246
    %p248 = scmp.eq.s32.totalorder %s28, 0
    %p249 = por %p247, %p248
    %s251 = sadd.s32 %s250, 1
    %p254 = scmp.eq.s32.totalorder %s22, 1
    %p255 = scmp.ne.s32.totalorder %s250, %s252
    %p256 = scmp.eq.s32.totalorder %s22, 0
    %p257 = por %p255, %p256
    %p258 = scmp.ne.s32.totalorder %s250, %s252
    %p259 = scmp.eq.s32.totalorder %s27, 1
    %p260 = por %p258, %p259
    %p261 = scmp.ne.s32.totalorder %s252, %s253
    %p262 = scmp.eq.s32.totalorder %s27, 0
    %p263 = por %p261, %p262
    %p264 = scmp.ne.s32.totalorder %s252, %s253
    %p265 = scmp.eq.s32.totalorder %s28, 1
    %p266 = por %p264, %p265
    %p268 = scmp.ne.s32.totalorder %s253, %s267
    %p269 = scmp.eq.s32.totalorder %s28, 0
    %p270 = por %p268, %p269
    %s272 = sadd.s32 %s271, 1
    %p275 = scmp.eq.s32.totalorder %s22, 1
    %p276 = scmp.ne.s32.totalorder %s271, %s273
    %p277 = scmp.eq.s32.totalorder %s22, 0
    %p278 = por %p276, %p277
    %p279 = scmp.ne.s32.totalorder %s271, %s273
    %p280 = scmp.eq.s32.totalorder %s27, 1
    %p281 = por %p279, %p280
    %p282 = scmp.ne.s32.totalorder %s273, %s274
    %p283 = scmp.eq.s32.totalorder %s27, 0
    %p284 = por %p282, %p283
    %p285 = scmp.ne.s32.totalorder %s273, %s274
    %p286 = scmp.eq.s32.totalorder %s28, 1
    %p287 = por %p285, %p286
    %p289 = scmp.ne.s32.totalorder %s274, %s288
    %p290 = scmp.eq.s32.totalorder %s28, 0
    %p291 = por %p289, %p290
    %s293 = sadd.s32 %s292, 1
    %p296 = scmp.eq.s32.totalorder %s22, 1
    %p297 = scmp.ne.s32.totalorder %s292, %s294
    %p298 = scmp.eq.s32.totalorder %s22, 0
    %p299 = por %p297, %p298
    %p300 = scmp.ne.s32.totalorder %s292, %s294
    %p301 = scmp.eq.s32.totalorder %s27, 1
    %p302 = por %p300, %p301
    %p303 = scmp.ne.s32.totalorder %s294, %s295
    %p304 = scmp.eq.s32.totalorder %s27, 0
    %p305 = por %p303, %p304
    %p306 = scmp.ne.s32.totalorder %s294, %s295
    %p307 = scmp.eq.s32.totalorder %s28, 1
    %p308 = por %p306, %p307
    %p310 = scmp.ne.s32.totalorder %s295, %s309
    %p311 = scmp.eq.s32.totalorder %s28, 0
    %p312 = por %p310, %p311
    %s314 = sadd.s32 %s313, 1
    %p317 = scmp.eq.s32.totalorder %s22, 1
    %p318 = scmp.ne.s32.totalorder %s313, %s315
    %p319 = scmp.eq.s32.totalorder %s22, 0
    %p320 = por %p318, %p319
    %p321 = scmp.ne.s32.totalorder %s313, %s315
    %p322 = scmp.eq.s32.totalorder %s27, 1
    %p323 = por %p321, %p322
    %p324 = scmp.ne.s32.totalorder %s315, %s316
    %p325 = scmp.eq.s32.totalorder %s27, 0
    %p326 = por %p324, %p325
    %p327 = scmp.ne.s32.totalorder %s315, %s316
    %p328 = scmp.eq.s32.totalorder %s28, 1
    %p329 = por %p327, %p328
    %p331 = scmp.ne.s32.totalorder %s316, %s330
    %p332 = scmp.eq.s32.totalorder %s28, 0
    %p333 = por %p331, %p332
    %s335 = sadd.s32 %s334, 1
    %p338 = scmp.eq.s32.totalorder %s22, 1
    %p339 = scmp.ne.s32.totalorder %s334, %s336
    %p340 = scmp.eq.s32.totalorder %s22, 0
    %p341 = por %p339, %p340
    %p342 = scmp.ne.s32.totalorder %s334, %s336
    %p343 = scmp.eq.s32.totalorder %s27, 1
    %p344 = por %p342, %p343
    %p345 = scmp.ne.s32.totalorder %s336, %s337
    %p346 = scmp.eq.s32.totalorder %s27, 0
    %p347 = por %p345, %p346
    %p348 = scmp.ne.s32.totalorder %s336, %s337
    %p349 = scmp.eq.s32.totalorder %s28, 1
    %p350 = por %p348, %p349
    %p352 = scmp.ne.s32.totalorder %s337, %s351
    %p353 = scmp.eq.s32.totalorder %s28, 0
    %p354 = por %p352, %p353
    %s356 = sadd.s32 %s355, 1
    %p359 = scmp.eq.s32.totalorder %s22, 1
    %p360 = scmp.ne.s32.totalorder %s355, %s357
    %p361 = scmp.eq.s32.totalorder %s22, 0
    %p362 = por %p360, %p361
    %p363 = scmp.ne.s32.totalorder %s355, %s357
    %p364 = scmp.eq.s32.totalorder %s27, 1
    %p365 = por %p363, %p364
    %p366 = scmp.ne.s32.totalorder %s357, %s358
    %p367 = scmp.eq.s32.totalorder %s27, 0
    %p368 = por %p366, %p367
    %p369 = scmp.ne.s32.totalorder %s357, %s358
    %p370 = scmp.eq.s32.totalorder %s28, 1
    %p371 = por %p369, %p370
    %p373 = scmp.ne.s32.totalorder %s358, %s372
    %p374 = scmp.eq.s32.totalorder %s28, 0
    %p375 = por %p373, %p374
    %s376 = ssub.s32 %s22, %s29
    %p377 = scmp.eq.s32.totalorder %s376, 0
    %s379 = sadd.s32 %s378, 1
    %s380 = scalar_select %p377, %s378, %s379
    %p383 = pneg %p377
    %p384 = scmp.eq.s32.totalorder %s22, 1
    %p385 = por %p383, %p384
    %p386 = scmp.ne.s32.totalorder %s378, %s381
    %p387 = scmp.eq.s32.totalorder %s22, 0
    %p388 = por %p386, %p387
    %p389 = scmp.ne.s32.totalorder %s378, %s381
    %p390 = scmp.eq.s32.totalorder %s27, 1
    %p391 = por %p389, %p390
    %p392 = scmp.ne.s32.totalorder %s381, %s382
    %p393 = scmp.eq.s32.totalorder %s27, 0
    %p394 = por %p392, %p393
    %p395 = scmp.ne.s32.totalorder %s381, %s382
    %p396 = scmp.eq.s32.totalorder %s28, 1
    %p397 = por %p395, %p396
    %p399 = scmp.ne.s32.totalorder %s382, %s398
    %p400 = scmp.eq.s32.totalorder %s28, 0
    %p401 = por %p399, %p400
    %p402 = scmp.le.s32.totalorder 1, %s22
    %p403 = scmp.lt.s32.totalorder %s22, 3
    %p404 = pnand %p402, %p403
    %p405 = pneg %p404
    // Predicated region
    $region9: #{transformer_network_forward.1} parent=5 // pred_check
      _
    $region10: #{transformer_network_forward.1} parent=5 // pred_check_branch
      %407 = sbr.rel (%p404) target = $region12
    $region11: #{transformer_network_forward.1} parent=5 // pred_region
      %s408 = ssub.s32 %s22, 1
      // Predicated region
      $region13: #{transformer_network_forward.1} parent=11 // pred_check
        %p409 = pneg %p95
      $region14: #{transformer_network_forward.1} parent=11 // pred_check_branch
        %411 = sbr.rel (%p409) target = $region16
      $region15: #{transformer_network_forward.1} parent=11 // pred_region
        _
      $region16: #{transformer_network_forward.1} parent=11 // pred_fallthru
        _
      // Predicated region
      $region17: #{transformer_network_forward.1} parent=11 // pred_check
        %p412 = pneg %p116
      $region18: #{transformer_network_forward.1} parent=11 // pred_check_branch
        %414 = sbr.rel (%p412) target = $region20
      $region19: #{transformer_network_forward.1} parent=11 // pred_region
        _
      $region20: #{transformer_network_forward.1} parent=11 // pred_fallthru
        _
      // Predicated region
      $region21: #{transformer_network_forward.1} parent=11 // pred_check
        %p415 = pneg %p137
      $region22: #{transformer_network_forward.1} parent=11 // pred_check_branch
        %417 = sbr.rel (%p415) target = $region24
      $region23: #{transformer_network_forward.1} parent=11 // pred_region
        _
      $region24: #{transformer_network_forward.1} parent=11 // pred_fallthru
        _
      // Predicated region
      $region25: #{transformer_network_forward.1} parent=11 // pred_check
        %p418 = pneg %p158
      $region26: #{transformer_network_forward.1} parent=11 // pred_check_branch
        %420 = sbr.rel (%p418) target = $region28
      $region27: #{transformer_network_forward.1} parent=11 // pred_region
        _
      $region28: #{transformer_network_forward.1} parent=11 // pred_fallthru
        _
      // Predicated region
      $region29: #{transformer_network_forward.1} parent=11 // pred_check
        %p421 = pneg %p179
      $region30: #{transformer_network_forward.1} parent=11 // pred_check_branch
        %423 = sbr.rel (%p421) target = $region32
      $region31: #{transformer_network_forward.1} parent=11 // pred_region
        _
      $region32: #{transformer_network_forward.1} parent=11 // pred_fallthru
        _
      // Predicated region
      $region33: #{transformer_network_forward.1} parent=11 // pred_check
        %p424 = pneg %p200
      $region34: #{transformer_network_forward.1} parent=11 // pred_check_branch
        %426 = sbr.rel (%p424) target = $region36
      $region35: #{transformer_network_forward.1} parent=11 // pred_region
        _
      $region36: #{transformer_network_forward.1} parent=11 // pred_fallthru
        _
      // Predicated region
      $region37: #{transformer_network_forward.1} parent=11 // pred_check
        %p427 = pneg %p221
      $region38: #{transformer_network_forward.1} parent=11 // pred_check_branch
        %429 = sbr.rel (%p427) target = $region40
      $region39: #{transformer_network_forward.1} parent=11 // pred_region
        _
      $region40: #{transformer_network_forward.1} parent=11 // pred_fallthru
        _
      // Predicated region
      $region41: #{transformer_network_forward.1} parent=11 // pred_check
        %p430 = pneg %p242
      $region42: #{transformer_network_forward.1} parent=11 // pred_check_branch
        %432 = sbr.rel (%p430) target = $region44
      $region43: #{transformer_network_forward.1} parent=11 // pred_region
        _
      $region44: #{transformer_network_forward.1} parent=11 // pred_fallthru
        _
      // Predicated region
      $region45: #{transformer_network_forward.1} parent=11 // pred_check
        %p433 = pneg %p263
      $region46: #{transformer_network_forward.1} parent=11 // pred_check_branch
        %435 = sbr.rel (%p433) target = $region48
      $region47: #{transformer_network_forward.1} parent=11 // pred_region
        _
      $region48: #{transformer_network_forward.1} parent=11 // pred_fallthru
        _
      // Predicated region
      $region49: #{transformer_network_forward.1} parent=11 // pred_check
        %p436 = pneg %p284
      $region50: #{transformer_network_forward.1} parent=11 // pred_check_branch
        %438 = sbr.rel (%p436) target = $region52
      $region51: #{transformer_network_forward.1} parent=11 // pred_region
        _
      $region52: #{transformer_network_forward.1} parent=11 // pred_fallthru
        _
      // Predicated region
      $region53: #{transformer_network_forward.1} parent=11 // pred_check
        %p439 = pneg %p305
      $region54: #{transformer_network_forward.1} parent=11 // pred_check_branch
        %441 = sbr.rel (%p439) target = $region56
      $region55: #{transformer_network_forward.1} parent=11 // pred_region
        _
      $region56: #{transformer_network_forward.1} parent=11 // pred_fallthru
        _
      // Predicated region
      $region57: #{transformer_network_forward.1} parent=11 // pred_check
        %p442 = pneg %p326
      $region58: #{transformer_network_forward.1} parent=11 // pred_check_branch
        %444 = sbr.rel (%p442) target = $region60
      $region59: #{transformer_network_forward.1} parent=11 // pred_region
        _
      $region60: #{transformer_network_forward.1} parent=11 // pred_fallthru
        _
      // Predicated region
      $region61: #{transformer_network_forward.1} parent=11 // pred_check
        %p445 = pneg %p347
      $region62: #{transformer_network_forward.1} parent=11 // pred_check_branch
        %447 = sbr.rel (%p445) target = $region64
      $region63: #{transformer_network_forward.1} parent=11 // pred_region
        _
      $region64: #{transformer_network_forward.1} parent=11 // pred_fallthru
        _
      // Predicated region
      $region65: #{transformer_network_forward.1} parent=11 // pred_check
        %p448 = pneg %p368
      $region66: #{transformer_network_forward.1} parent=11 // pred_check_branch
        %450 = sbr.rel (%p448) target = $region68
      $region67: #{transformer_network_forward.1} parent=11 // pred_region
        _
      $region68: #{transformer_network_forward.1} parent=11 // pred_fallthru
        _
    $region12: #{transformer_network_forward.1} parent=5 // pred_fallthru
      _
    %p451 = scmp.lt.s32.totalorder %s22, 2
    // Predicated region
    $region69: #{transformer_network_forward.1} parent=5 // pred_check
      %p452 = pneg %p451
    $region70: #{transformer_network_forward.1} parent=5 // pred_check_branch
      %454 = sbr.rel (%p452) target = $region72
    $region71: #{transformer_network_forward.1} parent=5 // pred_region
      // Predicated region
      $region73: #{transformer_network_forward.1} parent=71 // pred_check
        %p455 = pneg %p42
      $region74: #{transformer_network_forward.1} parent=71 // pred_check_branch
        %457 = sbr.rel (%p455) target = $region76
      $region75: #{transformer_network_forward.1} parent=71 // pred_region
        %s458 = smul.u32 3, %s22
        %p459 = scmp.lt.s32.totalorder %s458, 5
        %s460 = scalar_select %p459, %s458, 5
        %s461 = smul.addr %s460, 8
        %s462 = scalar_lea.vmem %s0, %s461
        %s463 = smul.u32 3, %s22
      $region76: #{transformer_network_forward.1} parent=71 // pred_fallthru
        _
      // Predicated region
      $region77: #{transformer_network_forward.1} parent=71 // pred_check
        %p464 = pneg %p68
      $region78: #{transformer_network_forward.1} parent=71 // pred_check_branch
        %466 = sbr.rel (%p464) target = $region80
      $region79: #{transformer_network_forward.1} parent=71 // pred_region
        %s467 = smul.u32 3, %s22
        %p468 = scmp.lt.s32.totalorder %s467, 5
        %s469 = scalar_select %p468, %s467, 5
        %s470 = smul.addr %s469, 8
        %s471 = scalar_lea.vmem %s1, %s470
        %s472 = smul.u32 3, %s22
      $region80: #{transformer_network_forward.1} parent=71 // pred_fallthru
        _
    $region72: #{transformer_network_forward.1} parent=5 // pred_fallthru
      _
    %p473 = scmp.le.s32.totalorder 1, %s22
    %p474 = scmp.lt.s32.totalorder %s22, 3
    %p475 = pnand %p473, %p474
    %p476 = pneg %p475
    // Predicated region
    $region81: #{transformer_network_forward.1} parent=5 // pred_check
      _
    $region82: #{transformer_network_forward.1} parent=5 // pred_check_branch
      %478 = sbr.rel (%p475) target = $region84
    $region83: #{transformer_network_forward.1} parent=5 // pred_region
      %s479 = ssub.s32 %s22, 1
      %s480 = smul.u32 3, %s27
      %p481 = scmp.lt.s32.totalorder %s480, 5
      %s482 = scalar_select %p481, %s480, 5
      %s483 = smul.addr %s482, 8
      %s484 = scalar_lea.vmem %s0, %s483
      %p485 = pneg %p48
      %p486 = pneg %p45
      %s487 = smul.u32 3, %s27
      %p488 = scmp.lt.s32.totalorder %s487, 5
      %s489 = scalar_select %p488, %s487, 5
      %s490 = smul.addr %s489, 8
      %s491 = scalar_lea.vmem %s1, %s490
      %p492 = pneg %p74
      %p493 = pneg %p71
      %p494 = pneg %p95
      %p495 = pneg %p92
      %p496 = pneg %p116
      %p497 = pneg %p113
      %p498 = pneg %p137
      %p499 = pneg %p134
      %p500 = pneg %p158
      %p501 = pneg %p155
      %p502 = pneg %p179
      %p503 = pneg %p176
      %p504 = pneg %p200
      %p505 = pneg %p197
      %p506 = pneg %p221
      %p507 = pneg %p218
      %p508 = pneg %p242
      %p509 = pneg %p239
      %p510 = pneg %p263
      %p511 = pneg %p260
      %p512 = pneg %p284
      %p513 = pneg %p281
      %p514 = pneg %p305
      %p515 = pneg %p302
      %p516 = pneg %p326
      %p517 = pneg %p323
      %p518 = pneg %p347
      %p519 = pneg %p344
      %p520 = pneg %p368
      %p521 = pneg %p365
      %p522 = pneg %p394
      %p523 = pneg %p391
      %s524 = smul.u32 3, %s27
      %p525 = scmp.lt.s32.totalorder %s524, 5
      %s526 = scalar_select %p525, %s524, 5
      %s527 = smul.addr %s526, 8
      %s528 = scalar_lea.vmem %s16, %s527
      %s529 = smul.u32 3, %s27
      %p530 = scmp.lt.s32.totalorder %s529, 5
      %s531 = scalar_select %p530, %s529, 5
      %s532 = smul.addr %s531, 8
      %s533 = scalar_lea.vmem %s0, %s532
      %s534 = smul.u32 3, %s27
      %s535 = smul.u32 3, %s27
      %p536 = scmp.lt.s32.totalorder %s535, 5
      %s537 = scalar_select %p536, %s535, 5
      %s538 = smul.addr %s537, 8
      %s539 = scalar_lea.vmem %s1, %s538
      %s540 = smul.u32 3, %s27
      %s541 = smul.u32 3, %s27
      %p542 = scmp.lt.s32.totalorder %s541, 5
      %s543 = scalar_select %p542, %s541, 5
      %s544 = smul.addr %s543, 8
      %s545 = scalar_lea.vmem %s16, %s544
      %s546 = smul.u32 3, %s27
      %v548 = vld [vmem:[%s533] sm:$0xff]
      %v549 = vld [vmem:[%s533 + $0x8] sm:$0xff]
      %v550 = vld [vmem:[%s533 + $0x10] sm:$0xff]
      %v551 = vld [vmem:[%s2] sm:$0x1]
      %553 = vset.pattern.permute.xlu0 0
      %554 = vperm.xlu0 %553, %v548
      %v555 = vpop.permute.xlu0 %554
      %558 = vset.pattern.permute.xlu0 0
      %559 = vperm.xlu0 %558, %v549
      %v560 = vpop.permute.xlu0 %559
      %563 = vset.pattern.permute.xlu0 0
      %564 = vperm.xlu0 %563, %v550
      %v565 = vpop.permute.xlu0 %564
      %v568 = vlaneseq
      %v569 = vshrl.u32 %v568, 7
      %v570 = vsub.s32 0, %v569
      %v571 = vrot.slane %v551, %v570
      %v573 = vmul.f32 %v555, %v571
      %v574 = vmul.f32 %v560, %v571
      %v575 = vmul.f32 %v565, %v571
      %v576 = vld [vmem:[%s3] sm:$0x1]
      %v578 = vlaneseq
      %v579 = vshrl.u32 %v578, 7
      %v580 = vsub.s32 0, %v579
      %v581 = vrot.slane %v576, %v580
      %v583 = vadd.f32 %v573, %v581
      %v584 = vadd.f32 %v574, %v581
      %v585 = vadd.f32 %v575, %v581
      %v586 = vld [vmem:[%s539] sm:$0xff]
      %v587 = vld [vmem:[%s539 + $0x8] sm:$0xff]
      %v588 = vld [vmem:[%s539 + $0x10] sm:$0xff]
      %v589 = vadd.f32 %v583, %v586
      %v590 = vadd.f32 %v584, %v587
      %v591 = vadd.f32 %v585, %v588
      %v592 = vpack.c.bf16 %v590, %v589
      %v593 = vpack.c.bf16 %v591, %v591
      %v594 = vld [vmem:[%s4] sm:$0xf]
      %v595 = vld [vmem:[%s4 + $0x4] sm:$0xf]
      %v596 = vld [vmem:[%s4 + $0x8] sm:$0xf]
      %v597 = vld [vmem:[%s4 + $0xc] sm:$0xf]
      %v598 = vld [vmem:[%s5] sm:$0x1]
      %v600 = vlaneseq
      %v601 = vshrl.u32 %v600, 7
      %v602 = vsub.s32 0, %v601
      %v603 = vrot.slane %v598, %v602
      %v609 = vunpack.c.l.b16 %v594
      %v610 = vunpack.c.l.b16 %v595
      %v611 = vunpack.c.l.b16 %v596
      %v612 = vunpack.c.l.b16 %v597
      %v613 = vpack.c.b16 %v610, %v609
      %v614 = vpack.c.b16 %v612, %v611
      %vm617 = vcmask 261120
      %v619 = vsel %vm617, %v592, 0
      %v622 = vsel %vm617, %v593, 0
      %624 = vmatprep.subr.bf16.mxu0 0
      %625 = vmatpush1.bf16.msra.mxu0 0
      %626 = vmatprep.subr.bf16.mxu0 0
      %627 = vmatpush1.bf16.msra.mxu0 0
      %628 = vmatprep.subr.bf16.mxu0 0
      %629 = vmatpush1.bf16.msra.mxu0 0
      %630 = vmatprep.subr.bf16.mxu0 0
      %631 = vmatpush1.bf16.msra.mxu0 0
      %632 = vmatprep.subr.bf16.mxu0 0
      %633 = vmatpush1.bf16.msra.mxu0 0
      %634 = vmatprep.subr.bf16.mxu0 0
      %635 = vmatpush1.bf16.msra.mxu0 0
      %636 = vmatprep.subr.bf16.mxu0 0
      %637 = vmatpush1.bf16.msra.mxu0 %v614
      %638 = vmatprep.subr.bf16.mxu0 0
      %639 = vmatpush1.bf16.msra.mxu0 %v613
      %640 = vmatprep.subr.bf16.mxu0 0
      %641 = vmatpush2.bf16.msra.mxu0 0
      %642 = vmatprep.subr.bf16.mxu0 0
      %643 = vmatpush2.bf16.msra.mxu0 0
      %644 = vmatprep.subr.bf16.mxu0 0
      %645 = vmatpush2.bf16.msra.mxu0 0
      %646 = vmatprep.subr.bf16.mxu0 0
      %647 = vmatpush2.bf16.msra.mxu0 0
      %648 = vmatprep.subr.bf16.mxu0 0
      %649 = vmatpush2.bf16.msra.mxu0 0
      %650 = vmatprep.subr.bf16.mxu0 0
      %651 = vmatpush2.bf16.msra.mxu0 0
      %652 = vmatprep.subr.bf16.mxu0 0
      %653 = vmatpush2.bf16.msra.mxu0 0
      %654 = vmatprep.subr.bf16.mxu0 0
      %655 = vmatpush2.bf16.msra.mxu0 0
      %656 = vmatprep.mubr.bf16.mxu0 0
      %657 = vmatmul.mubr.bf16.gmra.mxu0 %v619
      %v658 = vpop.f32.mrf.mxu0
      %v659 = vadd.f32 %v603, %v658
      %v660 = vpop.f32.mrf.mxu0
      %v661 = vpop.f32.mrf.mxu0
      %v662 = vadd.f32 %v603, %v661
      %v663 = vpop.f32.mrf.mxu0
      %664 = vmatprep.mubr.bf16.mxu0 0
      %665 = vmatmul.mubr.bf16.gmra.mxu0 %v622
      %v666 = vpop.f32.mrf.mxu0
      %v667 = vadd.f32 %v603, %v666
      %v668 = vpop.f32.mrf.mxu0
      %v669 = vpop.f32.mrf.mxu0
      %v670 = vpop.f32.mrf.mxu0
      %671 = vdwg.mxu0
      %v672 = vpack.c.bf16 %v662, %v659
      %v673 = vpack.c.bf16 %v667, %v667
      %v676 = vunpack.c.l.b16 %v672
      %v677 = vunpack.c.h.b16 %v672
      %v678 = vunpack.c.l.b16 %v673
      %v679 = vpack.c.b16 %v676, %v676
      %v680 = vpack.c.b16 %v677, %v677
      %v681 = vpack.c.b16 %v678, %v678
      %682 = vrot.lane.b32.xlu0 %v679, 96
      %v683 = vpop.permute.xlu0 %682
      %vm684 = vcmask 64512
      %v686 = vsel %vm684, %v679, 0
      %v689 = vsel %vm684, %v683, 0
      %691 = vmatprep.subr.bf16.mxu0 0
      %692 = vmatpush1.bf16.xpose.msra.mxu0 0
      %693 = vmatprep.subr.bf16.mxu0 0
      %694 = vmatpush1.bf16.xpose.msra.mxu0 0
      %695 = vmatprep.subr.bf16.mxu0 0
      %696 = vmatpush1.bf16.xpose.msra.mxu0 0
      %697 = vmatprep.subr.bf16.mxu0 0
      %698 = vmatpush1.bf16.xpose.msra.mxu0 0
      %699 = vmatprep.subr.bf16.mxu0 0
      %700 = vmatpush1.bf16.xpose.msra.mxu0 0
      %701 = vmatprep.subr.bf16.mxu0 0
      %702 = vmatpush1.bf16.xpose.msra.mxu0 0
      %703 = vmatprep.subr.bf16.mxu0 0
      %704 = vmatpush1.bf16.xpose.msra.mxu0 0
      %705 = vmatprep.subr.bf16.mxu0 0
      %706 = vmatpush1.bf16.xpose.msra.mxu0 %v689
      %707 = vmatprep.subr.bf16.mxu0 0
      %708 = vmatpush2.bf16.xpose.msra.mxu0 0
      %709 = vmatprep.subr.bf16.mxu0 0
      %710 = vmatpush2.bf16.xpose.msra.mxu0 0
      %711 = vmatprep.subr.bf16.mxu0 0
      %712 = vmatpush2.bf16.xpose.msra.mxu0 0
      %713 = vmatprep.subr.bf16.mxu0 0
      %714 = vmatpush2.bf16.xpose.msra.mxu0 0
      %715 = vmatprep.subr.bf16.mxu0 0
      %716 = vmatpush2.bf16.xpose.msra.mxu0 0
      %717 = vmatprep.subr.bf16.mxu0 0
      %718 = vmatpush2.bf16.xpose.msra.mxu0 0
      %719 = vmatprep.subr.bf16.mxu0 0
      %720 = vmatpush2.bf16.xpose.msra.mxu0 0
      %721 = vmatprep.subr.bf16.mxu0 0
      %722 = vmatpush2.bf16.xpose.msra.mxu0 0
      %723 = vmatprep.mubr.bf16.mxu0 0
      %724 = vmatmul.mubr.bf16.gmra.mxu0 %v686
      %v725 = vpop.f32.mrf.mxu0
      %v726 = vadd.f32 0.0, %v725
      %v727 = vpop.f32.mrf.mxu0
      %v728 = vpop.f32.mrf.mxu0
      %v729 = vpop.f32.mrf.mxu0
      %730 = vdwg.mxu0
      %731 = vrot.lane.b32.xlu0 %v680, 96
      %v732 = vpop.permute.xlu0 %731
      %v734 = vsel %vm684, %v680, 0
      %v737 = vsel %vm684, %v732, 0
      %739 = vmatprep.subr.bf16.mxu0 0
      %740 = vmatpush1.bf16.xpose.msra.mxu0 0
      %741 = vmatprep.subr.bf16.mxu0 0
      %742 = vmatpush1.bf16.xpose.msra.mxu0 0
      %743 = vmatprep.subr.bf16.mxu0 0
      %744 = vmatpush1.bf16.xpose.msra.mxu0 0
      %745 = vmatprep.subr.bf16.mxu0 0
      %746 = vmatpush1.bf16.xpose.msra.mxu0 0
      %747 = vmatprep.subr.bf16.mxu0 0
      %748 = vmatpush1.bf16.xpose.msra.mxu0 0
      %749 = vmatprep.subr.bf16.mxu0 0
      %750 = vmatpush1.bf16.xpose.msra.mxu0 0
      %751 = vmatprep.subr.bf16.mxu0 0
      %752 = vmatpush1.bf16.xpose.msra.mxu0 0
      %753 = vmatprep.subr.bf16.mxu0 0
      %754 = vmatpush1.bf16.xpose.msra.mxu0 %v737
      %755 = vmatprep.subr.bf16.mxu0 0
      %756 = vmatpush2.bf16.xpose.msra.mxu0 0
      %757 = vmatprep.subr.bf16.mxu0 0
      %758 = vmatpush2.bf16.xpose.msra.mxu0 0
      %759 = vmatprep.subr.bf16.mxu0 0
      %760 = vmatpush2.bf16.xpose.msra.mxu0 0
      %761 = vmatprep.subr.bf16.mxu0 0
      %762 = vmatpush2.bf16.xpose.msra.mxu0 0
      %763 = vmatprep.subr.bf16.mxu0 0
      %764 = vmatpush2.bf16.xpose.msra.mxu0 0
      %765 = vmatprep.subr.bf16.mxu0 0
      %766 = vmatpush2.bf16.xpose.msra.mxu0 0
      %767 = vmatprep.subr.bf16.mxu0 0
      %768 = vmatpush2.bf16.xpose.msra.mxu0 0
      %769 = vmatprep.subr.bf16.mxu0 0
      %770 = vmatpush2.bf16.xpose.msra.mxu0 0
      %771 = vmatprep.mubr.bf16.mxu0 0
      %772 = vmatmul.mubr.bf16.gmra.mxu0 %v734
      %v773 = vpop.f32.mrf.mxu0
      %v774 = vadd.f32 0.0, %v773
      %v775 = vpop.f32.mrf.mxu0
      %v776 = vpop.f32.mrf.mxu0
      %v777 = vpop.f32.mrf.mxu0
      %778 = vdwg.mxu0
      %779 = vrot.lane.b32.xlu0 %v681, 96
      %v780 = vpop.permute.xlu0 %779
      %v782 = vsel %vm684, %v681, 0
      %v785 = vsel %vm684, %v780, 0
      %787 = vmatprep.subr.bf16.mxu0 0
      %788 = vmatpush1.bf16.xpose.msra.mxu0 0
      %789 = vmatprep.subr.bf16.mxu0 0
      %790 = vmatpush1.bf16.xpose.msra.mxu0 0
      %791 = vmatprep.subr.bf16.mxu0 0
      %792 = vmatpush1.bf16.xpose.msra.mxu0 0
      %793 = vmatprep.subr.bf16.mxu0 0
      %794 = vmatpush1.bf16.xpose.msra.mxu0 0
      %795 = vmatprep.subr.bf16.mxu0 0
      %796 = vmatpush1.bf16.xpose.msra.mxu0 0
      %797 = vmatprep.subr.bf16.mxu0 0
      %798 = vmatpush1.bf16.xpose.msra.mxu0 0
      %799 = vmatprep.subr.bf16.mxu0 0
      %800 = vmatpush1.bf16.xpose.msra.mxu0 0
      %801 = vmatprep.subr.bf16.mxu0 0
      %802 = vmatpush1.bf16.xpose.msra.mxu0 %v785
      %803 = vmatprep.subr.bf16.mxu0 0
      %804 = vmatpush2.bf16.xpose.msra.mxu0 0
      %805 = vmatprep.subr.bf16.mxu0 0
      %806 = vmatpush2.bf16.xpose.msra.mxu0 0
      %807 = vmatprep.subr.bf16.mxu0 0
      %808 = vmatpush2.bf16.xpose.msra.mxu0 0
      %809 = vmatprep.subr.bf16.mxu0 0
      %810 = vmatpush2.bf16.xpose.msra.mxu0 0
      %811 = vmatprep.subr.bf16.mxu0 0
      %812 = vmatpush2.bf16.xpose.msra.mxu0 0
      %813 = vmatprep.subr.bf16.mxu0 0
      %814 = vmatpush2.bf16.xpose.msra.mxu0 0
      %815 = vmatprep.subr.bf16.mxu0 0
      %816 = vmatpush2.bf16.xpose.msra.mxu0 0
      %817 = vmatprep.subr.bf16.mxu0 0
      %818 = vmatpush2.bf16.xpose.msra.mxu0 0
      %819 = vmatprep.mubr.bf16.mxu0 0
      %820 = vmatmul.mubr.bf16.gmra.mxu0 %v782
      %v821 = vpop.f32.mrf.mxu0
      %v822 = vadd.f32 0.0, %v821
      %v823 = vpop.f32.mrf.mxu0
      %v824 = vpop.f32.mrf.mxu0
      %v825 = vpop.f32.mrf.mxu0
      %826 = vdwg.mxu0
      %v827 = vsel %vm684, %v726, -inf
      %828 = vmax.xlane.f32.xlu0 %v827
      %v829 = vpop.xlane.xlu0 %828
      %v830 = vsel %vm684, %v774, -inf
      %831 = vmax.xlane.f32.xlu0 %v830
      %v832 = vpop.xlane.xlu0 %831
      %v833 = vsel %vm684, %v822, -inf
      %834 = vmax.xlane.f32.xlu0 %v833
      %v835 = vpop.xlane.xlu0 %834
      %v836 = vsub.f32 %v726, %v829
      %v837 = vsub.f32 %v774, %v832
      %v838 = vsub.f32 %v822, %v835
      %v839 = vmul.f32 %v836, 1.442695
      %v840 = vpow.pop %v839
      %v841 = vmul.f32 %v837, 1.442695
      %v842 = vpow.pop %v841
      %v843 = vmul.f32 %v838, 1.442695
      %v844 = vpow.pop %v843
      %v845 = vsel %vm684, %v840, 0.0
      %846 = vadd.xlane.f32.xlu0 %v845
      %v847 = vpop.xlane.xlu0 %846
      %v848 = vsel %vm684, %v842, 0.0
      %849 = vadd.xlane.f32.xlu0 %v848
      %v850 = vpop.xlane.xlu0 %849
      %v851 = vsel %vm684, %v844, 0.0
      %852 = vadd.xlane.f32.xlu0 %v851
      %v853 = vpop.xlane.xlu0 %852
      %v854 = vrcp.pop %v847
      %v855 = vrcp.pop %v850
      %v856 = vrcp.pop %v853
      %v857 = vpack.c.bf16 %v840, %v840
      %v858 = vpack.c.bf16 %v842, %v842
      %v859 = vpack.c.bf16 %v844, %v844
      %860 = vrot.lane.b32.xlu0 %v679, 64
      %v861 = vpop.permute.xlu0 %860
      %v863 = vsel %vm684, %v857, 0
      %vm865 = vcmask 1043456
      %v867 = vsel %vm865, %v861, 0
      %869 = vmatprep.subr.bf16.mxu0 0
      %870 = vmatpush1.bf16.msra.mxu0 0
      %871 = vmatprep.subr.bf16.mxu0 0
      %872 = vmatpush1.bf16.msra.mxu0 0
      %873 = vmatprep.subr.bf16.mxu0 0
      %874 = vmatpush1.bf16.msra.mxu0 0
      %875 = vmatprep.subr.bf16.mxu0 0
      %876 = vmatpush1.bf16.msra.mxu0 0
      %877 = vmatprep.subr.bf16.mxu0 0
      %878 = vmatpush1.bf16.msra.mxu0 0
      %879 = vmatprep.subr.bf16.mxu0 0
      %880 = vmatpush1.bf16.msra.mxu0 0
      %881 = vmatprep.subr.bf16.mxu0 0
      %882 = vmatpush1.bf16.msra.mxu0 0
      %883 = vmatprep.subr.bf16.mxu0 0
      %884 = vmatpush1.bf16.msra.mxu0 %v867
      %885 = vmatprep.subr.bf16.mxu0 0
      %886 = vmatpush2.bf16.msra.mxu0 0
      %887 = vmatprep.subr.bf16.mxu0 0
      %888 = vmatpush2.bf16.msra.mxu0 0
      %889 = vmatprep.subr.bf16.mxu0 0
      %890 = vmatpush2.bf16.msra.mxu0 0
      %891 = vmatprep.subr.bf16.mxu0 0
      %892 = vmatpush2.bf16.msra.mxu0 0
      %893 = vmatprep.subr.bf16.mxu0 0
      %894 = vmatpush2.bf16.msra.mxu0 0
      %895 = vmatprep.subr.bf16.mxu0 0
      %896 = vmatpush2.bf16.msra.mxu0 0
      %897 = vmatprep.subr.bf16.mxu0 0
      %898 = vmatpush2.bf16.msra.mxu0 0
      %899 = vmatprep.subr.bf16.mxu0 0
      %900 = vmatpush2.bf16.msra.mxu0 0
      %901 = vmatprep.mubr.bf16.mxu0 0
      %902 = vmatmul.mubr.bf16.gmra.mxu0 %v863
      %v903 = vpop.f32.mrf.mxu0
      %v904 = vadd.f32 0.0, %v903
      %v905 = vpop.f32.mrf.mxu0
      %v906 = vpop.f32.mrf.mxu0
      %v907 = vpop.f32.mrf.mxu0
      %908 = vdwg.mxu0
      %909 = vrot.lane.b32.xlu0 %v680, 64
      %v910 = vpop.permute.xlu0 %909
      %v912 = vsel %vm684, %v858, 0
      %v915 = vsel %vm865, %v910, 0
      %917 = vmatprep.subr.bf16.mxu0 0
      %918 = vmatpush1.bf16.msra.mxu0 0
      %919 = vmatprep.subr.bf16.mxu0 0
      %920 = vmatpush1.bf16.msra.mxu0 0
      %921 = vmatprep.subr.bf16.mxu0 0
      %922 = vmatpush1.bf16.msra.mxu0 0
      %923 = vmatprep.subr.bf16.mxu0 0
      %924 = vmatpush1.bf16.msra.mxu0 0
      %925 = vmatprep.subr.bf16.mxu0 0
      %926 = vmatpush1.bf16.msra.mxu0 0
      %927 = vmatprep.subr.bf16.mxu0 0
      %928 = vmatpush1.bf16.msra.mxu0 0
      %929 = vmatprep.subr.bf16.mxu0 0
      %930 = vmatpush1.bf16.msra.mxu0 0
      %931 = vmatprep.subr.bf16.mxu0 0
      %932 = vmatpush1.bf16.msra.mxu0 %v915
      %933 = vmatprep.subr.bf16.mxu0 0
      %934 = vmatpush2.bf16.msra.mxu0 0
      %935 = vmatprep.subr.bf16.mxu0 0
      %936 = vmatpush2.bf16.msra.mxu0 0
      %937 = vmatprep.subr.bf16.mxu0 0
      %938 = vmatpush2.bf16.msra.mxu0 0
      %939 = vmatprep.subr.bf16.mxu0 0
      %940 = vmatpush2.bf16.msra.mxu0 0
      %941 = vmatprep.subr.bf16.mxu0 0
      %942 = vmatpush2.bf16.msra.mxu0 0
      %943 = vmatprep.subr.bf16.mxu0 0
      %944 = vmatpush2.bf16.msra.mxu0 0
      %945 = vmatprep.subr.bf16.mxu0 0
      %946 = vmatpush2.bf16.msra.mxu0 0
      %947 = vmatprep.subr.bf16.mxu0 0
      %948 = vmatpush2.bf16.msra.mxu0 0
      %949 = vmatprep.mubr.bf16.mxu0 0
      %950 = vmatmul.mubr.bf16.gmra.mxu0 %v912
      %v951 = vpop.f32.mrf.mxu0
      %v952 = vadd.f32 0.0, %v951
      %v953 = vpop.f32.mrf.mxu0
      %v954 = vpop.f32.mrf.mxu0
      %v955 = vpop.f32.mrf.mxu0
      %956 = vdwg.mxu0
      %957 = vrot.lane.b32.xlu0 %v681, 64
      %v958 = vpop.permute.xlu0 %957
      %v960 = vsel %vm684, %v859, 0
      %v963 = vsel %vm865, %v958, 0
      %965 = vmatprep.subr.bf16.mxu0 0
      %966 = vmatpush1.bf16.msra.mxu0 0
      %967 = vmatprep.subr.bf16.mxu0 0
      %968 = vmatpush1.bf16.msra.mxu0 0
      %969 = vmatprep.subr.bf16.mxu0 0
      %970 = vmatpush1.bf16.msra.mxu0 0
      %971 = vmatprep.subr.bf16.mxu0 0
      %972 = vmatpush1.bf16.msra.mxu0 0
      %973 = vmatprep.subr.bf16.mxu0 0
      %974 = vmatpush1.bf16.msra.mxu0 0
      %975 = vmatprep.subr.bf16.mxu0 0
      %976 = vmatpush1.bf16.msra.mxu0 0
      %977 = vmatprep.subr.bf16.mxu0 0
      %978 = vmatpush1.bf16.msra.mxu0 0
      %979 = vmatprep.subr.bf16.mxu0 0
      %980 = vmatpush1.bf16.msra.mxu0 %v963
      %981 = vmatprep.subr.bf16.mxu0 0
      %982 = vmatpush2.bf16.msra.mxu0 0
      %983 = vmatprep.subr.bf16.mxu0 0
      %984 = vmatpush2.bf16.msra.mxu0 0
      %985 = vmatprep.subr.bf16.mxu0 0
      %986 = vmatpush2.bf16.msra.mxu0 0
      %987 = vmatprep.subr.bf16.mxu0 0
      %988 = vmatpush2.bf16.msra.mxu0 0
      %989 = vmatprep.subr.bf16.mxu0 0
      %990 = vmatpush2.bf16.msra.mxu0 0
      %991 = vmatprep.subr.bf16.mxu0 0
      %992 = vmatpush2.bf16.msra.mxu0 0
      %993 = vmatprep.subr.bf16.mxu0 0
      %994 = vmatpush2.bf16.msra.mxu0 0
      %995 = vmatprep.subr.bf16.mxu0 0
      %996 = vmatpush2.bf16.msra.mxu0 0
      %997 = vmatprep.mubr.bf16.mxu0 0
      %998 = vmatmul.mubr.bf16.gmra.mxu0 %v960
      %v999 = vpop.f32.mrf.mxu0
      %v1000 = vadd.f32 0.0, %v999
      %v1001 = vpop.f32.mrf.mxu0
      %v1002 = vpop.f32.mrf.mxu0
      %v1003 = vpop.f32.mrf.mxu0
      %1004 = vdwg.mxu0
      %v1005 = vmul.f32 %v904, %v854
      %v1006 = vmul.f32 %v952, %v855
      %v1007 = vmul.f32 %v1000, %v856
      %1008 = vrot.lane.b32.xlu0 %v679, 120
      %v1009 = vpop.permute.xlu0 %1008
      %1010 = vrot.lane.b32.xlu0 %v679, 88
      %v1011 = vpop.permute.xlu0 %1010
      %v1013 = vsel %vm684, %v1009, 0
      %v1016 = vsel %vm684, %v1011, 0
      %1018 = vmatprep.subr.bf16.mxu0 0
      %1019 = vmatpush1.bf16.xpose.msra.mxu0 0
      %1020 = vmatprep.subr.bf16.mxu0 0
      %1021 = vmatpush1.bf16.xpose.msra.mxu0 0
      %1022 = vmatprep.subr.bf16.mxu0 0
      %1023 = vmatpush1.bf16.xpose.msra.mxu0 0
      %1024 = vmatprep.subr.bf16.mxu0 0
      %1025 = vmatpush1.bf16.xpose.msra.mxu0 0
      %1026 = vmatprep.subr.bf16.mxu0 0
      %1027 = vmatpush1.bf16.xpose.msra.mxu0 0
      %1028 = vmatprep.subr.bf16.mxu0 0
      %1029 = vmatpush1.bf16.xpose.msra.mxu0 0
      %1030 = vmatprep.subr.bf16.mxu0 0
      %1031 = vmatpush1.bf16.xpose.msra.mxu0 0
      %1032 = vmatprep.subr.bf16.mxu0 0
      %1033 = vmatpush1.bf16.xpose.msra.mxu0 %v1016
      %1034 = vmatprep.subr.bf16.mxu0 0
      %1035 = vmatpush2.bf16.xpose.msra.mxu0 0
      %1036 = vmatprep.subr.bf16.mxu0 0
      %1037 = vmatpush2.bf16.xpose.msra.mxu0 0
      %1038 = vmatprep.subr.bf16.mxu0 0
      %1039 = vmatpush2.bf16.xpose.msra.mxu0 0
      %1040 = vmatprep.subr.bf16.mxu0 0
      %1041 = vmatpush2.bf16.xpose.msra.mxu0 0
      %1042 = vmatprep.subr.bf16.mxu0 0
      %1043 = vmatpush2.bf16.xpose.msra.mxu0 0
      %1044 = vmatprep.subr.bf16.mxu0 0
      %1045 = vmatpush2.bf16.xpose.msra.mxu0 0
      %1046 = vmatprep.subr.bf16.mxu0 0
      %1047 = vmatpush2.bf16.xpose.msra.mxu0 0
      %1048 = vmatprep.subr.bf16.mxu0 0
      %1049 = vmatpush2.bf16.xpose.msra.mxu0 0
      %1050 = vmatprep.mubr.bf16.mxu0 0
      %1051 = vmatmul.mubr.bf16.gmra.mxu0 %v1013
      %v1052 = vpop.f32.mrf.mxu0
      %v1053 = vadd.f32 0.0, %v1052
      %v1054 = vpop.f32.mrf.mxu0
      %v1055 = vpop.f32.mrf.mxu0
      %v1056 = vpop.f32.mrf.mxu0
      %1057 = vdwg.mxu0
      %1058 = vrot.lane.b32.xlu0 %v680, 120
      %v1059 = vpop.permute.xlu0 %1058
      %1060 = vrot.lane.b32.xlu0 %v680, 88
      %v1061 = vpop.permute.xlu0 %1060
      %v1063 = vsel %vm684, %v1059, 0
      %v1066 = vsel %vm684, %v1061, 0
      %1068 = vmatprep.subr.bf16.mxu0 0
      %1069 = vmatpush1.bf16.xpose.msra.mxu0 0
      %1070 = vmatprep.subr.bf16.mxu0 0
      %1071 = vmatpush1.bf16.xpose.msra.mxu0 0
      %1072 = vmatprep.subr.bf16.mxu0 0
      %1073 = vmatpush1.bf16.xpose.msra.mxu0 0
      %1074 = vmatprep.subr.bf16.mxu0 0
      %1075 = vmatpush1.bf16.xpose.msra.mxu0 0
      %1076 = vmatprep.subr.bf16.mxu0 0
      %1077 = vmatpush1.bf16.xpose.msra.mxu0 0
      %1078 = vmatprep.subr.bf16.mxu0 0
      %1079 = vmatpush1.bf16.xpose.msra.mxu0 0
      %1080 = vmatprep.subr.bf16.mxu0 0
      %1081 = vmatpush1.bf16.xpose.msra.mxu0 0
      %1082 = vmatprep.subr.bf16.mxu0 0
      %1083 = vmatpush1.bf16.xpose.msra.mxu0 %v1066
      %1084 = vmatprep.subr.bf16.mxu0 0
      %1085 = vmatpush2.bf16.xpose.msra.mxu0 0
      %1086 = vmatprep.subr.bf16.mxu0 0
      %1087 = vmatpush2.bf16.xpose.msra.mxu0 0
      %1088 = vmatprep.subr.bf16.mxu0 0
      %1089 = vmatpush2.bf16.xpose.msra.mxu0 0
      %1090 = vmatprep.subr.bf16.mxu0 0
      %1091 = vmatpush2.bf16.xpose.msra.mxu0 0
      %1092 = vmatprep.subr.bf16.mxu0 0
      %1093 = vmatpush2.bf16.xpose.msra.mxu0 0
      %1094 = vmatprep.subr.bf16.mxu0 0
      %1095 = vmatpush2.bf16.xpose.msra.mxu0 0
      %1096 = vmatprep.subr.bf16.mxu0 0
      %1097 = vmatpush2.bf16.xpose.msra.mxu0 0
      %1098 = vmatprep.subr.bf16.mxu0 0
      %1099 = vmatpush2.bf16.xpose.msra.mxu0 0
      %1100 = vmatprep.mubr.bf16.mxu0 0
      %1101 = vmatmul.mubr.bf16.gmra.mxu0 %v1063
      %v1102 = vpop.f32.mrf.mxu0
      %v1103 = vadd.f32 0.0, %v1102
      %v1104 = vpop.f32.mrf.mxu0
      %v1105 = vpop.f32.mrf.mxu0
      %v1106 = vpop.f32.mrf.mxu0
      %1107 = vdwg.mxu0
      %1108 = vrot.lane.b32.xlu0 %v681, 120
      %v1109 = vpop.permute.xlu0 %1108
      %1110 = vrot.lane.b32.xlu0 %v681, 88
      %v1111 = vpop.permute.xlu0 %1110
      %v1113 = vsel %vm684, %v1109, 0
      %v1116 = vsel %vm684, %v1111, 0
      %1118 = vmatprep.subr.bf16.mxu0 0
      %1119 = vmatpush1.bf16.xpose.msra.mxu0 0
      %1120 = vmatprep.subr.bf16.mxu0 0
      %1121 = vmatpush1.bf16.xpose.msra.mxu0 0
      %1122 = vmatprep.subr.bf16.mxu0 0
      %1123 = vmatpush1.bf16.xpose.msra.mxu0 0
      %1124 = vmatprep.subr.bf16.mxu0 0
      %1125 = vmatpush1.bf16.xpose.msra.mxu0 0
      %1126 = vmatprep.subr.bf16.mxu0 0
      %1127 = vmatpush1.bf16.xpose.msra.mxu0 0
      %1128 = vmatprep.subr.bf16.mxu0 0
      %1129 = vmatpush1.bf16.xpose.msra.mxu0 0
      %1130 = vmatprep.subr.bf16.mxu0 0
      %1131 = vmatpush1.bf16.xpose.msra.mxu0 0
      %1132 = vmatprep.subr.bf16.mxu0 0
      %1133 = vmatpush1.bf16.xpose.msra.mxu0 %v1116
      %1134 = vmatprep.subr.bf16.mxu0 0
      %1135 = vmatpush2.bf16.xpose.msra.mxu0 0
      %1136 = vmatprep.subr.bf16.mxu0 0
      %1137 = vmatpush2.bf16.xpose.msra.mxu0 0
      %1138 = vmatprep.subr.bf16.mxu0 0
      %1139 = vmatpush2.bf16.xpose.msra.mxu0 0
      %1140 = vmatprep.subr.bf16.mxu0 0
      %1141 = vmatpush2.bf16.xpose.msra.mxu0 0
      %1142 = vmatprep.subr.bf16.mxu0 0
      %1143 = vmatpush2.bf16.xpose.msra.mxu0 0
      %1144 = vmatprep.subr.bf16.mxu0 0
      %1145 = vmatpush2.bf16.xpose.msra.mxu0 0
      %1146 = vmatprep.subr.bf16.mxu0 0
      %1147 = vmatpush2.bf16.xpose.msra.mxu0 0
      %1148 = vmatprep.subr.bf16.mxu0 0
      %1149 = vmatpush2.bf16.xpose.msra.mxu0 0
      %1150 = vmatprep.mubr.bf16.mxu0 0
      %1151 = vmatmul.mubr.bf16.gmra.mxu0 %v1113
      %v1152 = vpop.f32.mrf.mxu0
      %v1153 = vadd.f32 0.0, %v1152
      %v1154 = vpop.f32.mrf.mxu0
      %v1155 = vpop.f32.mrf.mxu0
      %v1156 = vpop.f32.mrf.mxu0
      %1157 = vdwg.mxu0
      %v1158 = vsel %vm684, %v1053, -inf
      %1159 = vmax.xlane.f32.xlu0 %v1158
      %v1160 = vpop.xlane.xlu0 %1159
      %v1161 = vsel %vm684, %v1103, -inf
      %1162 = vmax.xlane.f32.xlu0 %v1161
      %v1163 = vpop.xlane.xlu0 %1162
      %v1164 = vsel %vm684, %v1153, -inf
      %1165 = vmax.xlane.f32.xlu0 %v1164
      %v1166 = vpop.xlane.xlu0 %1165
      %v1167 = vsub.f32 %v1053, %v1160
      %v1168 = vsub.f32 %v1103, %v1163
      %v1169 = vsub.f32 %v1153, %v1166
      %v1170 = vmul.f32 %v1167, 1.442695
      %v1171 = vpow.pop %v1170
      %v1172 = vmul.f32 %v1168, 1.442695
      %v1173 = vpow.pop %v1172
      %v1174 = vmul.f32 %v1169, 1.442695
      %v1175 = vpow.pop %v1174
      %v1176 = vsel %vm684, %v1171, 0.0
      %1177 = vadd.xlane.f32.xlu0 %v1176
      %v1178 = vpop.xlane.xlu0 %1177
      %v1179 = vsel %vm684, %v1173, 0.0
      %1180 = vadd.xlane.f32.xlu0 %v1179
      %v1181 = vpop.xlane.xlu0 %1180
      %v1182 = vsel %vm684, %v1175, 0.0
      %1183 = vadd.xlane.f32.xlu0 %v1182
      %v1184 = vpop.xlane.xlu0 %1183
      %v1185 = vrcp.pop %v1178
      %v1186 = vrcp.pop %v1181
      %v1187 = vrcp.pop %v1184
      %v1188 = vpack.c.bf16 %v1171, %v1171
      %v1189 = vpack.c.bf16 %v1173, %v1173
      %v1190 = vpack.c.bf16 %v1175, %v1175
      %1191 = vrot.lane.b32.xlu0 %v679, 56
      %v1192 = vpop.permute.xlu0 %1191
      %v1194 = vsel %vm684, %v1188, 0
      %v1197 = vsel %vm865, %v1192, 0
      %1199 = vmatprep.subr.bf16.mxu0 0
      %1200 = vmatpush1.bf16.msra.mxu0 0
      %1201 = vmatprep.subr.bf16.mxu0 0
      %1202 = vmatpush1.bf16.msra.mxu0 0
      %1203 = vmatprep.subr.bf16.mxu0 0
      %1204 = vmatpush1.bf16.msra.mxu0 0
      %1205 = vmatprep.subr.bf16.mxu0 0
      %1206 = vmatpush1.bf16.msra.mxu0 0
      %1207 = vmatprep.subr.bf16.mxu0 0
      %1208 = vmatpush1.bf16.msra.mxu0 0
      %1209 = vmatprep.subr.bf16.mxu0 0
      %1210 = vmatpush1.bf16.msra.mxu0 0
      %1211 = vmatprep.subr.bf16.mxu0 0
      %1212 = vmatpush1.bf16.msra.mxu0 0
      %1213 = vmatprep.subr.bf16.mxu0 0
      %1214 = vmatpush1.bf16.msra.mxu0 %v1197
      %1215 = vmatprep.subr.bf16.mxu0 0
      %1216 = vmatpush2.bf16.msra.mxu0 0
      %1217 = vmatprep.subr.bf16.mxu0 0
      %1218 = vmatpush2.bf16.msra.mxu0 0
      %1219 = vmatprep.subr.bf16.mxu0 0
      %1220 = vmatpush2.bf16.msra.mxu0 0
      %1221 = vmatprep.subr.bf16.mxu0 0
      %1222 = vmatpush2.bf16.msra.mxu0 0
      %1223 = vmatprep.subr.bf16.mxu0 0
      %1224 = vmatpush2.bf16.msra.mxu0 0
      %1225 = vmatprep.subr.bf16.mxu0 0
      %1226 = vmatpush2.bf16.msra.mxu0 0
      %1227 = vmatprep.subr.bf16.mxu0 0
      %1228 = vmatpush2.bf16.msra.mxu0 0
      %1229 = vmatprep.subr.bf16.mxu0 0
      %1230 = vmatpush2.bf16.msra.mxu0 0
      %1231 = vmatprep.mubr.bf16.mxu0 0
      %1232 = vmatmul.mubr.bf16.gmra.mxu0 %v1194
      %v1233 = vpop.f32.mrf.mxu0
      %v1234 = vadd.f32 0.0, %v1233
      %v1235 = vpop.f32.mrf.mxu0
      %v1236 = vpop.f32.mrf.mxu0
      %v1237 = vpop.f32.mrf.mxu0
      %1238 = vdwg.mxu0
      %1239 = vrot.lane.b32.xlu0 %v680, 56
      %v1240 = vpop.permute.xlu0 %1239
      %v1242 = vsel %vm684, %v1189, 0
      %v1245 = vsel %vm865, %v1240, 0
      %1247 = vmatprep.subr.bf16.mxu0 0
      %1248 = vmatpush1.bf16.msra.mxu0 0
      %1249 = vmatprep.subr.bf16.mxu0 0
      %1250 = vmatpush1.bf16.msra.mxu0 0
      %1251 = vmatprep.subr.bf16.mxu0 0
      %1252 = vmatpush1.bf16.msra.mxu0 0
      %1253 = vmatprep.subr.bf16.mxu0 0
      %1254 = vmatpush1.bf16.msra.mxu0 0
      %1255 = vmatprep.subr.bf16.mxu0 0
      %1256 = vmatpush1.bf16.msra.mxu0 0
      %1257 = vmatprep.subr.bf16.mxu0 0
      %1258 = vmatpush1.bf16.msra.mxu0 0
      %1259 = vmatprep.subr.bf16.mxu0 0
      %1260 = vmatpush1.bf16.msra.mxu0 0
      %1261 = vmatprep.subr.bf16.mxu0 0
      %1262 = vmatpush1.bf16.msra.mxu0 %v1245
      %1263 = vmatprep.subr.bf16.mxu0 0
      %1264 = vmatpush2.bf16.msra.mxu0 0
      %1265 = vmatprep.subr.bf16.mxu0 0
      %1266 = vmatpush2.bf16.msra.mxu0 0
      %1267 = vmatprep.subr.bf16.mxu0 0
      %1268 = vmatpush2.bf16.msra.mxu0 0
      %1269 = vmatprep.subr.bf16.mxu0 0
      %1270 = vmatpush2.bf16.msra.mxu0 0
      %1271 = vmatprep.subr.bf16.mxu0 0
      %1272 = vmatpush2.bf16.msra.mxu0 0
      %1273 = vmatprep.subr.bf16.mxu0 0
      %1274 = vmatpush2.bf16.msra.mxu0 0
      %1275 = vmatprep.subr.bf16.mxu0 0
      %1276 = vmatpush2.bf16.msra.mxu0 0
      %1277 = vmatprep.subr.bf16.mxu0 0
      %1278 = vmatpush2.bf16.msra.mxu0 0
      %1279 = vmatprep.mubr.bf16.mxu0 0
      %1280 = vmatmul.mubr.bf16.gmra.mxu0 %v1242
      %v1281 = vpop.f32.mrf.mxu0
      %v1282 = vadd.f32 0.0, %v1281
      %v1283 = vpop.f32.mrf.mxu0
      %v1284 = vpop.f32.mrf.mxu0
      %v1285 = vpop.f32.mrf.mxu0
      %1286 = vdwg.mxu0
      %1287 = vrot.lane.b32.xlu0 %v681, 56
      %v1288 = vpop.permute.xlu0 %1287
      %v1290 = vsel %vm684, %v1190, 0
      %v1293 = vsel %vm865, %v1288, 0
      %1295 = vmatprep.subr.bf16.mxu0 0
      %1296 = vmatpush1.bf16.msra.mxu0 0
      %1297 = vmatprep.subr.bf16.mxu0 0
      %1298 = vmatpush1.bf16.msra.mxu0 0
      %1299 = vmatprep.subr.bf16.mxu0 0
      %1300 = vmatpush1.bf16.msra.mxu0 0
      %1301 = vmatprep.subr.bf16.mxu0 0
      %1302 = vmatpush1.bf16.msra.mxu0 0
      %1303 = vmatprep.subr.bf16.mxu0 0
      %1304 = vmatpush1.bf16.msra.mxu0 0
      %1305 = vmatprep.subr.bf16.mxu0 0
      %1306 = vmatpush1.bf16.msra.mxu0 0
      %1307 = vmatprep.subr.bf16.mxu0 0
      %1308 = vmatpush1.bf16.msra.mxu0 0
      %1309 = vmatprep.subr.bf16.mxu0 0
      %1310 = vmatpush1.bf16.msra.mxu0 %v1293
      %1311 = vmatprep.subr.bf16.mxu0 0
      %1312 = vmatpush2.bf16.msra.mxu0 0
      %1313 = vmatprep.subr.bf16.mxu0 0
      %1314 = vmatpush2.bf16.msra.mxu0 0
      %1315 = vmatprep.subr.bf16.mxu0 0
      %1316 = vmatpush2.bf16.msra.mxu0 0
      %1317 = vmatprep.subr.bf16.mxu0 0
      %1318 = vmatpush2.bf16.msra.mxu0 0
      %1319 = vmatprep.subr.bf16.mxu0 0
      %1320 = vmatpush2.bf16.msra.mxu0 0
      %1321 = vmatprep.subr.bf16.mxu0 0
      %1322 = vmatpush2.bf16.msra.mxu0 0
      %1323 = vmatprep.subr.bf16.mxu0 0
      %1324 = vmatpush2.bf16.msra.mxu0 0
      %1325 = vmatprep.subr.bf16.mxu0 0
      %1326 = vmatpush2.bf16.msra.mxu0 0
      %1327 = vmatprep.mubr.bf16.mxu0 0
      %1328 = vmatmul.mubr.bf16.gmra.mxu0 %v1290
      %v1329 = vpop.f32.mrf.mxu0
      %v1330 = vadd.f32 0.0, %v1329
      %v1331 = vpop.f32.mrf.mxu0
      %v1332 = vpop.f32.mrf.mxu0
      %v1333 = vpop.f32.mrf.mxu0
      %1334 = vdwg.mxu0
      %v1335 = vmul.f32 %v1234, %v1185
      %v1336 = vmul.f32 %v1282, %v1186
      %v1337 = vmul.f32 %v1330, %v1187
      %1338 = vrot.lane.b32.xlu0 %v679, 112
      %v1339 = vpop.permute.xlu0 %1338
      %1340 = vrot.lane.b32.xlu0 %v679, 80
      %v1341 = vpop.permute.xlu0 %1340
      %v1343 = vsel %vm684, %v1339, 0
      %v1346 = vsel %vm684, %v1341, 0
      %1348 = vmatprep.subr.bf16.mxu0 0
      %1349 = vmatpush1.bf16.xpose.msra.mxu0 0
      %1350 = vmatprep.subr.bf16.mxu0 0
      %1351 = vmatpush1.bf16.xpose.msra.mxu0 0
      %1352 = vmatprep.subr.bf16.mxu0 0
      %1353 = vmatpush1.bf16.xpose.msra.mxu0 0
      %1354 = vmatprep.subr.bf16.mxu0 0
      %1355 = vmatpush1.bf16.xpose.msra.mxu0 0
      %1356 = vmatprep.subr.bf16.mxu0 0
      %1357 = vmatpush1.bf16.xpose.msra.mxu0 0
      %1358 = vmatprep.subr.bf16.mxu0 0
      %1359 = vmatpush1.bf16.xpose.msra.mxu0 0
      %1360 = vmatprep.subr.bf16.mxu0 0
      %1361 = vmatpush1.bf16.xpose.msra.mxu0 0
      %1362 = vmatprep.subr.bf16.mxu0 0
      %1363 = vmatpush1.bf16.xpose.msra.mxu0 %v1346
      %1364 = vmatprep.subr.bf16.mxu0 0
      %1365 = vmatpush2.bf16.xpose.msra.mxu0 0
      %1366 = vmatprep.subr.bf16.mxu0 0
      %1367 = vmatpush2.bf16.xpose.msra.mxu0 0
      %1368 = vmatprep.subr.bf16.mxu0 0
      %1369 = vmatpush2.bf16.xpose.msra.mxu0 0
      %1370 = vmatprep.subr.bf16.mxu0 0
      %1371 = vmatpush2.bf16.xpose.msra.mxu0 0
      %1372 = vmatprep.subr.bf16.mxu0 0
      %1373 = vmatpush2.bf16.xpose.msra.mxu0 0
      %1374 = vmatprep.subr.bf16.mxu0 0
      %1375 = vmatpush2.bf16.xpose.msra.mxu0 0
      %1376 = vmatprep.subr.bf16.mxu0 0
      %1377 = vmatpush2.bf16.xpose.msra.mxu0 0
      %1378 = vmatprep.subr.bf16.mxu0 0
      %1379 = vmatpush2.bf16.xpose.msra.mxu0 0
      %1380 = vmatprep.mubr.bf16.mxu0 0
      %1381 = vmatmul.mubr.bf16.gmra.mxu0 %v1343
      %v1382 = vpop.f32.mrf.mxu0
      %v1383 = vadd.f32 0.0, %v1382
      %v1384 = vpop.f32.mrf.mxu0
      %v1385 = vpop.f32.mrf.mxu0
      %v1386 = vpop.f32.mrf.mxu0
      %1387 = vdwg.mxu0
      %1388 = vrot.lane.b32.xlu0 %v680, 112
      %v1389 = vpop.permute.xlu0 %1388
      %1390 = vrot.lane.b32.xlu0 %v680, 80
      %v1391 = vpop.permute.xlu0 %1390
      %v1393 = vsel %vm684, %v1389, 0
      %v1396 = vsel %vm684, %v1391, 0
      %1398 = vmatprep.subr.bf16.mxu0 0
      %1399 = vmatpush1.bf16.xpose.msra.mxu0 0
      %1400 = vmatprep.subr.bf16.mxu0 0
      %1401 = vmatpush1.bf16.xpose.msra.mxu0 0
      %1402 = vmatprep.subr.bf16.mxu0 0
      %1403 = vmatpush1.bf16.xpose.msra.mxu0 0
      %1404 = vmatprep.subr.bf16.mxu0 0
      %1405 = vmatpush1.bf16.xpose.msra.mxu0 0
      %1406 = vmatprep.subr.bf16.mxu0 0
      %1407 = vmatpush1.bf16.xpose.msra.mxu0 0
      %1408 = vmatprep.subr.bf16.mxu0 0
      %1409 = vmatpush1.bf16.xpose.msra.mxu0 0
      %1410 = vmatprep.subr.bf16.mxu0 0
      %1411 = vmatpush1.bf16.xpose.msra.mxu0 0
      %1412 = vmatprep.subr.bf16.mxu0 0
      %1413 = vmatpush1.bf16.xpose.msra.mxu0 %v1396
      %1414 = vmatprep.subr.bf16.mxu0 0
      %1415 = vmatpush2.bf16.xpose.msra.mxu0 0
      %1416 = vmatprep.subr.bf16.mxu0 0
      %1417 = vmatpush2.bf16.xpose.msra.mxu0 0
      %1418 = vmatprep.subr.bf16.mxu0 0
      %1419 = vmatpush2.bf16.xpose.msra.mxu0 0
      %1420 = vmatprep.subr.bf16.mxu0 0
      %1421 = vmatpush2.bf16.xpose.msra.mxu0 0
      %1422 = vmatprep.subr.bf16.mxu0 0
      %1423 = vmatpush2.bf16.xpose.msra.mxu0 0
      %1424 = vmatprep.subr.bf16.mxu0 0
      %1425 = vmatpush2.bf16.xpose.msra.mxu0 0
      %1426 = vmatprep.subr.bf16.mxu0 0
      %1427 = vmatpush2.bf16.xpose.msra.mxu0 0
      %1428 = vmatprep.subr.bf16.mxu0 0
      %1429 = vmatpush2.bf16.xpose.msra.mxu0 0
      %1430 = vmatprep.mubr.bf16.mxu0 0
      %1431 = vmatmul.mubr.bf16.gmra.mxu0 %v1393
      %v1432 = vpop.f32.mrf.mxu0
      %v1433 = vadd.f32 0.0, %v1432
      %v1434 = vpop.f32.mrf.mxu0
      %v1435 = vpop.f32.mrf.mxu0
      %v1436 = vpop.f32.mrf.mxu0
      %1437 = vdwg.mxu0
      %1438 = vrot.lane.b32.xlu0 %v681, 112
      %v1439 = vpop.permute.xlu0 %1438
      %1440 = vrot.lane.b32.xlu0 %v681, 80
      %v1441 = vpop.permute.xlu0 %1440
      %v1443 = vsel %vm684, %v1439, 0
      %v1446 = vsel %vm684, %v1441, 0
      %1448 = vmatprep.subr.bf16.mxu0 0
      %1449 = vmatpush1.bf16.xpose.msra.mxu0 0
      %1450 = vmatprep.subr.bf16.mxu0 0
      %1451 = vmatpush1.bf16.xpose.msra.mxu0 0
      %1452 = vmatprep.subr.bf16.mxu0 0
      %1453 = vmatpush1.bf16.xpose.msra.mxu0 0
      %1454 = vmatprep.subr.bf16.mxu0 0
      %1455 = vmatpush1.bf16.xpose.msra.mxu0 0
      %1456 = vmatprep.subr.bf16.mxu0 0
      %1457 = vmatpush1.bf16.xpose.msra.mxu0 0
      %1458 = vmatprep.subr.bf16.mxu0 0
      %1459 = vmatpush1.bf16.xpose.msra.mxu0 0
      %1460 = vmatprep.subr.bf16.mxu0 0
      %1461 = vmatpush1.bf16.xpose.msra.mxu0 0
      %1462 = vmatprep.subr.bf16.mxu0 0
      %1463 = vmatpush1.bf16.xpose.msra.mxu0 %v1446
      %1464 = vmatprep.subr.bf16.mxu0 0
      %1465 = vmatpush2.bf16.xpose.msra.mxu0 0
      %1466 = vmatprep.subr.bf16.mxu0 0
      %1467 = vmatpush2.bf16.xpose.msra.mxu0 0
      %1468 = vmatprep.subr.bf16.mxu0 0
      %1469 = vmatpush2.bf16.xpose.msra.mxu0 0
      %1470 = vmatprep.subr.bf16.mxu0 0
      %1471 = vmatpush2.bf16.xpose.msra.mxu0 0
      %1472 = vmatprep.subr.bf16.mxu0 0
      %1473 = vmatpush2.bf16.xpose.msra.mxu0 0
      %1474 = vmatprep.subr.bf16.mxu0 0
      %1475 = vmatpush2.bf16.xpose.msra.mxu0 0
      %1476 = vmatprep.subr.bf16.mxu0 0
      %1477 = vmatpush2.bf16.xpose.msra.mxu0 0
      %1478 = vmatprep.subr.bf16.mxu0 0
      %1479 = vmatpush2.bf16.xpose.msra.mxu0 0
      %1480 = vmatprep.mubr.bf16.mxu0 0
      %1481 = vmatmul.mubr.bf16.gmra.mxu0 %v1443
      %v1482 = vpop.f32.mrf.mxu0
      %v1483 = vadd.f32 0.0, %v1482
      %v1484 = vpop.f32.mrf.mxu0
      %v1485 = vpop.f32.mrf.mxu0
      %v1486 = vpop.f32.mrf.mxu0
      %1487 = vdwg.mxu0
      %v1488 = vsel %vm684, %v1383, -inf
      %1489 = vmax.xlane.f32.xlu0 %v1488
      %v1490 = vpop.xlane.xlu0 %1489
      %v1491 = vsel %vm684, %v1433, -inf
      %1492 = vmax.xlane.f32.xlu0 %v1491
      %v1493 = vpop.xlane.xlu0 %1492
      %v1494 = vsel %vm684, %v1483, -inf
      %1495 = vmax.xlane.f32.xlu0 %v1494
      %v1496 = vpop.xlane.xlu0 %1495
      %v1497 = vsub.f32 %v1383, %v1490
      %v1498 = vsub.f32 %v1433, %v1493
      %v1499 = vsub.f32 %v1483, %v1496
      %v1500 = vmul.f32 %v1497, 1.442695
      %v1501 = vpow.pop %v1500
      %v1502 = vmul.f32 %v1498, 1.442695
      %v1503 = vpow.pop %v1502
      %v1504 = vmul.f32 %v1499, 1.442695
      %v1505 = vpow.pop %v1504
      %v1506 = vsel %vm684, %v1501, 0.0
      %1507 = vadd.xlane.f32.xlu0 %v1506
      %v1508 = vpop.xlane.xlu0 %1507
      %v1509 = vsel %vm684, %v1503, 0.0
      %1510 = vadd.xlane.f32.xlu0 %v1509
      %v1511 = vpop.xlane.xlu0 %1510
      %v1512 = vsel %vm684, %v1505, 0.0
      %1513 = vadd.xlane.f32.xlu0 %v1512
      %v1514 = vpop.xlane.xlu0 %1513
      %v1515 = vrcp.pop %v1508
      %v1516 = vrcp.pop %v1511
      %v1517 = vrcp.pop %v1514
      %v1518 = vpack.c.bf16 %v1501, %v1501
      %v1519 = vpack.c.bf16 %v1503, %v1503
      %v1520 = vpack.c.bf16 %v1505, %v1505
      %1521 = vrot.lane.b32.xlu0 %v679, 48
      %v1522 = vpop.permute.xlu0 %1521
      %v1524 = vsel %vm684, %v1518, 0
      %v1527 = vsel %vm865, %v1522, 0
      %1529 = vmatprep.subr.bf16.mxu0 0
      %1530 = vmatpush1.bf16.msra.mxu0 0
      %1531 = vmatprep.subr.bf16.mxu0 0
      %1532 = vmatpush1.bf16.msra.mxu0 0
      %1533 = vmatprep.subr.bf16.mxu0 0
      %1534 = vmatpush1.bf16.msra.mxu0 0
      %1535 = vmatprep.subr.bf16.mxu0 0
      %1536 = vmatpush1.bf16.msra.mxu0 0
      %1537 = vmatprep.subr.bf16.mxu0 0
      %1538 = vmatpush1.bf16.msra.mxu0 0
      %1539 = vmatprep.subr.bf16.mxu0 0
      %1540 = vmatpush1.bf16.msra.mxu0 0
      %1541 = vmatprep.subr.bf16.mxu0 0
      %1542 = vmatpush1.bf16.msra.mxu0 0
      %1543 = vmatprep.subr.bf16.mxu0 0
      %1544 = vmatpush1.bf16.msra.mxu0 %v1527
      %1545 = vmatprep.subr.bf16.mxu0 0
      %1546 = vmatpush2.bf16.msra.mxu0 0
      %1547 = vmatprep.subr.bf16.mxu0 0
      %1548 = vmatpush2.bf16.msra.mxu0 0
      %1549 = vmatprep.subr.bf16.mxu0 0
      %1550 = vmatpush2.bf16.msra.mxu0 0
      %1551 = vmatprep.subr.bf16.mxu0 0
      %1552 = vmatpush2.bf16.msra.mxu0 0
      %1553 = vmatprep.subr.bf16.mxu0 0
      %1554 = vmatpush2.bf16.msra.mxu0 0
      %1555 = vmatprep.subr.bf16.mxu0 0
      %1556 = vmatpush2.bf16.msra.mxu0 0
      %1557 = vmatprep.subr.bf16.mxu0 0
      %1558 = vmatpush2.bf16.msra.mxu0 0
      %1559 = vmatprep.subr.bf16.mxu0 0
      %1560 = vmatpush2.bf16.msra.mxu0 0
      %1561 = vmatprep.mubr.bf16.mxu0 0
      %1562 = vmatmul.mubr.bf16.gmra.mxu0 %v1524
      %v1563 = vpop.f32.mrf.mxu0
      %v1564 = vadd.f32 0.0, %v1563
      %v1565 = vpop.f32.mrf.mxu0
      %v1566 = vpop.f32.mrf.mxu0
      %v1567 = vpop.f32.mrf.mxu0
      %1568 = vdwg.mxu0
      %1569 = vrot.lane.b32.xlu0 %v680, 48
      %v1570 = vpop.permute.xlu0 %1569
      %v1572 = vsel %vm684, %v1519, 0
      %v1575 = vsel %vm865, %v1570, 0
      %1577 = vmatprep.subr.bf16.mxu0 0
      %1578 = vmatpush1.bf16.msra.mxu0 0
      %1579 = vmatprep.subr.bf16.mxu0 0
      %1580 = vmatpush1.bf16.msra.mxu0 0
      %1581 = vmatprep.subr.bf16.mxu0 0
      %1582 = vmatpush1.bf16.msra.mxu0 0
      %1583 = vmatprep.subr.bf16.mxu0 0
      %1584 = vmatpush1.bf16.msra.mxu0 0
      %1585 = vmatprep.subr.bf16.mxu0 0
      %1586 = vmatpush1.bf16.msra.mxu0 0
      %1587 = vmatprep.subr.bf16.mxu0 0
      %1588 = vmatpush1.bf16.msra.mxu0 0
      %1589 = vmatprep.subr.bf16.mxu0 0
      %1590 = vmatpush1.bf16.msra.mxu0 0
      %1591 = vmatprep.subr.bf16.mxu0 0
      %1592 = vmatpush1.bf16.msra.mxu0 %v1575
      %1593 = vmatprep.subr.bf16.mxu0 0
      %1594 = vmatpush2.bf16.msra.mxu0 0
      %1595 = vmatprep.subr.bf16.mxu0 0
      %1596 = vmatpush2.bf16.msra.mxu0 0
      %1597 = vmatprep.subr.bf16.mxu0 0
      %1598 = vmatpush2.bf16.msra.mxu0 0
      %1599 = vmatprep.subr.bf16.mxu0 0
      %1600 = vmatpush2.bf16.msra.mxu0 0
      %1601 = vmatprep.subr.bf16.mxu0 0
      %1602 = vmatpush2.bf16.msra.mxu0 0
      %1603 = vmatprep.subr.bf16.mxu0 0
      %1604 = vmatpush2.bf16.msra.mxu0 0
      %1605 = vmatprep.subr.bf16.mxu0 0
      %1606 = vmatpush2.bf16.msra.mxu0 0
      %1607 = vmatprep.subr.bf16.mxu0 0
      %1608 = vmatpush2.bf16.msra.mxu0 0
      %1609 = vmatprep.mubr.bf16.mxu0 0
      %1610 = vmatmul.mubr.bf16.gmra.mxu0 %v1572
      %v1611 = vpop.f32.mrf.mxu0
      %v1612 = vadd.f32 0.0, %v1611
      %v1613 = vpop.f32.mrf.mxu0
      %v1614 = vpop.f32.mrf.mxu0
      %v1615 = vpop.f32.mrf.mxu0
      %1616 = vdwg.mxu0
      %1617 = vrot.lane.b32.xlu0 %v681, 48
      %v1618 = vpop.permute.xlu0 %1617
      %v1620 = vsel %vm684, %v1520, 0
      %v1623 = vsel %vm865, %v1618, 0
      %1625 = vmatprep.subr.bf16.mxu0 0
      %1626 = vmatpush1.bf16.msra.mxu0 0
      %1627 = vmatprep.subr.bf16.mxu0 0
      %1628 = vmatpush1.bf16.msra.mxu0 0
      %1629 = vmatprep.subr.bf16.mxu0 0
      %1630 = vmatpush1.bf16.msra.mxu0 0
      %1631 = vmatprep.subr.bf16.mxu0 0
      %1632 = vmatpush1.bf16.msra.mxu0 0
      %1633 = vmatprep.subr.bf16.mxu0 0
      %1634 = vmatpush1.bf16.msra.mxu0 0
      %1635 = vmatprep.subr.bf16.mxu0 0
      %1636 = vmatpush1.bf16.msra.mxu0 0
      %1637 = vmatprep.subr.bf16.mxu0 0
      %1638 = vmatpush1.bf16.msra.mxu0 0
      %1639 = vmatprep.subr.bf16.mxu0 0
      %1640 = vmatpush1.bf16.msra.mxu0 %v1623
      %1641 = vmatprep.subr.bf16.mxu0 0
      %1642 = vmatpush2.bf16.msra.mxu0 0
      %1643 = vmatprep.subr.bf16.mxu0 0
      %1644 = vmatpush2.bf16.msra.mxu0 0
      %1645 = vmatprep.subr.bf16.mxu0 0
      %1646 = vmatpush2.bf16.msra.mxu0 0
      %1647 = vmatprep.subr.bf16.mxu0 0
      %1648 = vmatpush2.bf16.msra.mxu0 0
      %1649 = vmatprep.subr.bf16.mxu0 0
      %1650 = vmatpush2.bf16.msra.mxu0 0
      %1651 = vmatprep.subr.bf16.mxu0 0
      %1652 = vmatpush2.bf16.msra.mxu0 0
      %1653 = vmatprep.subr.bf16.mxu0 0
      %1654 = vmatpush2.bf16.msra.mxu0 0
      %1655 = vmatprep.subr.bf16.mxu0 0
      %1656 = vmatpush2.bf16.msra.mxu0 0
      %1657 = vmatprep.mubr.bf16.mxu0 0
      %1658 = vmatmul.mubr.bf16.gmra.mxu0 %v1620
      %v1659 = vpop.f32.mrf.mxu0
      %v1660 = vadd.f32 0.0, %v1659
      %v1661 = vpop.f32.mrf.mxu0
      %v1662 = vpop.f32.mrf.mxu0
      %v1663 = vpop.f32.mrf.mxu0
      %1664 = vdwg.mxu0
      %v1665 = vmul.f32 %v1564, %v1515
      %v1666 = vmul.f32 %v1612, %v1516
      %v1667 = vmul.f32 %v1660, %v1517
      %1668 = vrot.lane.b32.xlu0 %v679, 104
      %v1669 = vpop.permute.xlu0 %1668
      %1670 = vrot.lane.b32.xlu0 %v679, 72
      %v1671 = vpop.permute.xlu0 %1670
      %v1673 = vsel %vm684, %v1669, 0
      %v1676 = vsel %vm684, %v1671, 0
      %1678 = vmatprep.subr.bf16.mxu0 0
      %1679 = vmatpush1.bf16.xpose.msra.mxu0 0
      %1680 = vmatprep.subr.bf16.mxu0 0
      %1681 = vmatpush1.bf16.xpose.msra.mxu0 0
      %1682 = vmatprep.subr.bf16.mxu0 0
      %1683 = vmatpush1.bf16.xpose.msra.mxu0 0
      %1684 = vmatprep.subr.bf16.mxu0 0
      %1685 = vmatpush1.bf16.xpose.msra.mxu0 0
      %1686 = vmatprep.subr.bf16.mxu0 0
      %1687 = vmatpush1.bf16.xpose.msra.mxu0 0
      %1688 = vmatprep.subr.bf16.mxu0 0
      %1689 = vmatpush1.bf16.xpose.msra.mxu0 0
      %1690 = vmatprep.subr.bf16.mxu0 0
      %1691 = vmatpush1.bf16.xpose.msra.mxu0 0
      %1692 = vmatprep.subr.bf16.mxu0 0
      %1693 = vmatpush1.bf16.xpose.msra.mxu0 %v1676
      %1694 = vmatprep.subr.bf16.mxu0 0
      %1695 = vmatpush2.bf16.xpose.msra.mxu0 0
      %1696 = vmatprep.subr.bf16.mxu0 0
      %1697 = vmatpush2.bf16.xpose.msra.mxu0 0
      %1698 = vmatprep.subr.bf16.mxu0 0
      %1699 = vmatpush2.bf16.xpose.msra.mxu0 0
      %1700 = vmatprep.subr.bf16.mxu0 0
      %1701 = vmatpush2.bf16.xpose.msra.mxu0 0
      %1702 = vmatprep.subr.bf16.mxu0 0
      %1703 = vmatpush2.bf16.xpose.msra.mxu0 0
      %1704 = vmatprep.subr.bf16.mxu0 0
      %1705 = vmatpush2.bf16.xpose.msra.mxu0 0
      %1706 = vmatprep.subr.bf16.mxu0 0
      %1707 = vmatpush2.bf16.xpose.msra.mxu0 0
      %1708 = vmatprep.subr.bf16.mxu0 0
      %1709 = vmatpush2.bf16.xpose.msra.mxu0 0
      %1710 = vmatprep.mubr.bf16.mxu0 0
      %1711 = vmatmul.mubr.bf16.gmra.mxu0 %v1673
      %v1712 = vpop.f32.mrf.mxu0
      %v1713 = vadd.f32 0.0, %v1712
      %v1714 = vpop.f32.mrf.mxu0
      %v1715 = vpop.f32.mrf.mxu0
      %v1716 = vpop.f32.mrf.mxu0
      %1717 = vdwg.mxu0
      %1718 = vrot.lane.b32.xlu0 %v680, 104
      %v1719 = vpop.permute.xlu0 %1718
      %1720 = vrot.lane.b32.xlu0 %v680, 72
      %v1721 = vpop.permute.xlu0 %1720
      %v1723 = vsel %vm684, %v1719, 0
      %v1726 = vsel %vm684, %v1721, 0
      %1728 = vmatprep.subr.bf16.mxu0 0
      %1729 = vmatpush1.bf16.xpose.msra.mxu0 0
      %1730 = vmatprep.subr.bf16.mxu0 0
      %1731 = vmatpush1.bf16.xpose.msra.mxu0 0
      %1732 = vmatprep.subr.bf16.mxu0 0
      %1733 = vmatpush1.bf16.xpose.msra.mxu0 0
      %1734 = vmatprep.subr.bf16.mxu0 0
      %1735 = vmatpush1.bf16.xpose.msra.mxu0 0
      %1736 = vmatprep.subr.bf16.mxu0 0
      %1737 = vmatpush1.bf16.xpose.msra.mxu0 0
      %1738 = vmatprep.subr.bf16.mxu0 0
      %1739 = vmatpush1.bf16.xpose.msra.mxu0 0
      %1740 = vmatprep.subr.bf16.mxu0 0
      %1741 = vmatpush1.bf16.xpose.msra.mxu0 0
      %1742 = vmatprep.subr.bf16.mxu0 0
      %1743 = vmatpush1.bf16.xpose.msra.mxu0 %v1726
      %1744 = vmatprep.subr.bf16.mxu0 0
      %1745 = vmatpush2.bf16.xpose.msra.mxu0 0
      %1746 = vmatprep.subr.bf16.mxu0 0
      %1747 = vmatpush2.bf16.xpose.msra.mxu0 0
      %1748 = vmatprep.subr.bf16.mxu0 0
      %1749 = vmatpush2.bf16.xpose.msra.mxu0 0
      %1750 = vmatprep.subr.bf16.mxu0 0
      %1751 = vmatpush2.bf16.xpose.msra.mxu0 0
      %1752 = vmatprep.subr.bf16.mxu0 0
      %1753 = vmatpush2.bf16.xpose.msra.mxu0 0
      %1754 = vmatprep.subr.bf16.mxu0 0
      %1755 = vmatpush2.bf16.xpose.msra.mxu0 0
      %1756 = vmatprep.subr.bf16.mxu0 0
      %1757 = vmatpush2.bf16.xpose.msra.mxu0 0
      %1758 = vmatprep.subr.bf16.mxu0 0
      %1759 = vmatpush2.bf16.xpose.msra.mxu0 0
      %1760 = vmatprep.mubr.bf16.mxu0 0
      %1761 = vmatmul.mubr.bf16.gmra.mxu0 %v1723
      %v1762 = vpop.f32.mrf.mxu0
      %v1763 = vadd.f32 0.0, %v1762
      %v1764 = vpop.f32.mrf.mxu0
      %v1765 = vpop.f32.mrf.mxu0
      %v1766 = vpop.f32.mrf.mxu0
      %1767 = vdwg.mxu0
      %1768 = vrot.lane.b32.xlu0 %v681, 104
      %v1769 = vpop.permute.xlu0 %1768
      %1770 = vrot.lane.b32.xlu0 %v681, 72
      %v1771 = vpop.permute.xlu0 %1770
      %v1773 = vsel %vm684, %v1769, 0
      %v1776 = vsel %vm684, %v1771, 0
      %1778 = vmatprep.subr.bf16.mxu0 0
      %1779 = vmatpush1.bf16.xpose.msra.mxu0 0
      %1780 = vmatprep.subr.bf16.mxu0 0
      %1781 = vmatpush1.bf16.xpose.msra.mxu0 0
      %1782 = vmatprep.subr.bf16.mxu0 0
      %1783 = vmatpush1.bf16.xpose.msra.mxu0 0
      %1784 = vmatprep.subr.bf16.mxu0 0
      %1785 = vmatpush1.bf16.xpose.msra.mxu0 0
      %1786 = vmatprep.subr.bf16.mxu0 0
      %1787 = vmatpush1.bf16.xpose.msra.mxu0 0
      %1788 = vmatprep.subr.bf16.mxu0 0
      %1789 = vmatpush1.bf16.xpose.msra.mxu0 0
      %1790 = vmatprep.subr.bf16.mxu0 0
      %1791 = vmatpush1.bf16.xpose.msra.mxu0 0
      %1792 = vmatprep.subr.bf16.mxu0 0
      %1793 = vmatpush1.bf16.xpose.msra.mxu0 %v1776
      %1794 = vmatprep.subr.bf16.mxu0 0
      %1795 = vmatpush2.bf16.xpose.msra.mxu0 0
      %1796 = vmatprep.subr.bf16.mxu0 0
      %1797 = vmatpush2.bf16.xpose.msra.mxu0 0
      %1798 = vmatprep.subr.bf16.mxu0 0
      %1799 = vmatpush2.bf16.xpose.msra.mxu0 0
      %1800 = vmatprep.subr.bf16.mxu0 0
      %1801 = vmatpush2.bf16.xpose.msra.mxu0 0
      %1802 = vmatprep.subr.bf16.mxu0 0
      %1803 = vmatpush2.bf16.xpose.msra.mxu0 0
      %1804 = vmatprep.subr.bf16.mxu0 0
      %1805 = vmatpush2.bf16.xpose.msra.mxu0 0
      %1806 = vmatprep.subr.bf16.mxu0 0
      %1807 = vmatpush2.bf16.xpose.msra.mxu0 0
      %1808 = vmatprep.subr.bf16.mxu0 0
      %1809 = vmatpush2.bf16.xpose.msra.mxu0 0
      %1810 = vmatprep.mubr.bf16.mxu0 0
      %1811 = vmatmul.mubr.bf16.gmra.mxu0 %v1773
      %v1812 = vpop.f32.mrf.mxu0
      %v1813 = vadd.f32 0.0, %v1812
      %v1814 = vpop.f32.mrf.mxu0
      %v1815 = vpop.f32.mrf.mxu0
      %v1816 = vpop.f32.mrf.mxu0
      %1817 = vdwg.mxu0
      %v1818 = vsel %vm684, %v1713, -inf
      %1819 = vmax.xlane.f32.xlu0 %v1818
      %v1820 = vpop.xlane.xlu0 %1819
      %v1821 = vsel %vm684, %v1763, -inf
      %1822 = vmax.xlane.f32.xlu0 %v1821
      %v1823 = vpop.xlane.xlu0 %1822
      %v1824 = vsel %vm684, %v1813, -inf
      %1825 = vmax.xlane.f32.xlu0 %v1824
      %v1826 = vpop.xlane.xlu0 %1825
      %v1827 = vsub.f32 %v1713, %v1820
      %v1828 = vsub.f32 %v1763, %v1823
      %v1829 = vsub.f32 %v1813, %v1826
      %v1830 = vmul.f32 %v1827, 1.442695
      %v1831 = vpow.pop %v1830
      %v1832 = vmul.f32 %v1828, 1.442695
      %v1833 = vpow.pop %v1832
      %v1834 = vmul.f32 %v1829, 1.442695
      %v1835 = vpow.pop %v1834
      %v1836 = vsel %vm684, %v1831, 0.0
      %1837 = vadd.xlane.f32.xlu0 %v1836
      %v1838 = vpop.xlane.xlu0 %1837
      %v1839 = vsel %vm684, %v1833, 0.0
      %1840 = vadd.xlane.f32.xlu0 %v1839
      %v1841 = vpop.xlane.xlu0 %1840
      %v1842 = vsel %vm684, %v1835, 0.0
      %1843 = vadd.xlane.f32.xlu0 %v1842
      %v1844 = vpop.xlane.xlu0 %1843
      %v1845 = vrcp.pop %v1838
      %v1846 = vrcp.pop %v1841
      %v1847 = vrcp.pop %v1844
      %v1848 = vpack.c.bf16 %v1831, %v1831
      %v1849 = vpack.c.bf16 %v1833, %v1833
      %v1850 = vpack.c.bf16 %v1835, %v1835
      %1851 = vrot.lane.b32.xlu0 %v679, 40
      %v1852 = vpop.permute.xlu0 %1851
      %v1854 = vsel %vm684, %v1848, 0
      %v1857 = vsel %vm865, %v1852, 0
      %1859 = vmatprep.subr.bf16.mxu0 0
      %1860 = vmatpush1.bf16.msra.mxu0 0
      %1861 = vmatprep.subr.bf16.mxu0 0
      %1862 = vmatpush1.bf16.msra.mxu0 0
      %1863 = vmatprep.subr.bf16.mxu0 0
      %1864 = vmatpush1.bf16.msra.mxu0 0
      %1865 = vmatprep.subr.bf16.mxu0 0
      %1866 = vmatpush1.bf16.msra.mxu0 0
      %1867 = vmatprep.subr.bf16.mxu0 0
      %1868 = vmatpush1.bf16.msra.mxu0 0
      %1869 = vmatprep.subr.bf16.mxu0 0
      %1870 = vmatpush1.bf16.msra.mxu0 0
      %1871 = vmatprep.subr.bf16.mxu0 0
      %1872 = vmatpush1.bf16.msra.mxu0 0
      %1873 = vmatprep.subr.bf16.mxu0 0
      %1874 = vmatpush1.bf16.msra.mxu0 %v1857
      %1875 = vmatprep.subr.bf16.mxu0 0
      %1876 = vmatpush2.bf16.msra.mxu0 0
      %1877 = vmatprep.subr.bf16.mxu0 0
      %1878 = vmatpush2.bf16.msra.mxu0 0
      %1879 = vmatprep.subr.bf16.mxu0 0
      %1880 = vmatpush2.bf16.msra.mxu0 0
      %1881 = vmatprep.subr.bf16.mxu0 0
      %1882 = vmatpush2.bf16.msra.mxu0 0
      %1883 = vmatprep.subr.bf16.mxu0 0
      %1884 = vmatpush2.bf16.msra.mxu0 0
      %1885 = vmatprep.subr.bf16.mxu0 0
      %1886 = vmatpush2.bf16.msra.mxu0 0
      %1887 = vmatprep.subr.bf16.mxu0 0
      %1888 = vmatpush2.bf16.msra.mxu0 0
      %1889 = vmatprep.subr.bf16.mxu0 0
      %1890 = vmatpush2.bf16.msra.mxu0 0
      %1891 = vmatprep.mubr.bf16.mxu0 0
      %1892 = vmatmul.mubr.bf16.gmra.mxu0 %v1854
      %v1893 = vpop.f32.mrf.mxu0
      %v1894 = vadd.f32 0.0, %v1893
      %v1895 = vpop.f32.mrf.mxu0
      %v1896 = vpop.f32.mrf.mxu0
      %v1897 = vpop.f32.mrf.mxu0
      %1898 = vdwg.mxu0
      %1899 = vrot.lane.b32.xlu0 %v680, 40
      %v1900 = vpop.permute.xlu0 %1899
      %v1902 = vsel %vm684, %v1849, 0
      %v1905 = vsel %vm865, %v1900, 0
      %1907 = vmatprep.subr.bf16.mxu0 0
      %1908 = vmatpush1.bf16.msra.mxu0 0
      %1909 = vmatprep.subr.bf16.mxu0 0
      %1910 = vmatpush1.bf16.msra.mxu0 0
      %1911 = vmatprep.subr.bf16.mxu0 0
      %1912 = vmatpush1.bf16.msra.mxu0 0
      %1913 = vmatprep.subr.bf16.mxu0 0
      %1914 = vmatpush1.bf16.msra.mxu0 0
      %1915 = vmatprep.subr.bf16.mxu0 0
      %1916 = vmatpush1.bf16.msra.mxu0 0
      %1917 = vmatprep.subr.bf16.mxu0 0
      %1918 = vmatpush1.bf16.msra.mxu0 0
      %1919 = vmatprep.subr.bf16.mxu0 0
      %1920 = vmatpush1.bf16.msra.mxu0 0
      %1921 = vmatprep.subr.bf16.mxu0 0
      %1922 = vmatpush1.bf16.msra.mxu0 %v1905
      %1923 = vmatprep.subr.bf16.mxu0 0
      %1924 = vmatpush2.bf16.msra.mxu0 0
      %1925 = vmatprep.subr.bf16.mxu0 0
      %1926 = vmatpush2.bf16.msra.mxu0 0
      %1927 = vmatprep.subr.bf16.mxu0 0
      %1928 = vmatpush2.bf16.msra.mxu0 0
      %1929 = vmatprep.subr.bf16.mxu0 0
      %1930 = vmatpush2.bf16.msra.mxu0 0
      %1931 = vmatprep.subr.bf16.mxu0 0
      %1932 = vmatpush2.bf16.msra.mxu0 0
      %1933 = vmatprep.subr.bf16.mxu0 0
      %1934 = vmatpush2.bf16.msra.mxu0 0
      %1935 = vmatprep.subr.bf16.mxu0 0
      %1936 = vmatpush2.bf16.msra.mxu0 0
      %1937 = vmatprep.subr.bf16.mxu0 0
      %1938 = vmatpush2.bf16.msra.mxu0 0
      %1939 = vmatprep.mubr.bf16.mxu0 0
      %1940 = vmatmul.mubr.bf16.gmra.mxu0 %v1902
      %v1941 = vpop.f32.mrf.mxu0
      %v1942 = vadd.f32 0.0, %v1941
      %v1943 = vpop.f32.mrf.mxu0
      %v1944 = vpop.f32.mrf.mxu0
      %v1945 = vpop.f32.mrf.mxu0
      %1946 = vdwg.mxu0
      %1947 = vrot.lane.b32.xlu0 %v681, 40
      %v1948 = vpop.permute.xlu0 %1947
      %v1950 = vsel %vm684, %v1850, 0
      %v1953 = vsel %vm865, %v1948, 0
      %1955 = vmatprep.subr.bf16.mxu0 0
      %1956 = vmatpush1.bf16.msra.mxu0 0
      %1957 = vmatprep.subr.bf16.mxu0 0
      %1958 = vmatpush1.bf16.msra.mxu0 0
      %1959 = vmatprep.subr.bf16.mxu0 0
      %1960 = vmatpush1.bf16.msra.mxu0 0
      %1961 = vmatprep.subr.bf16.mxu0 0
      %1962 = vmatpush1.bf16.msra.mxu0 0
      %1963 = vmatprep.subr.bf16.mxu0 0
      %1964 = vmatpush1.bf16.msra.mxu0 0
      %1965 = vmatprep.subr.bf16.mxu0 0
      %1966 = vmatpush1.bf16.msra.mxu0 0
      %1967 = vmatprep.subr.bf16.mxu0 0
      %1968 = vmatpush1.bf16.msra.mxu0 0
      %1969 = vmatprep.subr.bf16.mxu0 0
      %1970 = vmatpush1.bf16.msra.mxu0 %v1953
      %1971 = vmatprep.subr.bf16.mxu0 0
      %1972 = vmatpush2.bf16.msra.mxu0 0
      %1973 = vmatprep.subr.bf16.mxu0 0
      %1974 = vmatpush2.bf16.msra.mxu0 0
      %1975 = vmatprep.subr.bf16.mxu0 0
      %1976 = vmatpush2.bf16.msra.mxu0 0
      %1977 = vmatprep.subr.bf16.mxu0 0
      %1978 = vmatpush2.bf16.msra.mxu0 0
      %1979 = vmatprep.subr.bf16.mxu0 0
      %1980 = vmatpush2.bf16.msra.mxu0 0
      %1981 = vmatprep.subr.bf16.mxu0 0
      %1982 = vmatpush2.bf16.msra.mxu0 0
      %1983 = vmatprep.subr.bf16.mxu0 0
      %1984 = vmatpush2.bf16.msra.mxu0 0
      %1985 = vmatprep.subr.bf16.mxu0 0
      %1986 = vmatpush2.bf16.msra.mxu0 0
      %1987 = vmatprep.mubr.bf16.mxu0 0
      %1988 = vmatmul.mubr.bf16.gmra.mxu0 %v1950
      %v1989 = vpop.f32.mrf.mxu0
      %v1990 = vadd.f32 0.0, %v1989
      %v1991 = vpop.f32.mrf.mxu0
      %v1992 = vpop.f32.mrf.mxu0
      %v1993 = vpop.f32.mrf.mxu0
      %1994 = vdwg.mxu0
      %v1995 = vmul.f32 %v1894, %v1845
      %v1996 = vmul.f32 %v1942, %v1846
      %v1997 = vmul.f32 %v1990, %v1847
      %2001 = vrot.lane.b32.xlu0 %v1335, 8
      %v2002 = vpop.permute.xlu0 %2001
      %2003 = vrot.lane.b32.xlu0 %v1336, 8
      %v2004 = vpop.permute.xlu0 %2003
      %2005 = vrot.lane.b32.xlu0 %v1337, 8
      %v2006 = vpop.permute.xlu0 %2005
      %2013 = vrot.lane.b32.xlu0 %v1665, 16
      %v2014 = vpop.permute.xlu0 %2013
      %2015 = vrot.lane.b32.xlu0 %v1666, 16
      %v2016 = vpop.permute.xlu0 %2015
      %2017 = vrot.lane.b32.xlu0 %v1667, 16
      %v2018 = vpop.permute.xlu0 %2017
      %2025 = vrot.lane.b32.xlu0 %v1995, 24
      %v2026 = vpop.permute.xlu0 %2025
      %2027 = vrot.lane.b32.xlu0 %v1996, 24
      %v2028 = vpop.permute.xlu0 %2027
      %2029 = vrot.lane.b32.xlu0 %v1997, 24
      %v2030 = vpop.permute.xlu0 %2029
      %v2034 = vsel %vm684, %v1005, %v2002
      %v2035 = vsel %vm684, %v1006, %v2004
      %v2036 = vsel %vm684, %v1007, %v2006
      %vm2037 = vcmask 130048
      %v2038 = vsel %vm2037, %v2034, %v2014
      %v2039 = vsel %vm2037, %v2035, %v2016
      %v2040 = vsel %vm2037, %v2036, %v2018
      %vm2041 = vcmask 195584
      %v2042 = vsel %vm2041, %v2038, %v2026
      %v2043 = vsel %vm2041, %v2039, %v2028
      %v2044 = vsel %vm2041, %v2040, %v2030
      %v2045 = vpack.c.bf16 %v2043, %v2042
      %v2046 = vpack.c.bf16 %v2044, %v2044
      %v2047 = vld [vmem:[%s6] sm:$0xf]
      %v2048 = vld [vmem:[%s6 + $0x4] sm:$0xf]
      %v2049 = vld [vmem:[%s6 + $0x8] sm:$0xf]
      %v2050 = vld [vmem:[%s6 + $0xc] sm:$0xf]
      %v2051 = vld [vmem:[%s7] sm:$0x1]
      %v2053 = vlaneseq
      %v2054 = vshrl.u32 %v2053, 7
      %v2055 = vsub.s32 0, %v2054
      %v2056 = vrot.slane %v2051, %v2055
      %v2062 = vunpack.c.l.b16 %v2047
      %v2063 = vunpack.c.l.b16 %v2048
      %v2064 = vunpack.c.l.b16 %v2049
      %v2065 = vunpack.c.l.b16 %v2050
      %v2066 = vpack.c.b16 %v2063, %v2062
      %v2067 = vpack.c.b16 %v2065, %v2064
      %v2071 = vsel %vm617, %v2045, 0
      %v2074 = vsel %vm617, %v2046, 0
      %2076 = vmatprep.subr.bf16.mxu0 0
      %2077 = vmatpush1.bf16.msra.mxu0 0
      %2078 = vmatprep.subr.bf16.mxu0 0
      %2079 = vmatpush1.bf16.msra.mxu0 0
      %2080 = vmatprep.subr.bf16.mxu0 0
      %2081 = vmatpush1.bf16.msra.mxu0 0
      %2082 = vmatprep.subr.bf16.mxu0 0
      %2083 = vmatpush1.bf16.msra.mxu0 0
      %2084 = vmatprep.subr.bf16.mxu0 0
      %2085 = vmatpush1.bf16.msra.mxu0 0
      %2086 = vmatprep.subr.bf16.mxu0 0
      %2087 = vmatpush1.bf16.msra.mxu0 0
      %2088 = vmatprep.subr.bf16.mxu0 0
      %2089 = vmatpush1.bf16.msra.mxu0 %v2067
      %2090 = vmatprep.subr.bf16.mxu0 0
      %2091 = vmatpush1.bf16.msra.mxu0 %v2066
      %2092 = vmatprep.subr.bf16.mxu0 0
      %2093 = vmatpush2.bf16.msra.mxu0 0
      %2094 = vmatprep.subr.bf16.mxu0 0
      %2095 = vmatpush2.bf16.msra.mxu0 0
      %2096 = vmatprep.subr.bf16.mxu0 0
      %2097 = vmatpush2.bf16.msra.mxu0 0
      %2098 = vmatprep.subr.bf16.mxu0 0
      %2099 = vmatpush2.bf16.msra.mxu0 0
      %2100 = vmatprep.subr.bf16.mxu0 0
      %2101 = vmatpush2.bf16.msra.mxu0 0
      %2102 = vmatprep.subr.bf16.mxu0 0
      %2103 = vmatpush2.bf16.msra.mxu0 0
      %2104 = vmatprep.subr.bf16.mxu0 0
      %2105 = vmatpush2.bf16.msra.mxu0 0
      %2106 = vmatprep.subr.bf16.mxu0 0
      %2107 = vmatpush2.bf16.msra.mxu0 0
      %2108 = vmatprep.mubr.bf16.mxu0 0
      %2109 = vmatmul.mubr.bf16.gmra.mxu0 %v2071
      %v2110 = vpop.f32.mrf.mxu0
      %v2111 = vadd.f32 %v2056, %v2110
      %v2112 = vpop.f32.mrf.mxu0
      %v2113 = vpop.f32.mrf.mxu0
      %v2114 = vadd.f32 %v2056, %v2113
      %v2115 = vpop.f32.mrf.mxu0
      %2116 = vmatprep.mubr.bf16.mxu0 0
      %2117 = vmatmul.mubr.bf16.gmra.mxu0 %v2074
      %v2118 = vpop.f32.mrf.mxu0
      %v2119 = vadd.f32 %v2056, %v2118
      %v2120 = vpop.f32.mrf.mxu0
      %v2121 = vpop.f32.mrf.mxu0
      %v2122 = vpop.f32.mrf.mxu0
      %2123 = vdwg.mxu0
      %v2124 = vadd.f32 %v589, %v2111
      %v2125 = vadd.f32 %v590, %v2114
      %v2126 = vadd.f32 %v591, %v2119
      %v2127 = vld [vmem:[%s12] sm:$0x1]
      %v2128 = vld [vmem:[%s13] sm:$0x1]
      %v2129 = vsel %vm617, %v2124, 0.0
      %2130 = vadd.xlane.f32.xlu0 %v2129
      %v2131 = vpop.xlane.xlu0 %2130
      %v2132 = vsel %vm617, %v2125, 0.0
      %2133 = vadd.xlane.f32.xlu0 %v2132
      %v2134 = vpop.xlane.xlu0 %2133
      %v2135 = vsel %vm617, %v2126, 0.0
      %2136 = vadd.xlane.f32.xlu0 %v2135
      %v2137 = vpop.xlane.xlu0 %2136
      %v2138 = vrcp.pop 32.0
      %v2139 = vmul.f32 %v2131, %v2138
      %v2140 = vmul.f32 %v2134, %v2138
      %v2141 = vmul.f32 %v2137, %v2138
      %v2142 = vsub.f32 %v2124, %v2139
      %v2143 = vsub.f32 %v2125, %v2140
      %v2144 = vsub.f32 %v2126, %v2141
      %v2145 = vmul.f32 %v2142, %v2142
      %v2146 = vmul.f32 %v2143, %v2143
      %v2147 = vmul.f32 %v2144, %v2144
      %v2148 = vsel %vm617, %v2145, 0.0
      %2149 = vadd.xlane.f32.xlu0 %v2148
      %v2150 = vpop.xlane.xlu0 %2149
      %v2151 = vsel %vm617, %v2146, 0.0
      %2152 = vadd.xlane.f32.xlu0 %v2151
      %v2153 = vpop.xlane.xlu0 %2152
      %v2154 = vsel %vm617, %v2147, 0.0
      %2155 = vadd.xlane.f32.xlu0 %v2154
      %v2156 = vpop.xlane.xlu0 %2155
      %v2157 = vmul.f32 %v2150, %v2138
      %v2158 = vmul.f32 %v2153, %v2138
      %v2159 = vmul.f32 %v2156, %v2138
      %v2160 = vadd.f32 %v2157, 1e-05
      %v2161 = vadd.f32 %v2158, 1e-05
      %v2162 = vadd.f32 %v2159, 1e-05
      %v2163 = vrsqrt.pop %v2160
      %v2164 = vrsqrt.pop %v2161
      %v2165 = vrsqrt.pop %v2162
      %v2166 = vmul.f32 %v2142, %v2163
      %v2167 = vmul.f32 %v2143, %v2164
      %v2168 = vmul.f32 %v2144, %v2165
      %v2170 = vlaneseq
      %v2171 = vshrl.u32 %v2170, 7
      %v2172 = vsub.s32 0, %v2171
      %v2173 = vrot.slane %v2127, %v2172
      %v2175 = vmul.f32 %v2166, %v2173
      %v2176 = vmul.f32 %v2167, %v2173
      %v2177 = vmul.f32 %v2168, %v2173
      %v2179 = vlaneseq
      %v2180 = vshrl.u32 %v2179, 7
      %v2181 = vsub.s32 0, %v2180
      %v2182 = vrot.slane %v2128, %v2181
      %v2184 = vadd.f32 %v2175, %v2182
      %v2185 = vadd.f32 %v2176, %v2182
      %v2186 = vadd.f32 %v2177, %v2182
      %v2187 = vpack.c.bf16 %v2185, %v2184
      %v2188 = vpack.c.bf16 %v2186, %v2186
      %v2189 = vld [vmem:[%s8] sm:$0xf]
      %v2190 = vld [vmem:[%s8 + $0x4] sm:$0xf]
      %v2191 = vld [vmem:[%s8 + $0x8] sm:$0xf]
      %v2192 = vld [vmem:[%s8 + $0xc] sm:$0xf]
      %v2193 = vld [vmem:[%s9] sm:$0x1]
      %v2195 = vlaneseq
      %v2196 = vshrl.u32 %v2195, 7
      %v2197 = vsub.s32 0, %v2196
      %v2198 = vrot.slane %v2193, %v2197
      %v2204 = vunpack.c.l.b16 %v2189
      %v2205 = vunpack.c.l.b16 %v2190
      %v2206 = vunpack.c.l.b16 %v2191
      %v2207 = vunpack.c.l.b16 %v2192
      %v2208 = vpack.c.b16 %v2205, %v2204
      %v2209 = vpack.c.b16 %v2207, %v2206
      %v2213 = vsel %vm617, %v2187, 0
      %v2216 = vsel %vm617, %v2188, 0
      %2218 = vmatprep.subr.bf16.mxu0 0
      %2219 = vmatpush1.bf16.msra.mxu0 0
      %2220 = vmatprep.subr.bf16.mxu0 0
      %2221 = vmatpush1.bf16.msra.mxu0 0
      %2222 = vmatprep.subr.bf16.mxu0 0
      %2223 = vmatpush1.bf16.msra.mxu0 0
      %2224 = vmatprep.subr.bf16.mxu0 0
      %2225 = vmatpush1.bf16.msra.mxu0 0
      %2226 = vmatprep.subr.bf16.mxu0 0
      %2227 = vmatpush1.bf16.msra.mxu0 0
      %2228 = vmatprep.subr.bf16.mxu0 0
      %2229 = vmatpush1.bf16.msra.mxu0 0
      %2230 = vmatprep.subr.bf16.mxu0 0
      %2231 = vmatpush1.bf16.msra.mxu0 %v2209
      %2232 = vmatprep.subr.bf16.mxu0 0
      %2233 = vmatpush1.bf16.msra.mxu0 %v2208
      %2234 = vmatprep.subr.bf16.mxu0 0
      %2235 = vmatpush2.bf16.msra.mxu0 0
      %2236 = vmatprep.subr.bf16.mxu0 0
      %2237 = vmatpush2.bf16.msra.mxu0 0
      %2238 = vmatprep.subr.bf16.mxu0 0
      %2239 = vmatpush2.bf16.msra.mxu0 0
      %2240 = vmatprep.subr.bf16.mxu0 0
      %2241 = vmatpush2.bf16.msra.mxu0 0
      %2242 = vmatprep.subr.bf16.mxu0 0
      %2243 = vmatpush2.bf16.msra.mxu0 0
      %2244 = vmatprep.subr.bf16.mxu0 0
      %2245 = vmatpush2.bf16.msra.mxu0 0
      %2246 = vmatprep.subr.bf16.mxu0 0
      %2247 = vmatpush2.bf16.msra.mxu0 0
      %2248 = vmatprep.subr.bf16.mxu0 0
      %2249 = vmatpush2.bf16.msra.mxu0 0
      %2250 = vmatprep.mubr.bf16.mxu0 0
      %2251 = vmatmul.mubr.bf16.gmra.mxu0 %v2213
      %v2252 = vpop.f32.mrf.mxu0
      %v2253 = vadd.f32 %v2198, %v2252
      %v2254 = vpop.f32.mrf.mxu0
      %v2255 = vpop.f32.mrf.mxu0
      %v2256 = vadd.f32 %v2198, %v2255
      %v2257 = vpop.f32.mrf.mxu0
      %2258 = vmatprep.mubr.bf16.mxu0 0
      %2259 = vmatmul.mubr.bf16.gmra.mxu0 %v2216
      %v2260 = vpop.f32.mrf.mxu0
      %v2261 = vadd.f32 %v2198, %v2260
      %v2262 = vpop.f32.mrf.mxu0
      %v2263 = vpop.f32.mrf.mxu0
      %v2264 = vpop.f32.mrf.mxu0
      %2265 = vdwg.mxu0
      %v2266 = vmax.f32 %v2253, 0.0
      %v2267 = vmax.f32 %v2256, 0.0
      %v2268 = vmax.f32 %v2261, 0.0
      %v2269 = vpack.c.bf16 %v2267, %v2266
      %v2270 = vpack.c.bf16 %v2268, %v2268
      %v2271 = vld [vmem:[%s10] sm:$0xf]
      %v2272 = vld [vmem:[%s10 + $0x4] sm:$0xf]
      %v2273 = vld [vmem:[%s10 + $0x8] sm:$0xf]
      %v2274 = vld [vmem:[%s10 + $0xc] sm:$0xf]
      %v2275 = vld [vmem:[%s10 + $0x10] sm:$0xf]
      %v2276 = vld [vmem:[%s10 + $0x14] sm:$0xf]
      %v2277 = vld [vmem:[%s10 + $0x18] sm:$0xf]
      %v2278 = vld [vmem:[%s10 + $0x1c] sm:$0xf]
      %v2279 = vld [vmem:[%s10 + $0x20] sm:$0xf]
      %v2280 = vld [vmem:[%s10 + $0x24] sm:$0xf]
      %v2281 = vld [vmem:[%s10 + $0x28] sm:$0xf]
      %v2282 = vld [vmem:[%s10 + $0x2c] sm:$0xf]
      %v2283 = vld [vmem:[%s10 + $0x30] sm:$0xf]
      %v2284 = vld [vmem:[%s10 + $0x34] sm:$0xf]
      %v2285 = vld [vmem:[%s10 + $0x38] sm:$0xf]
      %v2286 = vld [vmem:[%s10 + $0x3c] sm:$0xf]
      %v2287 = vld [vmem:[%s11] sm:$0x1]
      %v2289 = vlaneseq
      %v2290 = vshrl.u32 %v2289, 7
      %v2291 = vsub.s32 0, %v2290
      %v2292 = vrot.slane %v2287, %v2291
      %v2310 = vunpack.c.l.b16 %v2271
      %v2311 = vunpack.c.l.b16 %v2272
      %v2312 = vunpack.c.l.b16 %v2273
      %v2313 = vunpack.c.l.b16 %v2274
      %v2314 = vunpack.c.l.b16 %v2275
      %v2315 = vunpack.c.l.b16 %v2276
      %v2316 = vunpack.c.l.b16 %v2277
      %v2317 = vunpack.c.l.b16 %v2278
      %v2318 = vunpack.c.l.b16 %v2279
      %v2319 = vunpack.c.l.b16 %v2280
      %v2320 = vunpack.c.l.b16 %v2281
      %v2321 = vunpack.c.l.b16 %v2282
      %v2322 = vunpack.c.l.b16 %v2283
      %v2323 = vunpack.c.l.b16 %v2284
      %v2324 = vunpack.c.l.b16 %v2285
      %v2325 = vunpack.c.l.b16 %v2286
      %v2326 = vpack.c.b16 %v2311, %v2310
      %v2327 = vpack.c.b16 %v2313, %v2312
      %v2328 = vpack.c.b16 %v2315, %v2314
      %v2329 = vpack.c.b16 %v2317, %v2316
      %v2330 = vpack.c.b16 %v2319, %v2318
      %v2331 = vpack.c.b16 %v2321, %v2320
      %v2332 = vpack.c.b16 %v2323, %v2322
      %v2333 = vpack.c.b16 %v2325, %v2324
      %2342 = vmatprep.subr.bf16.mxu0 0
      %2343 = vmatpush1.bf16.msra.mxu0 %v2333
      %2344 = vmatprep.subr.bf16.mxu0 0
      %2345 = vmatpush1.bf16.msra.mxu0 %v2332
      %2346 = vmatprep.subr.bf16.mxu0 0
      %2347 = vmatpush1.bf16.msra.mxu0 %v2331
      %2348 = vmatprep.subr.bf16.mxu0 0
      %2349 = vmatpush1.bf16.msra.mxu0 %v2330
      %2350 = vmatprep.subr.bf16.mxu0 0
      %2351 = vmatpush1.bf16.msra.mxu0 %v2329
      %2352 = vmatprep.subr.bf16.mxu0 0
      %2353 = vmatpush1.bf16.msra.mxu0 %v2328
      %2354 = vmatprep.subr.bf16.mxu0 0
      %2355 = vmatpush1.bf16.msra.mxu0 %v2327
      %2356 = vmatprep.subr.bf16.mxu0 0
      %2357 = vmatpush1.bf16.msra.mxu0 %v2326
      %2358 = vmatprep.subr.bf16.mxu0 0
      %2359 = vmatpush2.bf16.msra.mxu0 0
      %2360 = vmatprep.subr.bf16.mxu0 0
      %2361 = vmatpush2.bf16.msra.mxu0 0
      %2362 = vmatprep.subr.bf16.mxu0 0
      %2363 = vmatpush2.bf16.msra.mxu0 0
      %2364 = vmatprep.subr.bf16.mxu0 0
      %2365 = vmatpush2.bf16.msra.mxu0 0
      %2366 = vmatprep.subr.bf16.mxu0 0
      %2367 = vmatpush2.bf16.msra.mxu0 0
      %2368 = vmatprep.subr.bf16.mxu0 0
      %2369 = vmatpush2.bf16.msra.mxu0 0
      %2370 = vmatprep.subr.bf16.mxu0 0
      %2371 = vmatpush2.bf16.msra.mxu0 0
      %2372 = vmatprep.subr.bf16.mxu0 0
      %2373 = vmatpush2.bf16.msra.mxu0 0
      %2374 = vmatprep.mubr.bf16.mxu0 0
      %2375 = vmatmul.mubr.bf16.gmra.mxu0 %v2269
      %v2376 = vpop.f32.mrf.mxu0
      %v2377 = vadd.f32 %v2292, %v2376
      %v2378 = vpop.f32.mrf.mxu0
      %v2379 = vpop.f32.mrf.mxu0
      %v2380 = vadd.f32 %v2292, %v2379
      %v2381 = vpop.f32.mrf.mxu0
      %2382 = vmatprep.mubr.bf16.mxu0 0
      %2383 = vmatmul.mubr.bf16.gmra.mxu0 %v2270
      %v2384 = vpop.f32.mrf.mxu0
      %v2385 = vadd.f32 %v2292, %v2384
      %v2386 = vpop.f32.mrf.mxu0
      %v2387 = vpop.f32.mrf.mxu0
      %v2388 = vpop.f32.mrf.mxu0
      %2389 = vdwg.mxu0
      %v2390 = vadd.f32 %v2184, %v2377
      %v2391 = vadd.f32 %v2185, %v2380
      %v2392 = vadd.f32 %v2186, %v2385
      %v2393 = vld [vmem:[%s14] sm:$0x1]
      %v2394 = vld [vmem:[%s15] sm:$0x1]
      %v2395 = vsel %vm617, %v2390, 0.0
      %2396 = vadd.xlane.f32.xlu0 %v2395
      %v2397 = vpop.xlane.xlu0 %2396
      %v2398 = vsel %vm617, %v2391, 0.0
      %2399 = vadd.xlane.f32.xlu0 %v2398
      %v2400 = vpop.xlane.xlu0 %2399
      %v2401 = vsel %vm617, %v2392, 0.0
      %2402 = vadd.xlane.f32.xlu0 %v2401
      %v2403 = vpop.xlane.xlu0 %2402
      %v2404 = vmul.f32 %v2397, %v2138
      %v2405 = vmul.f32 %v2400, %v2138
      %v2406 = vmul.f32 %v2403, %v2138
      %v2407 = vsub.f32 %v2390, %v2404
      %v2408 = vsub.f32 %v2391, %v2405
      %v2409 = vsub.f32 %v2392, %v2406
      %v2410 = vmul.f32 %v2407, %v2407
      %v2411 = vmul.f32 %v2408, %v2408
      %v2412 = vmul.f32 %v2409, %v2409
      %v2413 = vsel %vm617, %v2410, 0.0
      %2414 = vadd.xlane.f32.xlu0 %v2413
      %v2415 = vpop.xlane.xlu0 %2414
      %v2416 = vsel %vm617, %v2411, 0.0
      %2417 = vadd.xlane.f32.xlu0 %v2416
      %v2418 = vpop.xlane.xlu0 %2417
      %v2419 = vsel %vm617, %v2412, 0.0
      %2420 = vadd.xlane.f32.xlu0 %v2419
      %v2421 = vpop.xlane.xlu0 %2420
      %v2422 = vmul.f32 %v2415, %v2138
      %v2423 = vmul.f32 %v2418, %v2138
      %v2424 = vmul.f32 %v2421, %v2138
      %v2425 = vadd.f32 %v2422, 1e-05
      %v2426 = vadd.f32 %v2423, 1e-05
      %v2427 = vadd.f32 %v2424, 1e-05
      %v2428 = vrsqrt.pop %v2425
      %v2429 = vrsqrt.pop %v2426
      %v2430 = vrsqrt.pop %v2427
      %v2431 = vmul.f32 %v2407, %v2428
      %v2432 = vmul.f32 %v2408, %v2429
      %v2433 = vmul.f32 %v2409, %v2430
      %v2435 = vlaneseq
      %v2436 = vshrl.u32 %v2435, 7
      %v2437 = vsub.s32 0, %v2436
      %v2438 = vrot.slane %v2393, %v2437
      %v2440 = vmul.f32 %v2431, %v2438
      %v2441 = vmul.f32 %v2432, %v2438
      %v2442 = vmul.f32 %v2433, %v2438
      %v2444 = vlaneseq
      %v2445 = vshrl.u32 %v2444, 7
      %v2446 = vsub.s32 0, %v2445
      %v2447 = vrot.slane %v2394, %v2446
      %v2449 = vadd.f32 %v2440, %v2447
      %v2450 = vadd.f32 %v2441, %v2447
      %v2451 = vadd.f32 %v2442, %v2447
      %v2452 = vpack.c.bf16 %v2450, %v2449
      %v2453 = vpack.c.bf16 %v2451, %v2451
      %s2454 = scalar_lea.vmem %s4, 16
      %v2455 = vld [vmem:[%s2454] sm:$0xf]
      %v2456 = vld [vmem:[%s2454 + $0x4] sm:$0xf]
      %v2457 = vld [vmem:[%s2454 + $0x8] sm:$0xf]
      %v2458 = vld [vmem:[%s2454 + $0xc] sm:$0xf]
      %s2459 = scalar_lea.vmem %s5, 1
      %v2460 = vld [vmem:[%s2459] sm:$0x1]
      %v2462 = vlaneseq
      %v2463 = vshrl.u32 %v2462, 7
      %v2464 = vsub.s32 0, %v2463
      %v2465 = vrot.slane %v2460, %v2464
      %v2471 = vunpack.c.l.b16 %v2455
      %v2472 = vunpack.c.l.b16 %v2456
      %v2473 = vunpack.c.l.b16 %v2457
      %v2474 = vunpack.c.l.b16 %v2458
      %v2475 = vpack.c.b16 %v2472, %v2471
      %v2476 = vpack.c.b16 %v2474, %v2473
      %v2480 = vsel %vm617, %v2452, 0
      %v2483 = vsel %vm617, %v2453, 0
      %2485 = vmatprep.subr.bf16.mxu0 0
      %2486 = vmatpush1.bf16.msra.mxu0 0
      %2487 = vmatprep.subr.bf16.mxu0 0
      %2488 = vmatpush1.bf16.msra.mxu0 0
      %2489 = vmatprep.subr.bf16.mxu0 0
      %2490 = vmatpush1.bf16.msra.mxu0 0
      %2491 = vmatprep.subr.bf16.mxu0 0
      %2492 = vmatpush1.bf16.msra.mxu0 0
      %2493 = vmatprep.subr.bf16.mxu0 0
      %2494 = vmatpush1.bf16.msra.mxu0 0
      %2495 = vmatprep.subr.bf16.mxu0 0
      %2496 = vmatpush1.bf16.msra.mxu0 0
      %2497 = vmatprep.subr.bf16.mxu0 0
      %2498 = vmatpush1.bf16.msra.mxu0 %v2476
      %2499 = vmatprep.subr.bf16.mxu0 0
      %2500 = vmatpush1.bf16.msra.mxu0 %v2475
      %2501 = vmatprep.subr.bf16.mxu0 0
      %2502 = vmatpush2.bf16.msra.mxu0 0
      %2503 = vmatprep.subr.bf16.mxu0 0
      %2504 = vmatpush2.bf16.msra.mxu0 0
      %2505 = vmatprep.subr.bf16.mxu0 0
      %2506 = vmatpush2.bf16.msra.mxu0 0
      %2507 = vmatprep.subr.bf16.mxu0 0
      %2508 = vmatpush2.bf16.msra.mxu0 0
      %2509 = vmatprep.subr.bf16.mxu0 0
      %2510 = vmatpush2.bf16.msra.mxu0 0
      %2511 = vmatprep.subr.bf16.mxu0 0
      %2512 = vmatpush2.bf16.msra.mxu0 0
      %2513 = vmatprep.subr.bf16.mxu0 0
      %2514 = vmatpush2.bf16.msra.mxu0 0
      %2515 = vmatprep.subr.bf16.mxu0 0
      %2516 = vmatpush2.bf16.msra.mxu0 0
      %2517 = vmatprep.mubr.bf16.mxu0 0
      %2518 = vmatmul.mubr.bf16.gmra.mxu0 %v2480
      %v2519 = vpop.f32.mrf.mxu0
      %v2520 = vadd.f32 %v2465, %v2519
      %v2521 = vpop.f32.mrf.mxu0
      %v2522 = vpop.f32.mrf.mxu0
      %v2523 = vadd.f32 %v2465, %v2522
      %v2524 = vpop.f32.mrf.mxu0
      %2525 = vmatprep.mubr.bf16.mxu0 0
      %2526 = vmatmul.mubr.bf16.gmra.mxu0 %v2483
      %v2527 = vpop.f32.mrf.mxu0
      %v2528 = vadd.f32 %v2465, %v2527
      %v2529 = vpop.f32.mrf.mxu0
      %v2530 = vpop.f32.mrf.mxu0
      %v2531 = vpop.f32.mrf.mxu0
      %2532 = vdwg.mxu0
      %v2533 = vpack.c.bf16 %v2523, %v2520
      %v2534 = vpack.c.bf16 %v2528, %v2528
      %v2537 = vunpack.c.l.b16 %v2533
      %v2538 = vunpack.c.h.b16 %v2533
      %v2539 = vunpack.c.l.b16 %v2534
      %v2540 = vpack.c.b16 %v2537, %v2537
      %v2541 = vpack.c.b16 %v2538, %v2538
      %v2542 = vpack.c.b16 %v2539, %v2539
      %2543 = vrot.lane.b32.xlu0 %v2540, 96
      %v2544 = vpop.permute.xlu0 %2543
      %v2546 = vsel %vm684, %v2540, 0
      %v2549 = vsel %vm684, %v2544, 0
      %2551 = vmatprep.subr.bf16.mxu0 0
      %2552 = vmatpush1.bf16.xpose.msra.mxu0 0
      %2553 = vmatprep.subr.bf16.mxu0 0
      %2554 = vmatpush1.bf16.xpose.msra.mxu0 0
      %2555 = vmatprep.subr.bf16.mxu0 0
      %2556 = vmatpush1.bf16.xpose.msra.mxu0 0
      %2557 = vmatprep.subr.bf16.mxu0 0
      %2558 = vmatpush1.bf16.xpose.msra.mxu0 0
      %2559 = vmatprep.subr.bf16.mxu0 0
      %2560 = vmatpush1.bf16.xpose.msra.mxu0 0
      %2561 = vmatprep.subr.bf16.mxu0 0
      %2562 = vmatpush1.bf16.xpose.msra.mxu0 0
      %2563 = vmatprep.subr.bf16.mxu0 0
      %2564 = vmatpush1.bf16.xpose.msra.mxu0 0
      %2565 = vmatprep.subr.bf16.mxu0 0
      %2566 = vmatpush1.bf16.xpose.msra.mxu0 %v2549
      %2567 = vmatprep.subr.bf16.mxu0 0
      %2568 = vmatpush2.bf16.xpose.msra.mxu0 0
      %2569 = vmatprep.subr.bf16.mxu0 0
      %2570 = vmatpush2.bf16.xpose.msra.mxu0 0
      %2571 = vmatprep.subr.bf16.mxu0 0
      %2572 = vmatpush2.bf16.xpose.msra.mxu0 0
      %2573 = vmatprep.subr.bf16.mxu0 0
      %2574 = vmatpush2.bf16.xpose.msra.mxu0 0
      %2575 = vmatprep.subr.bf16.mxu0 0
      %2576 = vmatpush2.bf16.xpose.msra.mxu0 0
      %2577 = vmatprep.subr.bf16.mxu0 0
      %2578 = vmatpush2.bf16.xpose.msra.mxu0 0
      %2579 = vmatprep.subr.bf16.mxu0 0
      %2580 = vmatpush2.bf16.xpose.msra.mxu0 0
      %2581 = vmatprep.subr.bf16.mxu0 0
      %2582 = vmatpush2.bf16.xpose.msra.mxu0 0
      %2583 = vmatprep.mubr.bf16.mxu0 0
      %2584 = vmatmul.mubr.bf16.gmra.mxu0 %v2546
      %v2585 = vpop.f32.mrf.mxu0
      %v2586 = vadd.f32 0.0, %v2585
      %v2587 = vpop.f32.mrf.mxu0
      %v2588 = vpop.f32.mrf.mxu0
      %v2589 = vpop.f32.mrf.mxu0
      %2590 = vdwg.mxu0
      %2591 = vrot.lane.b32.xlu0 %v2541, 96
      %v2592 = vpop.permute.xlu0 %2591
      %v2594 = vsel %vm684, %v2541, 0
      %v2597 = vsel %vm684, %v2592, 0
      %2599 = vmatprep.subr.bf16.mxu0 0
      %2600 = vmatpush1.bf16.xpose.msra.mxu0 0
      %2601 = vmatprep.subr.bf16.mxu0 0
      %2602 = vmatpush1.bf16.xpose.msra.mxu0 0
      %2603 = vmatprep.subr.bf16.mxu0 0
      %2604 = vmatpush1.bf16.xpose.msra.mxu0 0
      %2605 = vmatprep.subr.bf16.mxu0 0
      %2606 = vmatpush1.bf16.xpose.msra.mxu0 0
      %2607 = vmatprep.subr.bf16.mxu0 0
      %2608 = vmatpush1.bf16.xpose.msra.mxu0 0
      %2609 = vmatprep.subr.bf16.mxu0 0
      %2610 = vmatpush1.bf16.xpose.msra.mxu0 0
      %2611 = vmatprep.subr.bf16.mxu0 0
      %2612 = vmatpush1.bf16.xpose.msra.mxu0 0
      %2613 = vmatprep.subr.bf16.mxu0 0
      %2614 = vmatpush1.bf16.xpose.msra.mxu0 %v2597
      %2615 = vmatprep.subr.bf16.mxu0 0
      %2616 = vmatpush2.bf16.xpose.msra.mxu0 0
      %2617 = vmatprep.subr.bf16.mxu0 0
      %2618 = vmatpush2.bf16.xpose.msra.mxu0 0
      %2619 = vmatprep.subr.bf16.mxu0 0
      %2620 = vmatpush2.bf16.xpose.msra.mxu0 0
      %2621 = vmatprep.subr.bf16.mxu0 0
      %2622 = vmatpush2.bf16.xpose.msra.mxu0 0
      %2623 = vmatprep.subr.bf16.mxu0 0
      %2624 = vmatpush2.bf16.xpose.msra.mxu0 0
      %2625 = vmatprep.subr.bf16.mxu0 0
      %2626 = vmatpush2.bf16.xpose.msra.mxu0 0
      %2627 = vmatprep.subr.bf16.mxu0 0
      %2628 = vmatpush2.bf16.xpose.msra.mxu0 0
      %2629 = vmatprep.subr.bf16.mxu0 0
      %2630 = vmatpush2.bf16.xpose.msra.mxu0 0
      %2631 = vmatprep.mubr.bf16.mxu0 0
      %2632 = vmatmul.mubr.bf16.gmra.mxu0 %v2594
      %v2633 = vpop.f32.mrf.mxu0
      %v2634 = vadd.f32 0.0, %v2633
      %v2635 = vpop.f32.mrf.mxu0
      %v2636 = vpop.f32.mrf.mxu0
      %v2637 = vpop.f32.mrf.mxu0
      %2638 = vdwg.mxu0
      %2639 = vrot.lane.b32.xlu0 %v2542, 96
      %v2640 = vpop.permute.xlu0 %2639
      %v2642 = vsel %vm684, %v2542, 0
      %v2645 = vsel %vm684, %v2640, 0
      %2647 = vmatprep.subr.bf16.mxu0 0
      %2648 = vmatpush1.bf16.xpose.msra.mxu0 0
      %2649 = vmatprep.subr.bf16.mxu0 0
      %2650 = vmatpush1.bf16.xpose.msra.mxu0 0
      %2651 = vmatprep.subr.bf16.mxu0 0
      %2652 = vmatpush1.bf16.xpose.msra.mxu0 0
      %2653 = vmatprep.subr.bf16.mxu0 0
      %2654 = vmatpush1.bf16.xpose.msra.mxu0 0
      %2655 = vmatprep.subr.bf16.mxu0 0
      %2656 = vmatpush1.bf16.xpose.msra.mxu0 0
      %2657 = vmatprep.subr.bf16.mxu0 0
      %2658 = vmatpush1.bf16.xpose.msra.mxu0 0
      %2659 = vmatprep.subr.bf16.mxu0 0
      %2660 = vmatpush1.bf16.xpose.msra.mxu0 0
      %2661 = vmatprep.subr.bf16.mxu0 0
      %2662 = vmatpush1.bf16.xpose.msra.mxu0 %v2645
      %2663 = vmatprep.subr.bf16.mxu0 0
      %2664 = vmatpush2.bf16.xpose.msra.mxu0 0
      %2665 = vmatprep.subr.bf16.mxu0 0
      %2666 = vmatpush2.bf16.xpose.msra.mxu0 0
      %2667 = vmatprep.subr.bf16.mxu0 0
      %2668 = vmatpush2.bf16.xpose.msra.mxu0 0
      %2669 = vmatprep.subr.bf16.mxu0 0
      %2670 = vmatpush2.bf16.xpose.msra.mxu0 0
      %2671 = vmatprep.subr.bf16.mxu0 0
      %2672 = vmatpush2.bf16.xpose.msra.mxu0 0
      %2673 = vmatprep.subr.bf16.mxu0 0
      %2674 = vmatpush2.bf16.xpose.msra.mxu0 0
      %2675 = vmatprep.subr.bf16.mxu0 0
      %2676 = vmatpush2.bf16.xpose.msra.mxu0 0
      %2677 = vmatprep.subr.bf16.mxu0 0
      %2678 = vmatpush2.bf16.xpose.msra.mxu0 0
      %2679 = vmatprep.mubr.bf16.mxu0 0
      %2680 = vmatmul.mubr.bf16.gmra.mxu0 %v2642
      %v2681 = vpop.f32.mrf.mxu0
      %v2682 = vadd.f32 0.0, %v2681
      %v2683 = vpop.f32.mrf.mxu0
      %v2684 = vpop.f32.mrf.mxu0
      %v2685 = vpop.f32.mrf.mxu0
      %2686 = vdwg.mxu0
      %v2687 = vsel %vm684, %v2586, -inf
      %2688 = vmax.xlane.f32.xlu0 %v2687
      %v2689 = vpop.xlane.xlu0 %2688
      %v2690 = vsel %vm684, %v2634, -inf
      %2691 = vmax.xlane.f32.xlu0 %v2690
      %v2692 = vpop.xlane.xlu0 %2691
      %v2693 = vsel %vm684, %v2682, -inf
      %2694 = vmax.xlane.f32.xlu0 %v2693
      %v2695 = vpop.xlane.xlu0 %2694
      %v2696 = vsub.f32 %v2586, %v2689
      %v2697 = vsub.f32 %v2634, %v2692
      %v2698 = vsub.f32 %v2682, %v2695
      %v2699 = vmul.f32 %v2696, 1.442695
      %v2700 = vpow.pop %v2699
      %v2701 = vmul.f32 %v2697, 1.442695
      %v2702 = vpow.pop %v2701
      %v2703 = vmul.f32 %v2698, 1.442695
      %v2704 = vpow.pop %v2703
      %v2705 = vsel %vm684, %v2700, 0.0
      %2706 = vadd.xlane.f32.xlu0 %v2705
      %v2707 = vpop.xlane.xlu0 %2706
      %v2708 = vsel %vm684, %v2702, 0.0
      %2709 = vadd.xlane.f32.xlu0 %v2708
      %v2710 = vpop.xlane.xlu0 %2709
      %v2711 = vsel %vm684, %v2704, 0.0
      %2712 = vadd.xlane.f32.xlu0 %v2711
      %v2713 = vpop.xlane.xlu0 %2712
      %v2714 = vrcp.pop %v2707
      %v2715 = vrcp.pop %v2710
      %v2716 = vrcp.pop %v2713
      %v2717 = vpack.c.bf16 %v2700, %v2700
      %v2718 = vpack.c.bf16 %v2702, %v2702
      %v2719 = vpack.c.bf16 %v2704, %v2704
      %2720 = vrot.lane.b32.xlu0 %v2540, 64
      %v2721 = vpop.permute.xlu0 %2720
      %v2723 = vsel %vm684, %v2717, 0
      %v2726 = vsel %vm865, %v2721, 0
      %2728 = vmatprep.subr.bf16.mxu0 0
      %2729 = vmatpush1.bf16.msra.mxu0 0
      %2730 = vmatprep.subr.bf16.mxu0 0
      %2731 = vmatpush1.bf16.msra.mxu0 0
      %2732 = vmatprep.subr.bf16.mxu0 0
      %2733 = vmatpush1.bf16.msra.mxu0 0
      %2734 = vmatprep.subr.bf16.mxu0 0
      %2735 = vmatpush1.bf16.msra.mxu0 0
      %2736 = vmatprep.subr.bf16.mxu0 0
      %2737 = vmatpush1.bf16.msra.mxu0 0
      %2738 = vmatprep.subr.bf16.mxu0 0
      %2739 = vmatpush1.bf16.msra.mxu0 0
      %2740 = vmatprep.subr.bf16.mxu0 0
      %2741 = vmatpush1.bf16.msra.mxu0 0
      %2742 = vmatprep.subr.bf16.mxu0 0
      %2743 = vmatpush1.bf16.msra.mxu0 %v2726
      %2744 = vmatprep.subr.bf16.mxu0 0
      %2745 = vmatpush2.bf16.msra.mxu0 0
      %2746 = vmatprep.subr.bf16.mxu0 0
      %2747 = vmatpush2.bf16.msra.mxu0 0
      %2748 = vmatprep.subr.bf16.mxu0 0
      %2749 = vmatpush2.bf16.msra.mxu0 0
      %2750 = vmatprep.subr.bf16.mxu0 0
      %2751 = vmatpush2.bf16.msra.mxu0 0
      %2752 = vmatprep.subr.bf16.mxu0 0
      %2753 = vmatpush2.bf16.msra.mxu0 0
      %2754 = vmatprep.subr.bf16.mxu0 0
      %2755 = vmatpush2.bf16.msra.mxu0 0
      %2756 = vmatprep.subr.bf16.mxu0 0
      %2757 = vmatpush2.bf16.msra.mxu0 0
      %2758 = vmatprep.subr.bf16.mxu0 0
      %2759 = vmatpush2.bf16.msra.mxu0 0
      %2760 = vmatprep.mubr.bf16.mxu0 0
      %2761 = vmatmul.mubr.bf16.gmra.mxu0 %v2723
      %v2762 = vpop.f32.mrf.mxu0
      %v2763 = vadd.f32 0.0, %v2762
      %v2764 = vpop.f32.mrf.mxu0
      %v2765 = vpop.f32.mrf.mxu0
      %v2766 = vpop.f32.mrf.mxu0
      %2767 = vdwg.mxu0
      %2768 = vrot.lane.b32.xlu0 %v2541, 64
      %v2769 = vpop.permute.xlu0 %2768
      %v2771 = vsel %vm684, %v2718, 0
      %v2774 = vsel %vm865, %v2769, 0
      %2776 = vmatprep.subr.bf16.mxu0 0
      %2777 = vmatpush1.bf16.msra.mxu0 0
      %2778 = vmatprep.subr.bf16.mxu0 0
      %2779 = vmatpush1.bf16.msra.mxu0 0
      %2780 = vmatprep.subr.bf16.mxu0 0
      %2781 = vmatpush1.bf16.msra.mxu0 0
      %2782 = vmatprep.subr.bf16.mxu0 0
      %2783 = vmatpush1.bf16.msra.mxu0 0
      %2784 = vmatprep.subr.bf16.mxu0 0
      %2785 = vmatpush1.bf16.msra.mxu0 0
      %2786 = vmatprep.subr.bf16.mxu0 0
      %2787 = vmatpush1.bf16.msra.mxu0 0
      %2788 = vmatprep.subr.bf16.mxu0 0
      %2789 = vmatpush1.bf16.msra.mxu0 0
      %2790 = vmatprep.subr.bf16.mxu0 0
      %2791 = vmatpush1.bf16.msra.mxu0 %v2774
      %2792 = vmatprep.subr.bf16.mxu0 0
      %2793 = vmatpush2.bf16.msra.mxu0 0
      %2794 = vmatprep.subr.bf16.mxu0 0
      %2795 = vmatpush2.bf16.msra.mxu0 0
      %2796 = vmatprep.subr.bf16.mxu0 0
      %2797 = vmatpush2.bf16.msra.mxu0 0
      %2798 = vmatprep.subr.bf16.mxu0 0
      %2799 = vmatpush2.bf16.msra.mxu0 0
      %2800 = vmatprep.subr.bf16.mxu0 0
      %2801 = vmatpush2.bf16.msra.mxu0 0
      %2802 = vmatprep.subr.bf16.mxu0 0
      %2803 = vmatpush2.bf16.msra.mxu0 0
      %2804 = vmatprep.subr.bf16.mxu0 0
      %2805 = vmatpush2.bf16.msra.mxu0 0
      %2806 = vmatprep.subr.bf16.mxu0 0
      %2807 = vmatpush2.bf16.msra.mxu0 0
      %2808 = vmatprep.mubr.bf16.mxu0 0
      %2809 = vmatmul.mubr.bf16.gmra.mxu0 %v2771
      %v2810 = vpop.f32.mrf.mxu0
      %v2811 = vadd.f32 0.0, %v2810
      %v2812 = vpop.f32.mrf.mxu0
      %v2813 = vpop.f32.mrf.mxu0
      %v2814 = vpop.f32.mrf.mxu0
      %2815 = vdwg.mxu0
      %2816 = vrot.lane.b32.xlu0 %v2542, 64
      %v2817 = vpop.permute.xlu0 %2816
      %v2819 = vsel %vm684, %v2719, 0
      %v2822 = vsel %vm865, %v2817, 0
      %2824 = vmatprep.subr.bf16.mxu0 0
      %2825 = vmatpush1.bf16.msra.mxu0 0
      %2826 = vmatprep.subr.bf16.mxu0 0
      %2827 = vmatpush1.bf16.msra.mxu0 0
      %2828 = vmatprep.subr.bf16.mxu0 0
      %2829 = vmatpush1.bf16.msra.mxu0 0
      %2830 = vmatprep.subr.bf16.mxu0 0
      %2831 = vmatpush1.bf16.msra.mxu0 0
      %2832 = vmatprep.subr.bf16.mxu0 0
      %2833 = vmatpush1.bf16.msra.mxu0 0
      %2834 = vmatprep.subr.bf16.mxu0 0
      %2835 = vmatpush1.bf16.msra.mxu0 0
      %2836 = vmatprep.subr.bf16.mxu0 0
      %2837 = vmatpush1.bf16.msra.mxu0 0
      %2838 = vmatprep.subr.bf16.mxu0 0
      %2839 = vmatpush1.bf16.msra.mxu0 %v2822
      %2840 = vmatprep.subr.bf16.mxu0 0
      %2841 = vmatpush2.bf16.msra.mxu0 0
      %2842 = vmatprep.subr.bf16.mxu0 0
      %2843 = vmatpush2.bf16.msra.mxu0 0
      %2844 = vmatprep.subr.bf16.mxu0 0
      %2845 = vmatpush2.bf16.msra.mxu0 0
      %2846 = vmatprep.subr.bf16.mxu0 0
      %2847 = vmatpush2.bf16.msra.mxu0 0
      %2848 = vmatprep.subr.bf16.mxu0 0
      %2849 = vmatpush2.bf16.msra.mxu0 0
      %2850 = vmatprep.subr.bf16.mxu0 0
      %2851 = vmatpush2.bf16.msra.mxu0 0
      %2852 = vmatprep.subr.bf16.mxu0 0
      %2853 = vmatpush2.bf16.msra.mxu0 0
      %2854 = vmatprep.subr.bf16.mxu0 0
      %2855 = vmatpush2.bf16.msra.mxu0 0
      %2856 = vmatprep.mubr.bf16.mxu0 0
      %2857 = vmatmul.mubr.bf16.gmra.mxu0 %v2819
      %v2858 = vpop.f32.mrf.mxu0
      %v2859 = vadd.f32 0.0, %v2858
      %v2860 = vpop.f32.mrf.mxu0
      %v2861 = vpop.f32.mrf.mxu0
      %v2862 = vpop.f32.mrf.mxu0
      %2863 = vdwg.mxu0
      %v2864 = vmul.f32 %v2763, %v2714
      %v2865 = vmul.f32 %v2811, %v2715
      %v2866 = vmul.f32 %v2859, %v2716
      %2867 = vrot.lane.b32.xlu0 %v2540, 120
      %v2868 = vpop.permute.xlu0 %2867
      %2869 = vrot.lane.b32.xlu0 %v2540, 88
      %v2870 = vpop.permute.xlu0 %2869
      %v2872 = vsel %vm684, %v2868, 0
      %v2875 = vsel %vm684, %v2870, 0
      %2877 = vmatprep.subr.bf16.mxu0 0
      %2878 = vmatpush1.bf16.xpose.msra.mxu0 0
      %2879 = vmatprep.subr.bf16.mxu0 0
      %2880 = vmatpush1.bf16.xpose.msra.mxu0 0
      %2881 = vmatprep.subr.bf16.mxu0 0
      %2882 = vmatpush1.bf16.xpose.msra.mxu0 0
      %2883 = vmatprep.subr.bf16.mxu0 0
      %2884 = vmatpush1.bf16.xpose.msra.mxu0 0
      %2885 = vmatprep.subr.bf16.mxu0 0
      %2886 = vmatpush1.bf16.xpose.msra.mxu0 0
      %2887 = vmatprep.subr.bf16.mxu0 0
      %2888 = vmatpush1.bf16.xpose.msra.mxu0 0
      %2889 = vmatprep.subr.bf16.mxu0 0
      %2890 = vmatpush1.bf16.xpose.msra.mxu0 0
      %2891 = vmatprep.subr.bf16.mxu0 0
      %2892 = vmatpush1.bf16.xpose.msra.mxu0 %v2875
      %2893 = vmatprep.subr.bf16.mxu0 0
      %2894 = vmatpush2.bf16.xpose.msra.mxu0 0
      %2895 = vmatprep.subr.bf16.mxu0 0
      %2896 = vmatpush2.bf16.xpose.msra.mxu0 0
      %2897 = vmatprep.subr.bf16.mxu0 0
      %2898 = vmatpush2.bf16.xpose.msra.mxu0 0
      %2899 = vmatprep.subr.bf16.mxu0 0
      %2900 = vmatpush2.bf16.xpose.msra.mxu0 0
      %2901 = vmatprep.subr.bf16.mxu0 0
      %2902 = vmatpush2.bf16.xpose.msra.mxu0 0
      %2903 = vmatprep.subr.bf16.mxu0 0
      %2904 = vmatpush2.bf16.xpose.msra.mxu0 0
      %2905 = vmatprep.subr.bf16.mxu0 0
      %2906 = vmatpush2.bf16.xpose.msra.mxu0 0
      %2907 = vmatprep.subr.bf16.mxu0 0
      %2908 = vmatpush2.bf16.xpose.msra.mxu0 0
      %2909 = vmatprep.mubr.bf16.mxu0 0
      %2910 = vmatmul.mubr.bf16.gmra.mxu0 %v2872
      %v2911 = vpop.f32.mrf.mxu0
      %v2912 = vadd.f32 0.0, %v2911
      %v2913 = vpop.f32.mrf.mxu0
      %v2914 = vpop.f32.mrf.mxu0
      %v2915 = vpop.f32.mrf.mxu0
      %2916 = vdwg.mxu0
      %2917 = vrot.lane.b32.xlu0 %v2541, 120
      %v2918 = vpop.permute.xlu0 %2917
      %2919 = vrot.lane.b32.xlu0 %v2541, 88
      %v2920 = vpop.permute.xlu0 %2919
      %v2922 = vsel %vm684, %v2918, 0
      %v2925 = vsel %vm684, %v2920, 0
      %2927 = vmatprep.subr.bf16.mxu0 0
      %2928 = vmatpush1.bf16.xpose.msra.mxu0 0
      %2929 = vmatprep.subr.bf16.mxu0 0
      %2930 = vmatpush1.bf16.xpose.msra.mxu0 0
      %2931 = vmatprep.subr.bf16.mxu0 0
      %2932 = vmatpush1.bf16.xpose.msra.mxu0 0
      %2933 = vmatprep.subr.bf16.mxu0 0
      %2934 = vmatpush1.bf16.xpose.msra.mxu0 0
      %2935 = vmatprep.subr.bf16.mxu0 0
      %2936 = vmatpush1.bf16.xpose.msra.mxu0 0
      %2937 = vmatprep.subr.bf16.mxu0 0
      %2938 = vmatpush1.bf16.xpose.msra.mxu0 0
      %2939 = vmatprep.subr.bf16.mxu0 0
      %2940 = vmatpush1.bf16.xpose.msra.mxu0 0
      %2941 = vmatprep.subr.bf16.mxu0 0
      %2942 = vmatpush1.bf16.xpose.msra.mxu0 %v2925
      %2943 = vmatprep.subr.bf16.mxu0 0
      %2944 = vmatpush2.bf16.xpose.msra.mxu0 0
      %2945 = vmatprep.subr.bf16.mxu0 0
      %2946 = vmatpush2.bf16.xpose.msra.mxu0 0
      %2947 = vmatprep.subr.bf16.mxu0 0
      %2948 = vmatpush2.bf16.xpose.msra.mxu0 0
      %2949 = vmatprep.subr.bf16.mxu0 0
      %2950 = vmatpush2.bf16.xpose.msra.mxu0 0
      %2951 = vmatprep.subr.bf16.mxu0 0
      %2952 = vmatpush2.bf16.xpose.msra.mxu0 0
      %2953 = vmatprep.subr.bf16.mxu0 0
      %2954 = vmatpush2.bf16.xpose.msra.mxu0 0
      %2955 = vmatprep.subr.bf16.mxu0 0
      %2956 = vmatpush2.bf16.xpose.msra.mxu0 0
      %2957 = vmatprep.subr.bf16.mxu0 0
      %2958 = vmatpush2.bf16.xpose.msra.mxu0 0
      %2959 = vmatprep.mubr.bf16.mxu0 0
      %2960 = vmatmul.mubr.bf16.gmra.mxu0 %v2922
      %v2961 = vpop.f32.mrf.mxu0
      %v2962 = vadd.f32 0.0, %v2961
      %v2963 = vpop.f32.mrf.mxu0
      %v2964 = vpop.f32.mrf.mxu0
      %v2965 = vpop.f32.mrf.mxu0
      %2966 = vdwg.mxu0
      %2967 = vrot.lane.b32.xlu0 %v2542, 120
      %v2968 = vpop.permute.xlu0 %2967
      %2969 = vrot.lane.b32.xlu0 %v2542, 88
      %v2970 = vpop.permute.xlu0 %2969
      %v2972 = vsel %vm684, %v2968, 0
      %v2975 = vsel %vm684, %v2970, 0
      %2977 = vmatprep.subr.bf16.mxu0 0
      %2978 = vmatpush1.bf16.xpose.msra.mxu0 0
      %2979 = vmatprep.subr.bf16.mxu0 0
      %2980 = vmatpush1.bf16.xpose.msra.mxu0 0
      %2981 = vmatprep.subr.bf16.mxu0 0
      %2982 = vmatpush1.bf16.xpose.msra.mxu0 0
      %2983 = vmatprep.subr.bf16.mxu0 0
      %2984 = vmatpush1.bf16.xpose.msra.mxu0 0
      %2985 = vmatprep.subr.bf16.mxu0 0
      %2986 = vmatpush1.bf16.xpose.msra.mxu0 0
      %2987 = vmatprep.subr.bf16.mxu0 0
      %2988 = vmatpush1.bf16.xpose.msra.mxu0 0
      %2989 = vmatprep.subr.bf16.mxu0 0
      %2990 = vmatpush1.bf16.xpose.msra.mxu0 0
      %2991 = vmatprep.subr.bf16.mxu0 0
      %2992 = vmatpush1.bf16.xpose.msra.mxu0 %v2975
      %2993 = vmatprep.subr.bf16.mxu0 0
      %2994 = vmatpush2.bf16.xpose.msra.mxu0 0
      %2995 = vmatprep.subr.bf16.mxu0 0
      %2996 = vmatpush2.bf16.xpose.msra.mxu0 0
      %2997 = vmatprep.subr.bf16.mxu0 0
      %2998 = vmatpush2.bf16.xpose.msra.mxu0 0
      %2999 = vmatprep.subr.bf16.mxu0 0
      %3000 = vmatpush2.bf16.xpose.msra.mxu0 0
      %3001 = vmatprep.subr.bf16.mxu0 0
      %3002 = vmatpush2.bf16.xpose.msra.mxu0 0
      %3003 = vmatprep.subr.bf16.mxu0 0
      %3004 = vmatpush2.bf16.xpose.msra.mxu0 0
      %3005 = vmatprep.subr.bf16.mxu0 0
      %3006 = vmatpush2.bf16.xpose.msra.mxu0 0
      %3007 = vmatprep.subr.bf16.mxu0 0
      %3008 = vmatpush2.bf16.xpose.msra.mxu0 0
      %3009 = vmatprep.mubr.bf16.mxu0 0
      %3010 = vmatmul.mubr.bf16.gmra.mxu0 %v2972
      %v3011 = vpop.f32.mrf.mxu0
      %v3012 = vadd.f32 0.0, %v3011
      %v3013 = vpop.f32.mrf.mxu0
      %v3014 = vpop.f32.mrf.mxu0
      %v3015 = vpop.f32.mrf.mxu0
      %3016 = vdwg.mxu0
      %v3017 = vsel %vm684, %v2912, -inf
      %3018 = vmax.xlane.f32.xlu0 %v3017
      %v3019 = vpop.xlane.xlu0 %3018
      %v3020 = vsel %vm684, %v2962, -inf
      %3021 = vmax.xlane.f32.xlu0 %v3020
      %v3022 = vpop.xlane.xlu0 %3021
      %v3023 = vsel %vm684, %v3012, -inf
      %3024 = vmax.xlane.f32.xlu0 %v3023
      %v3025 = vpop.xlane.xlu0 %3024
      %v3026 = vsub.f32 %v2912, %v3019
      %v3027 = vsub.f32 %v2962, %v3022
      %v3028 = vsub.f32 %v3012, %v3025
      %v3029 = vmul.f32 %v3026, 1.442695
      %v3030 = vpow.pop %v3029
      %v3031 = vmul.f32 %v3027, 1.442695
      %v3032 = vpow.pop %v3031
      %v3033 = vmul.f32 %v3028, 1.442695
      %v3034 = vpow.pop %v3033
      %v3035 = vsel %vm684, %v3030, 0.0
      %3036 = vadd.xlane.f32.xlu0 %v3035
      %v3037 = vpop.xlane.xlu0 %3036
      %v3038 = vsel %vm684, %v3032, 0.0
      %3039 = vadd.xlane.f32.xlu0 %v3038
      %v3040 = vpop.xlane.xlu0 %3039
      %v3041 = vsel %vm684, %v3034, 0.0
      %3042 = vadd.xlane.f32.xlu0 %v3041
      %v3043 = vpop.xlane.xlu0 %3042
      %v3044 = vrcp.pop %v3037
      %v3045 = vrcp.pop %v3040
      %v3046 = vrcp.pop %v3043
      %v3047 = vpack.c.bf16 %v3030, %v3030
      %v3048 = vpack.c.bf16 %v3032, %v3032
      %v3049 = vpack.c.bf16 %v3034, %v3034
      %3050 = vrot.lane.b32.xlu0 %v2540, 56
      %v3051 = vpop.permute.xlu0 %3050
      %v3053 = vsel %vm684, %v3047, 0
      %v3056 = vsel %vm865, %v3051, 0
      %3058 = vmatprep.subr.bf16.mxu0 0
      %3059 = vmatpush1.bf16.msra.mxu0 0
      %3060 = vmatprep.subr.bf16.mxu0 0
      %3061 = vmatpush1.bf16.msra.mxu0 0
      %3062 = vmatprep.subr.bf16.mxu0 0
      %3063 = vmatpush1.bf16.msra.mxu0 0
      %3064 = vmatprep.subr.bf16.mxu0 0
      %3065 = vmatpush1.bf16.msra.mxu0 0
      %3066 = vmatprep.subr.bf16.mxu0 0
      %3067 = vmatpush1.bf16.msra.mxu0 0
      %3068 = vmatprep.subr.bf16.mxu0 0
      %3069 = vmatpush1.bf16.msra.mxu0 0
      %3070 = vmatprep.subr.bf16.mxu0 0
      %3071 = vmatpush1.bf16.msra.mxu0 0
      %3072 = vmatprep.subr.bf16.mxu0 0
      %3073 = vmatpush1.bf16.msra.mxu0 %v3056
      %3074 = vmatprep.subr.bf16.mxu0 0
      %3075 = vmatpush2.bf16.msra.mxu0 0
      %3076 = vmatprep.subr.bf16.mxu0 0
      %3077 = vmatpush2.bf16.msra.mxu0 0
      %3078 = vmatprep.subr.bf16.mxu0 0
      %3079 = vmatpush2.bf16.msra.mxu0 0
      %3080 = vmatprep.subr.bf16.mxu0 0
      %3081 = vmatpush2.bf16.msra.mxu0 0
      %3082 = vmatprep.subr.bf16.mxu0 0
      %3083 = vmatpush2.bf16.msra.mxu0 0
      %3084 = vmatprep.subr.bf16.mxu0 0
      %3085 = vmatpush2.bf16.msra.mxu0 0
      %3086 = vmatprep.subr.bf16.mxu0 0
      %3087 = vmatpush2.bf16.msra.mxu0 0
      %3088 = vmatprep.subr.bf16.mxu0 0
      %3089 = vmatpush2.bf16.msra.mxu0 0
      %3090 = vmatprep.mubr.bf16.mxu0 0
      %3091 = vmatmul.mubr.bf16.gmra.mxu0 %v3053
      %v3092 = vpop.f32.mrf.mxu0
      %v3093 = vadd.f32 0.0, %v3092
      %v3094 = vpop.f32.mrf.mxu0
      %v3095 = vpop.f32.mrf.mxu0
      %v3096 = vpop.f32.mrf.mxu0
      %3097 = vdwg.mxu0
      %3098 = vrot.lane.b32.xlu0 %v2541, 56
      %v3099 = vpop.permute.xlu0 %3098
      %v3101 = vsel %vm684, %v3048, 0
      %v3104 = vsel %vm865, %v3099, 0
      %3106 = vmatprep.subr.bf16.mxu0 0
      %3107 = vmatpush1.bf16.msra.mxu0 0
      %3108 = vmatprep.subr.bf16.mxu0 0
      %3109 = vmatpush1.bf16.msra.mxu0 0
      %3110 = vmatprep.subr.bf16.mxu0 0
      %3111 = vmatpush1.bf16.msra.mxu0 0
      %3112 = vmatprep.subr.bf16.mxu0 0
      %3113 = vmatpush1.bf16.msra.mxu0 0
      %3114 = vmatprep.subr.bf16.mxu0 0
      %3115 = vmatpush1.bf16.msra.mxu0 0
      %3116 = vmatprep.subr.bf16.mxu0 0
      %3117 = vmatpush1.bf16.msra.mxu0 0
      %3118 = vmatprep.subr.bf16.mxu0 0
      %3119 = vmatpush1.bf16.msra.mxu0 0
      %3120 = vmatprep.subr.bf16.mxu0 0
      %3121 = vmatpush1.bf16.msra.mxu0 %v3104
      %3122 = vmatprep.subr.bf16.mxu0 0
      %3123 = vmatpush2.bf16.msra.mxu0 0
      %3124 = vmatprep.subr.bf16.mxu0 0
      %3125 = vmatpush2.bf16.msra.mxu0 0
      %3126 = vmatprep.subr.bf16.mxu0 0
      %3127 = vmatpush2.bf16.msra.mxu0 0
      %3128 = vmatprep.subr.bf16.mxu0 0
      %3129 = vmatpush2.bf16.msra.mxu0 0
      %3130 = vmatprep.subr.bf16.mxu0 0
      %3131 = vmatpush2.bf16.msra.mxu0 0
      %3132 = vmatprep.subr.bf16.mxu0 0
      %3133 = vmatpush2.bf16.msra.mxu0 0
      %3134 = vmatprep.subr.bf16.mxu0 0
      %3135 = vmatpush2.bf16.msra.mxu0 0
      %3136 = vmatprep.subr.bf16.mxu0 0
      %3137 = vmatpush2.bf16.msra.mxu0 0
      %3138 = vmatprep.mubr.bf16.mxu0 0
      %3139 = vmatmul.mubr.bf16.gmra.mxu0 %v3101
      %v3140 = vpop.f32.mrf.mxu0
      %v3141 = vadd.f32 0.0, %v3140
      %v3142 = vpop.f32.mrf.mxu0
      %v3143 = vpop.f32.mrf.mxu0
      %v3144 = vpop.f32.mrf.mxu0
      %3145 = vdwg.mxu0
      %3146 = vrot.lane.b32.xlu0 %v2542, 56
      %v3147 = vpop.permute.xlu0 %3146
      %v3149 = vsel %vm684, %v3049, 0
      %v3152 = vsel %vm865, %v3147, 0
      %3154 = vmatprep.subr.bf16.mxu0 0
      %3155 = vmatpush1.bf16.msra.mxu0 0
      %3156 = vmatprep.subr.bf16.mxu0 0
      %3157 = vmatpush1.bf16.msra.mxu0 0
      %3158 = vmatprep.subr.bf16.mxu0 0
      %3159 = vmatpush1.bf16.msra.mxu0 0
      %3160 = vmatprep.subr.bf16.mxu0 0
      %3161 = vmatpush1.bf16.msra.mxu0 0
      %3162 = vmatprep.subr.bf16.mxu0 0
      %3163 = vmatpush1.bf16.msra.mxu0 0
      %3164 = vmatprep.subr.bf16.mxu0 0
      %3165 = vmatpush1.bf16.msra.mxu0 0
      %3166 = vmatprep.subr.bf16.mxu0 0
      %3167 = vmatpush1.bf16.msra.mxu0 0
      %3168 = vmatprep.subr.bf16.mxu0 0
      %3169 = vmatpush1.bf16.msra.mxu0 %v3152
      %3170 = vmatprep.subr.bf16.mxu0 0
      %3171 = vmatpush2.bf16.msra.mxu0 0
      %3172 = vmatprep.subr.bf16.mxu0 0
      %3173 = vmatpush2.bf16.msra.mxu0 0
      %3174 = vmatprep.subr.bf16.mxu0 0
      %3175 = vmatpush2.bf16.msra.mxu0 0
      %3176 = vmatprep.subr.bf16.mxu0 0
      %3177 = vmatpush2.bf16.msra.mxu0 0
      %3178 = vmatprep.subr.bf16.mxu0 0
      %3179 = vmatpush2.bf16.msra.mxu0 0
      %3180 = vmatprep.subr.bf16.mxu0 0
      %3181 = vmatpush2.bf16.msra.mxu0 0
      %3182 = vmatprep.subr.bf16.mxu0 0
      %3183 = vmatpush2.bf16.msra.mxu0 0
      %3184 = vmatprep.subr.bf16.mxu0 0
      %3185 = vmatpush2.bf16.msra.mxu0 0
      %3186 = vmatprep.mubr.bf16.mxu0 0
      %3187 = vmatmul.mubr.bf16.gmra.mxu0 %v3149
      %v3188 = vpop.f32.mrf.mxu0
      %v3189 = vadd.f32 0.0, %v3188
      %v3190 = vpop.f32.mrf.mxu0
      %v3191 = vpop.f32.mrf.mxu0
      %v3192 = vpop.f32.mrf.mxu0
      %3193 = vdwg.mxu0
      %v3194 = vmul.f32 %v3093, %v3044
      %v3195 = vmul.f32 %v3141, %v3045
      %v3196 = vmul.f32 %v3189, %v3046
      %3197 = vrot.lane.b32.xlu0 %v2540, 112
      %v3198 = vpop.permute.xlu0 %3197
      %3199 = vrot.lane.b32.xlu0 %v2540, 80
      %v3200 = vpop.permute.xlu0 %3199
      %v3202 = vsel %vm684, %v3198, 0
      %v3205 = vsel %vm684, %v3200, 0
      %3207 = vmatprep.subr.bf16.mxu0 0
      %3208 = vmatpush1.bf16.xpose.msra.mxu0 0
      %3209 = vmatprep.subr.bf16.mxu0 0
      %3210 = vmatpush1.bf16.xpose.msra.mxu0 0
      %3211 = vmatprep.subr.bf16.mxu0 0
      %3212 = vmatpush1.bf16.xpose.msra.mxu0 0
      %3213 = vmatprep.subr.bf16.mxu0 0
      %3214 = vmatpush1.bf16.xpose.msra.mxu0 0
      %3215 = vmatprep.subr.bf16.mxu0 0
      %3216 = vmatpush1.bf16.xpose.msra.mxu0 0
      %3217 = vmatprep.subr.bf16.mxu0 0
      %3218 = vmatpush1.bf16.xpose.msra.mxu0 0
      %3219 = vmatprep.subr.bf16.mxu0 0
      %3220 = vmatpush1.bf16.xpose.msra.mxu0 0
      %3221 = vmatprep.subr.bf16.mxu0 0
      %3222 = vmatpush1.bf16.xpose.msra.mxu0 %v3205
      %3223 = vmatprep.subr.bf16.mxu0 0
      %3224 = vmatpush2.bf16.xpose.msra.mxu0 0
      %3225 = vmatprep.subr.bf16.mxu0 0
      %3226 = vmatpush2.bf16.xpose.msra.mxu0 0
      %3227 = vmatprep.subr.bf16.mxu0 0
      %3228 = vmatpush2.bf16.xpose.msra.mxu0 0
      %3229 = vmatprep.subr.bf16.mxu0 0
      %3230 = vmatpush2.bf16.xpose.msra.mxu0 0
      %3231 = vmatprep.subr.bf16.mxu0 0
      %3232 = vmatpush2.bf16.xpose.msra.mxu0 0
      %3233 = vmatprep.subr.bf16.mxu0 0
      %3234 = vmatpush2.bf16.xpose.msra.mxu0 0
      %3235 = vmatprep.subr.bf16.mxu0 0
      %3236 = vmatpush2.bf16.xpose.msra.mxu0 0
      %3237 = vmatprep.subr.bf16.mxu0 0
      %3238 = vmatpush2.bf16.xpose.msra.mxu0 0
      %3239 = vmatprep.mubr.bf16.mxu0 0
      %3240 = vmatmul.mubr.bf16.gmra.mxu0 %v3202
      %v3241 = vpop.f32.mrf.mxu0
      %v3242 = vadd.f32 0.0, %v3241
      %v3243 = vpop.f32.mrf.mxu0
      %v3244 = vpop.f32.mrf.mxu0
      %v3245 = vpop.f32.mrf.mxu0
      %3246 = vdwg.mxu0
      %3247 = vrot.lane.b32.xlu0 %v2541, 112
      %v3248 = vpop.permute.xlu0 %3247
      %3249 = vrot.lane.b32.xlu0 %v2541, 80
      %v3250 = vpop.permute.xlu0 %3249
      %v3252 = vsel %vm684, %v3248, 0
      %v3255 = vsel %vm684, %v3250, 0
      %3257 = vmatprep.subr.bf16.mxu0 0
      %3258 = vmatpush1.bf16.xpose.msra.mxu0 0
      %3259 = vmatprep.subr.bf16.mxu0 0
      %3260 = vmatpush1.bf16.xpose.msra.mxu0 0
      %3261 = vmatprep.subr.bf16.mxu0 0
      %3262 = vmatpush1.bf16.xpose.msra.mxu0 0
      %3263 = vmatprep.subr.bf16.mxu0 0
      %3264 = vmatpush1.bf16.xpose.msra.mxu0 0
      %3265 = vmatprep.subr.bf16.mxu0 0
      %3266 = vmatpush1.bf16.xpose.msra.mxu0 0
      %3267 = vmatprep.subr.bf16.mxu0 0
      %3268 = vmatpush1.bf16.xpose.msra.mxu0 0
      %3269 = vmatprep.subr.bf16.mxu0 0
      %3270 = vmatpush1.bf16.xpose.msra.mxu0 0
      %3271 = vmatprep.subr.bf16.mxu0 0
      %3272 = vmatpush1.bf16.xpose.msra.mxu0 %v3255
      %3273 = vmatprep.subr.bf16.mxu0 0
      %3274 = vmatpush2.bf16.xpose.msra.mxu0 0
      %3275 = vmatprep.subr.bf16.mxu0 0
      %3276 = vmatpush2.bf16.xpose.msra.mxu0 0
      %3277 = vmatprep.subr.bf16.mxu0 0
      %3278 = vmatpush2.bf16.xpose.msra.mxu0 0
      %3279 = vmatprep.subr.bf16.mxu0 0
      %3280 = vmatpush2.bf16.xpose.msra.mxu0 0
      %3281 = vmatprep.subr.bf16.mxu0 0
      %3282 = vmatpush2.bf16.xpose.msra.mxu0 0
      %3283 = vmatprep.subr.bf16.mxu0 0
      %3284 = vmatpush2.bf16.xpose.msra.mxu0 0
      %3285 = vmatprep.subr.bf16.mxu0 0
      %3286 = vmatpush2.bf16.xpose.msra.mxu0 0
      %3287 = vmatprep.subr.bf16.mxu0 0
      %3288 = vmatpush2.bf16.xpose.msra.mxu0 0
      %3289 = vmatprep.mubr.bf16.mxu0 0
      %3290 = vmatmul.mubr.bf16.gmra.mxu0 %v3252
      %v3291 = vpop.f32.mrf.mxu0
      %v3292 = vadd.f32 0.0, %v3291
      %v3293 = vpop.f32.mrf.mxu0
      %v3294 = vpop.f32.mrf.mxu0
      %v3295 = vpop.f32.mrf.mxu0
      %3296 = vdwg.mxu0
      %3297 = vrot.lane.b32.xlu0 %v2542, 112
      %v3298 = vpop.permute.xlu0 %3297
      %3299 = vrot.lane.b32.xlu0 %v2542, 80
      %v3300 = vpop.permute.xlu0 %3299
      %v3302 = vsel %vm684, %v3298, 0
      %v3305 = vsel %vm684, %v3300, 0
      %3307 = vmatprep.subr.bf16.mxu0 0
      %3308 = vmatpush1.bf16.xpose.msra.mxu0 0
      %3309 = vmatprep.subr.bf16.mxu0 0
      %3310 = vmatpush1.bf16.xpose.msra.mxu0 0
      %3311 = vmatprep.subr.bf16.mxu0 0
      %3312 = vmatpush1.bf16.xpose.msra.mxu0 0
      %3313 = vmatprep.subr.bf16.mxu0 0
      %3314 = vmatpush1.bf16.xpose.msra.mxu0 0
      %3315 = vmatprep.subr.bf16.mxu0 0
      %3316 = vmatpush1.bf16.xpose.msra.mxu0 0
      %3317 = vmatprep.subr.bf16.mxu0 0
      %3318 = vmatpush1.bf16.xpose.msra.mxu0 0
      %3319 = vmatprep.subr.bf16.mxu0 0
      %3320 = vmatpush1.bf16.xpose.msra.mxu0 0
      %3321 = vmatprep.subr.bf16.mxu0 0
      %3322 = vmatpush1.bf16.xpose.msra.mxu0 %v3305
      %3323 = vmatprep.subr.bf16.mxu0 0
      %3324 = vmatpush2.bf16.xpose.msra.mxu0 0
      %3325 = vmatprep.subr.bf16.mxu0 0
      %3326 = vmatpush2.bf16.xpose.msra.mxu0 0
      %3327 = vmatprep.subr.bf16.mxu0 0
      %3328 = vmatpush2.bf16.xpose.msra.mxu0 0
      %3329 = vmatprep.subr.bf16.mxu0 0
      %3330 = vmatpush2.bf16.xpose.msra.mxu0 0
      %3331 = vmatprep.subr.bf16.mxu0 0
      %3332 = vmatpush2.bf16.xpose.msra.mxu0 0
      %3333 = vmatprep.subr.bf16.mxu0 0
      %3334 = vmatpush2.bf16.xpose.msra.mxu0 0
      %3335 = vmatprep.subr.bf16.mxu0 0
      %3336 = vmatpush2.bf16.xpose.msra.mxu0 0
      %3337 = vmatprep.subr.bf16.mxu0 0
      %3338 = vmatpush2.bf16.xpose.msra.mxu0 0
      %3339 = vmatprep.mubr.bf16.mxu0 0
      %3340 = vmatmul.mubr.bf16.gmra.mxu0 %v3302
      %v3341 = vpop.f32.mrf.mxu0
      %v3342 = vadd.f32 0.0, %v3341
      %v3343 = vpop.f32.mrf.mxu0
      %v3344 = vpop.f32.mrf.mxu0
      %v3345 = vpop.f32.mrf.mxu0
      %3346 = vdwg.mxu0
      %v3347 = vsel %vm684, %v3242, -inf
      %3348 = vmax.xlane.f32.xlu0 %v3347
      %v3349 = vpop.xlane.xlu0 %3348
      %v3350 = vsel %vm684, %v3292, -inf
      %3351 = vmax.xlane.f32.xlu0 %v3350
      %v3352 = vpop.xlane.xlu0 %3351
      %v3353 = vsel %vm684, %v3342, -inf
      %3354 = vmax.xlane.f32.xlu0 %v3353
      %v3355 = vpop.xlane.xlu0 %3354
      %v3356 = vsub.f32 %v3242, %v3349
      %v3357 = vsub.f32 %v3292, %v3352
      %v3358 = vsub.f32 %v3342, %v3355
      %v3359 = vmul.f32 %v3356, 1.442695
      %v3360 = vpow.pop %v3359
      %v3361 = vmul.f32 %v3357, 1.442695
      %v3362 = vpow.pop %v3361
      %v3363 = vmul.f32 %v3358, 1.442695
      %v3364 = vpow.pop %v3363
      %v3365 = vsel %vm684, %v3360, 0.0
      %3366 = vadd.xlane.f32.xlu0 %v3365
      %v3367 = vpop.xlane.xlu0 %3366
      %v3368 = vsel %vm684, %v3362, 0.0
      %3369 = vadd.xlane.f32.xlu0 %v3368
      %v3370 = vpop.xlane.xlu0 %3369
      %v3371 = vsel %vm684, %v3364, 0.0
      %3372 = vadd.xlane.f32.xlu0 %v3371
      %v3373 = vpop.xlane.xlu0 %3372
      %v3374 = vrcp.pop %v3367
      %v3375 = vrcp.pop %v3370
      %v3376 = vrcp.pop %v3373
      %v3377 = vpack.c.bf16 %v3360, %v3360
      %v3378 = vpack.c.bf16 %v3362, %v3362
      %v3379 = vpack.c.bf16 %v3364, %v3364
      %3380 = vrot.lane.b32.xlu0 %v2540, 48
      %v3381 = vpop.permute.xlu0 %3380
      %v3383 = vsel %vm684, %v3377, 0
      %v3386 = vsel %vm865, %v3381, 0
      %3388 = vmatprep.subr.bf16.mxu0 0
      %3389 = vmatpush1.bf16.msra.mxu0 0
      %3390 = vmatprep.subr.bf16.mxu0 0
      %3391 = vmatpush1.bf16.msra.mxu0 0
      %3392 = vmatprep.subr.bf16.mxu0 0
      %3393 = vmatpush1.bf16.msra.mxu0 0
      %3394 = vmatprep.subr.bf16.mxu0 0
      %3395 = vmatpush1.bf16.msra.mxu0 0
      %3396 = vmatprep.subr.bf16.mxu0 0
      %3397 = vmatpush1.bf16.msra.mxu0 0
      %3398 = vmatprep.subr.bf16.mxu0 0
      %3399 = vmatpush1.bf16.msra.mxu0 0
      %3400 = vmatprep.subr.bf16.mxu0 0
      %3401 = vmatpush1.bf16.msra.mxu0 0
      %3402 = vmatprep.subr.bf16.mxu0 0
      %3403 = vmatpush1.bf16.msra.mxu0 %v3386
      %3404 = vmatprep.subr.bf16.mxu0 0
      %3405 = vmatpush2.bf16.msra.mxu0 0
      %3406 = vmatprep.subr.bf16.mxu0 0
      %3407 = vmatpush2.bf16.msra.mxu0 0
      %3408 = vmatprep.subr.bf16.mxu0 0
      %3409 = vmatpush2.bf16.msra.mxu0 0
      %3410 = vmatprep.subr.bf16.mxu0 0
      %3411 = vmatpush2.bf16.msra.mxu0 0
      %3412 = vmatprep.subr.bf16.mxu0 0
      %3413 = vmatpush2.bf16.msra.mxu0 0
      %3414 = vmatprep.subr.bf16.mxu0 0
      %3415 = vmatpush2.bf16.msra.mxu0 0
      %3416 = vmatprep.subr.bf16.mxu0 0
      %3417 = vmatpush2.bf16.msra.mxu0 0
      %3418 = vmatprep.subr.bf16.mxu0 0
      %3419 = vmatpush2.bf16.msra.mxu0 0
      %3420 = vmatprep.mubr.bf16.mxu0 0
      %3421 = vmatmul.mubr.bf16.gmra.mxu0 %v3383
      %v3422 = vpop.f32.mrf.mxu0
      %v3423 = vadd.f32 0.0, %v3422
      %v3424 = vpop.f32.mrf.mxu0
      %v3425 = vpop.f32.mrf.mxu0
      %v3426 = vpop.f32.mrf.mxu0
      %3427 = vdwg.mxu0
      %3428 = vrot.lane.b32.xlu0 %v2541, 48
      %v3429 = vpop.permute.xlu0 %3428
      %v3431 = vsel %vm684, %v3378, 0
      %v3434 = vsel %vm865, %v3429, 0
      %3436 = vmatprep.subr.bf16.mxu0 0
      %3437 = vmatpush1.bf16.msra.mxu0 0
      %3438 = vmatprep.subr.bf16.mxu0 0
      %3439 = vmatpush1.bf16.msra.mxu0 0
      %3440 = vmatprep.subr.bf16.mxu0 0
      %3441 = vmatpush1.bf16.msra.mxu0 0
      %3442 = vmatprep.subr.bf16.mxu0 0
      %3443 = vmatpush1.bf16.msra.mxu0 0
      %3444 = vmatprep.subr.bf16.mxu0 0
      %3445 = vmatpush1.bf16.msra.mxu0 0
      %3446 = vmatprep.subr.bf16.mxu0 0
      %3447 = vmatpush1.bf16.msra.mxu0 0
      %3448 = vmatprep.subr.bf16.mxu0 0
      %3449 = vmatpush1.bf16.msra.mxu0 0
      %3450 = vmatprep.subr.bf16.mxu0 0
      %3451 = vmatpush1.bf16.msra.mxu0 %v3434
      %3452 = vmatprep.subr.bf16.mxu0 0
      %3453 = vmatpush2.bf16.msra.mxu0 0
      %3454 = vmatprep.subr.bf16.mxu0 0
      %3455 = vmatpush2.bf16.msra.mxu0 0
      %3456 = vmatprep.subr.bf16.mxu0 0
      %3457 = vmatpush2.bf16.msra.mxu0 0
      %3458 = vmatprep.subr.bf16.mxu0 0
      %3459 = vmatpush2.bf16.msra.mxu0 0
      %3460 = vmatprep.subr.bf16.mxu0 0
      %3461 = vmatpush2.bf16.msra.mxu0 0
      %3462 = vmatprep.subr.bf16.mxu0 0
      %3463 = vmatpush2.bf16.msra.mxu0 0
      %3464 = vmatprep.subr.bf16.mxu0 0
      %3465 = vmatpush2.bf16.msra.mxu0 0
      %3466 = vmatprep.subr.bf16.mxu0 0
      %3467 = vmatpush2.bf16.msra.mxu0 0
      %3468 = vmatprep.mubr.bf16.mxu0 0
      %3469 = vmatmul.mubr.bf16.gmra.mxu0 %v3431
      %v3470 = vpop.f32.mrf.mxu0
      %v3471 = vadd.f32 0.0, %v3470
      %v3472 = vpop.f32.mrf.mxu0
      %v3473 = vpop.f32.mrf.mxu0
      %v3474 = vpop.f32.mrf.mxu0
      %3475 = vdwg.mxu0
      %3476 = vrot.lane.b32.xlu0 %v2542, 48
      %v3477 = vpop.permute.xlu0 %3476
      %v3479 = vsel %vm684, %v3379, 0
      %v3482 = vsel %vm865, %v3477, 0
      %3484 = vmatprep.subr.bf16.mxu0 0
      %3485 = vmatpush1.bf16.msra.mxu0 0
      %3486 = vmatprep.subr.bf16.mxu0 0
      %3487 = vmatpush1.bf16.msra.mxu0 0
      %3488 = vmatprep.subr.bf16.mxu0 0
      %3489 = vmatpush1.bf16.msra.mxu0 0
      %3490 = vmatprep.subr.bf16.mxu0 0
      %3491 = vmatpush1.bf16.msra.mxu0 0
      %3492 = vmatprep.subr.bf16.mxu0 0
      %3493 = vmatpush1.bf16.msra.mxu0 0
      %3494 = vmatprep.subr.bf16.mxu0 0
      %3495 = vmatpush1.bf16.msra.mxu0 0
      %3496 = vmatprep.subr.bf16.mxu0 0
      %3497 = vmatpush1.bf16.msra.mxu0 0
      %3498 = vmatprep.subr.bf16.mxu0 0
      %3499 = vmatpush1.bf16.msra.mxu0 %v3482
      %3500 = vmatprep.subr.bf16.mxu0 0
      %3501 = vmatpush2.bf16.msra.mxu0 0
      %3502 = vmatprep.subr.bf16.mxu0 0
      %3503 = vmatpush2.bf16.msra.mxu0 0
      %3504 = vmatprep.subr.bf16.mxu0 0
      %3505 = vmatpush2.bf16.msra.mxu0 0
      %3506 = vmatprep.subr.bf16.mxu0 0
      %3507 = vmatpush2.bf16.msra.mxu0 0
      %3508 = vmatprep.subr.bf16.mxu0 0
      %3509 = vmatpush2.bf16.msra.mxu0 0
      %3510 = vmatprep.subr.bf16.mxu0 0
      %3511 = vmatpush2.bf16.msra.mxu0 0
      %3512 = vmatprep.subr.bf16.mxu0 0
      %3513 = vmatpush2.bf16.msra.mxu0 0
      %3514 = vmatprep.subr.bf16.mxu0 0
      %3515 = vmatpush2.bf16.msra.mxu0 0
      %3516 = vmatprep.mubr.bf16.mxu0 0
      %3517 = vmatmul.mubr.bf16.gmra.mxu0 %v3479
      %v3518 = vpop.f32.mrf.mxu0
      %v3519 = vadd.f32 0.0, %v3518
      %v3520 = vpop.f32.mrf.mxu0
      %v3521 = vpop.f32.mrf.mxu0
      %v3522 = vpop.f32.mrf.mxu0
      %3523 = vdwg.mxu0
      %v3524 = vmul.f32 %v3423, %v3374
      %v3525 = vmul.f32 %v3471, %v3375
      %v3526 = vmul.f32 %v3519, %v3376
      %3527 = vrot.lane.b32.xlu0 %v2540, 104
      %v3528 = vpop.permute.xlu0 %3527
      %3529 = vrot.lane.b32.xlu0 %v2540, 72
      %v3530 = vpop.permute.xlu0 %3529
      %v3532 = vsel %vm684, %v3528, 0
      %v3535 = vsel %vm684, %v3530, 0
      %3537 = vmatprep.subr.bf16.mxu0 0
      %3538 = vmatpush1.bf16.xpose.msra.mxu0 0
      %3539 = vmatprep.subr.bf16.mxu0 0
      %3540 = vmatpush1.bf16.xpose.msra.mxu0 0
      %3541 = vmatprep.subr.bf16.mxu0 0
      %3542 = vmatpush1.bf16.xpose.msra.mxu0 0
      %3543 = vmatprep.subr.bf16.mxu0 0
      %3544 = vmatpush1.bf16.xpose.msra.mxu0 0
      %3545 = vmatprep.subr.bf16.mxu0 0
      %3546 = vmatpush1.bf16.xpose.msra.mxu0 0
      %3547 = vmatprep.subr.bf16.mxu0 0
      %3548 = vmatpush1.bf16.xpose.msra.mxu0 0
      %3549 = vmatprep.subr.bf16.mxu0 0
      %3550 = vmatpush1.bf16.xpose.msra.mxu0 0
      %3551 = vmatprep.subr.bf16.mxu0 0
      %3552 = vmatpush1.bf16.xpose.msra.mxu0 %v3535
      %3553 = vmatprep.subr.bf16.mxu0 0
      %3554 = vmatpush2.bf16.xpose.msra.mxu0 0
      %3555 = vmatprep.subr.bf16.mxu0 0
      %3556 = vmatpush2.bf16.xpose.msra.mxu0 0
      %3557 = vmatprep.subr.bf16.mxu0 0
      %3558 = vmatpush2.bf16.xpose.msra.mxu0 0
      %3559 = vmatprep.subr.bf16.mxu0 0
      %3560 = vmatpush2.bf16.xpose.msra.mxu0 0
      %3561 = vmatprep.subr.bf16.mxu0 0
      %3562 = vmatpush2.bf16.xpose.msra.mxu0 0
      %3563 = vmatprep.subr.bf16.mxu0 0
      %3564 = vmatpush2.bf16.xpose.msra.mxu0 0
      %3565 = vmatprep.subr.bf16.mxu0 0
      %3566 = vmatpush2.bf16.xpose.msra.mxu0 0
      %3567 = vmatprep.subr.bf16.mxu0 0
      %3568 = vmatpush2.bf16.xpose.msra.mxu0 0
      %3569 = vmatprep.mubr.bf16.mxu0 0
      %3570 = vmatmul.mubr.bf16.gmra.mxu0 %v3532
      %v3571 = vpop.f32.mrf.mxu0
      %v3572 = vadd.f32 0.0, %v3571
      %v3573 = vpop.f32.mrf.mxu0
      %v3574 = vpop.f32.mrf.mxu0
      %v3575 = vpop.f32.mrf.mxu0
      %3576 = vdwg.mxu0
      %3577 = vrot.lane.b32.xlu0 %v2541, 104
      %v3578 = vpop.permute.xlu0 %3577
      %3579 = vrot.lane.b32.xlu0 %v2541, 72
      %v3580 = vpop.permute.xlu0 %3579
      %v3582 = vsel %vm684, %v3578, 0
      %v3585 = vsel %vm684, %v3580, 0
      %3587 = vmatprep.subr.bf16.mxu0 0
      %3588 = vmatpush1.bf16.xpose.msra.mxu0 0
      %3589 = vmatprep.subr.bf16.mxu0 0
      %3590 = vmatpush1.bf16.xpose.msra.mxu0 0
      %3591 = vmatprep.subr.bf16.mxu0 0
      %3592 = vmatpush1.bf16.xpose.msra.mxu0 0
      %3593 = vmatprep.subr.bf16.mxu0 0
      %3594 = vmatpush1.bf16.xpose.msra.mxu0 0
      %3595 = vmatprep.subr.bf16.mxu0 0
      %3596 = vmatpush1.bf16.xpose.msra.mxu0 0
      %3597 = vmatprep.subr.bf16.mxu0 0
      %3598 = vmatpush1.bf16.xpose.msra.mxu0 0
      %3599 = vmatprep.subr.bf16.mxu0 0
      %3600 = vmatpush1.bf16.xpose.msra.mxu0 0
      %3601 = vmatprep.subr.bf16.mxu0 0
      %3602 = vmatpush1.bf16.xpose.msra.mxu0 %v3585
      %3603 = vmatprep.subr.bf16.mxu0 0
      %3604 = vmatpush2.bf16.xpose.msra.mxu0 0
      %3605 = vmatprep.subr.bf16.mxu0 0
      %3606 = vmatpush2.bf16.xpose.msra.mxu0 0
      %3607 = vmatprep.subr.bf16.mxu0 0
      %3608 = vmatpush2.bf16.xpose.msra.mxu0 0
      %3609 = vmatprep.subr.bf16.mxu0 0
      %3610 = vmatpush2.bf16.xpose.msra.mxu0 0
      %3611 = vmatprep.subr.bf16.mxu0 0
      %3612 = vmatpush2.bf16.xpose.msra.mxu0 0
      %3613 = vmatprep.subr.bf16.mxu0 0
      %3614 = vmatpush2.bf16.xpose.msra.mxu0 0
      %3615 = vmatprep.subr.bf16.mxu0 0
      %3616 = vmatpush2.bf16.xpose.msra.mxu0 0
      %3617 = vmatprep.subr.bf16.mxu0 0
      %3618 = vmatpush2.bf16.xpose.msra.mxu0 0
      %3619 = vmatprep.mubr.bf16.mxu0 0
      %3620 = vmatmul.mubr.bf16.gmra.mxu0 %v3582
      %v3621 = vpop.f32.mrf.mxu0
      %v3622 = vadd.f32 0.0, %v3621
      %v3623 = vpop.f32.mrf.mxu0
      %v3624 = vpop.f32.mrf.mxu0
      %v3625 = vpop.f32.mrf.mxu0
      %3626 = vdwg.mxu0
      %3627 = vrot.lane.b32.xlu0 %v2542, 104
      %v3628 = vpop.permute.xlu0 %3627
      %3629 = vrot.lane.b32.xlu0 %v2542, 72
      %v3630 = vpop.permute.xlu0 %3629
      %v3632 = vsel %vm684, %v3628, 0
      %v3635 = vsel %vm684, %v3630, 0
      %3637 = vmatprep.subr.bf16.mxu0 0
      %3638 = vmatpush1.bf16.xpose.msra.mxu0 0
      %3639 = vmatprep.subr.bf16.mxu0 0
      %3640 = vmatpush1.bf16.xpose.msra.mxu0 0
      %3641 = vmatprep.subr.bf16.mxu0 0
      %3642 = vmatpush1.bf16.xpose.msra.mxu0 0
      %3643 = vmatprep.subr.bf16.mxu0 0
      %3644 = vmatpush1.bf16.xpose.msra.mxu0 0
      %3645 = vmatprep.subr.bf16.mxu0 0
      %3646 = vmatpush1.bf16.xpose.msra.mxu0 0
      %3647 = vmatprep.subr.bf16.mxu0 0
      %3648 = vmatpush1.bf16.xpose.msra.mxu0 0
      %3649 = vmatprep.subr.bf16.mxu0 0
      %3650 = vmatpush1.bf16.xpose.msra.mxu0 0
      %3651 = vmatprep.subr.bf16.mxu0 0
      %3652 = vmatpush1.bf16.xpose.msra.mxu0 %v3635
      %3653 = vmatprep.subr.bf16.mxu0 0
      %3654 = vmatpush2.bf16.xpose.msra.mxu0 0
      %3655 = vmatprep.subr.bf16.mxu0 0
      %3656 = vmatpush2.bf16.xpose.msra.mxu0 0
      %3657 = vmatprep.subr.bf16.mxu0 0
      %3658 = vmatpush2.bf16.xpose.msra.mxu0 0
      %3659 = vmatprep.subr.bf16.mxu0 0
      %3660 = vmatpush2.bf16.xpose.msra.mxu0 0
      %3661 = vmatprep.subr.bf16.mxu0 0
      %3662 = vmatpush2.bf16.xpose.msra.mxu0 0
      %3663 = vmatprep.subr.bf16.mxu0 0
      %3664 = vmatpush2.bf16.xpose.msra.mxu0 0
      %3665 = vmatprep.subr.bf16.mxu0 0
      %3666 = vmatpush2.bf16.xpose.msra.mxu0 0
      %3667 = vmatprep.subr.bf16.mxu0 0
      %3668 = vmatpush2.bf16.xpose.msra.mxu0 0
      %3669 = vmatprep.mubr.bf16.mxu0 0
      %3670 = vmatmul.mubr.bf16.gmra.mxu0 %v3632
      %v3671 = vpop.f32.mrf.mxu0
      %v3672 = vadd.f32 0.0, %v3671
      %v3673 = vpop.f32.mrf.mxu0
      %v3674 = vpop.f32.mrf.mxu0
      %v3675 = vpop.f32.mrf.mxu0
      %3676 = vdwg.mxu0
      %v3677 = vsel %vm684, %v3572, -inf
      %3678 = vmax.xlane.f32.xlu0 %v3677
      %v3679 = vpop.xlane.xlu0 %3678
      %v3680 = vsel %vm684, %v3622, -inf
      %3681 = vmax.xlane.f32.xlu0 %v3680
      %v3682 = vpop.xlane.xlu0 %3681
      %v3683 = vsel %vm684, %v3672, -inf
      %3684 = vmax.xlane.f32.xlu0 %v3683
      %v3685 = vpop.xlane.xlu0 %3684
      %v3686 = vsub.f32 %v3572, %v3679
      %v3687 = vsub.f32 %v3622, %v3682
      %v3688 = vsub.f32 %v3672, %v3685
      %v3689 = vmul.f32 %v3686, 1.442695
      %v3690 = vpow.pop %v3689
      %v3691 = vmul.f32 %v3687, 1.442695
      %v3692 = vpow.pop %v3691
      %v3693 = vmul.f32 %v3688, 1.442695
      %v3694 = vpow.pop %v3693
      %v3695 = vsel %vm684, %v3690, 0.0
      %3696 = vadd.xlane.f32.xlu0 %v3695
      %v3697 = vpop.xlane.xlu0 %3696
      %v3698 = vsel %vm684, %v3692, 0.0
      %3699 = vadd.xlane.f32.xlu0 %v3698
      %v3700 = vpop.xlane.xlu0 %3699
      %v3701 = vsel %vm684, %v3694, 0.0
      %3702 = vadd.xlane.f32.xlu0 %v3701
      %v3703 = vpop.xlane.xlu0 %3702
      %v3704 = vrcp.pop %v3697
      %v3705 = vrcp.pop %v3700
      %v3706 = vrcp.pop %v3703
      %v3707 = vpack.c.bf16 %v3690, %v3690
      %v3708 = vpack.c.bf16 %v3692, %v3692
      %v3709 = vpack.c.bf16 %v3694, %v3694
      %3710 = vrot.lane.b32.xlu0 %v2540, 40
      %v3711 = vpop.permute.xlu0 %3710
      %v3713 = vsel %vm684, %v3707, 0
      %v3716 = vsel %vm865, %v3711, 0
      %3718 = vmatprep.subr.bf16.mxu0 0
      %3719 = vmatpush1.bf16.msra.mxu0 0
      %3720 = vmatprep.subr.bf16.mxu0 0
      %3721 = vmatpush1.bf16.msra.mxu0 0
      %3722 = vmatprep.subr.bf16.mxu0 0
      %3723 = vmatpush1.bf16.msra.mxu0 0
      %3724 = vmatprep.subr.bf16.mxu0 0
      %3725 = vmatpush1.bf16.msra.mxu0 0
      %3726 = vmatprep.subr.bf16.mxu0 0
      %3727 = vmatpush1.bf16.msra.mxu0 0
      %3728 = vmatprep.subr.bf16.mxu0 0
      %3729 = vmatpush1.bf16.msra.mxu0 0
      %3730 = vmatprep.subr.bf16.mxu0 0
      %3731 = vmatpush1.bf16.msra.mxu0 0
      %3732 = vmatprep.subr.bf16.mxu0 0
      %3733 = vmatpush1.bf16.msra.mxu0 %v3716
      %3734 = vmatprep.subr.bf16.mxu0 0
      %3735 = vmatpush2.bf16.msra.mxu0 0
      %3736 = vmatprep.subr.bf16.mxu0 0
      %3737 = vmatpush2.bf16.msra.mxu0 0
      %3738 = vmatprep.subr.bf16.mxu0 0
      %3739 = vmatpush2.bf16.msra.mxu0 0
      %3740 = vmatprep.subr.bf16.mxu0 0
      %3741 = vmatpush2.bf16.msra.mxu0 0
      %3742 = vmatprep.subr.bf16.mxu0 0
      %3743 = vmatpush2.bf16.msra.mxu0 0
      %3744 = vmatprep.subr.bf16.mxu0 0
      %3745 = vmatpush2.bf16.msra.mxu0 0
      %3746 = vmatprep.subr.bf16.mxu0 0
      %3747 = vmatpush2.bf16.msra.mxu0 0
      %3748 = vmatprep.subr.bf16.mxu0 0
      %3749 = vmatpush2.bf16.msra.mxu0 0
      %3750 = vmatprep.mubr.bf16.mxu0 0
      %3751 = vmatmul.mubr.bf16.gmra.mxu0 %v3713
      %v3752 = vpop.f32.mrf.mxu0
      %v3753 = vadd.f32 0.0, %v3752
      %v3754 = vpop.f32.mrf.mxu0
      %v3755 = vpop.f32.mrf.mxu0
      %v3756 = vpop.f32.mrf.mxu0
      %3757 = vdwg.mxu0
      %3758 = vrot.lane.b32.xlu0 %v2541, 40
      %v3759 = vpop.permute.xlu0 %3758
      %v3761 = vsel %vm684, %v3708, 0
      %v3764 = vsel %vm865, %v3759, 0
      %3766 = vmatprep.subr.bf16.mxu0 0
      %3767 = vmatpush1.bf16.msra.mxu0 0
      %3768 = vmatprep.subr.bf16.mxu0 0
      %3769 = vmatpush1.bf16.msra.mxu0 0
      %3770 = vmatprep.subr.bf16.mxu0 0
      %3771 = vmatpush1.bf16.msra.mxu0 0
      %3772 = vmatprep.subr.bf16.mxu0 0
      %3773 = vmatpush1.bf16.msra.mxu0 0
      %3774 = vmatprep.subr.bf16.mxu0 0
      %3775 = vmatpush1.bf16.msra.mxu0 0
      %3776 = vmatprep.subr.bf16.mxu0 0
      %3777 = vmatpush1.bf16.msra.mxu0 0
      %3778 = vmatprep.subr.bf16.mxu0 0
      %3779 = vmatpush1.bf16.msra.mxu0 0
      %3780 = vmatprep.subr.bf16.mxu0 0
      %3781 = vmatpush1.bf16.msra.mxu0 %v3764
      %3782 = vmatprep.subr.bf16.mxu0 0
      %3783 = vmatpush2.bf16.msra.mxu0 0
      %3784 = vmatprep.subr.bf16.mxu0 0
      %3785 = vmatpush2.bf16.msra.mxu0 0
      %3786 = vmatprep.subr.bf16.mxu0 0
      %3787 = vmatpush2.bf16.msra.mxu0 0
      %3788 = vmatprep.subr.bf16.mxu0 0
      %3789 = vmatpush2.bf16.msra.mxu0 0
      %3790 = vmatprep.subr.bf16.mxu0 0
      %3791 = vmatpush2.bf16.msra.mxu0 0
      %3792 = vmatprep.subr.bf16.mxu0 0
      %3793 = vmatpush2.bf16.msra.mxu0 0
      %3794 = vmatprep.subr.bf16.mxu0 0
      %3795 = vmatpush2.bf16.msra.mxu0 0
      %3796 = vmatprep.subr.bf16.mxu0 0
      %3797 = vmatpush2.bf16.msra.mxu0 0
      %3798 = vmatprep.mubr.bf16.mxu0 0
      %3799 = vmatmul.mubr.bf16.gmra.mxu0 %v3761
      %v3800 = vpop.f32.mrf.mxu0
      %v3801 = vadd.f32 0.0, %v3800
      %v3802 = vpop.f32.mrf.mxu0
      %v3803 = vpop.f32.mrf.mxu0
      %v3804 = vpop.f32.mrf.mxu0
      %3805 = vdwg.mxu0
      %3806 = vrot.lane.b32.xlu0 %v2542, 40
      %v3807 = vpop.permute.xlu0 %3806
      %v3809 = vsel %vm684, %v3709, 0
      %v3812 = vsel %vm865, %v3807, 0
      %3814 = vmatprep.subr.bf16.mxu0 0
      %3815 = vmatpush1.bf16.msra.mxu0 0
      %3816 = vmatprep.subr.bf16.mxu0 0
      %3817 = vmatpush1.bf16.msra.mxu0 0
      %3818 = vmatprep.subr.bf16.mxu0 0
      %3819 = vmatpush1.bf16.msra.mxu0 0
      %3820 = vmatprep.subr.bf16.mxu0 0
      %3821 = vmatpush1.bf16.msra.mxu0 0
      %3822 = vmatprep.subr.bf16.mxu0 0
      %3823 = vmatpush1.bf16.msra.mxu0 0
      %3824 = vmatprep.subr.bf16.mxu0 0
      %3825 = vmatpush1.bf16.msra.mxu0 0
      %3826 = vmatprep.subr.bf16.mxu0 0
      %3827 = vmatpush1.bf16.msra.mxu0 0
      %3828 = vmatprep.subr.bf16.mxu0 0
      %3829 = vmatpush1.bf16.msra.mxu0 %v3812
      %3830 = vmatprep.subr.bf16.mxu0 0
      %3831 = vmatpush2.bf16.msra.mxu0 0
      %3832 = vmatprep.subr.bf16.mxu0 0
      %3833 = vmatpush2.bf16.msra.mxu0 0
      %3834 = vmatprep.subr.bf16.mxu0 0
      %3835 = vmatpush2.bf16.msra.mxu0 0
      %3836 = vmatprep.subr.bf16.mxu0 0
      %3837 = vmatpush2.bf16.msra.mxu0 0
      %3838 = vmatprep.subr.bf16.mxu0 0
      %3839 = vmatpush2.bf16.msra.mxu0 0
      %3840 = vmatprep.subr.bf16.mxu0 0
      %3841 = vmatpush2.bf16.msra.mxu0 0
      %3842 = vmatprep.subr.bf16.mxu0 0
      %3843 = vmatpush2.bf16.msra.mxu0 0
      %3844 = vmatprep.subr.bf16.mxu0 0
      %3845 = vmatpush2.bf16.msra.mxu0 0
      %3846 = vmatprep.mubr.bf16.mxu0 0
      %3847 = vmatmul.mubr.bf16.gmra.mxu0 %v3809
      %v3848 = vpop.f32.mrf.mxu0
      %v3849 = vadd.f32 0.0, %v3848
      %v3850 = vpop.f32.mrf.mxu0
      %v3851 = vpop.f32.mrf.mxu0
      %v3852 = vpop.f32.mrf.mxu0
      %3853 = vdwg.mxu0
      %v3854 = vmul.f32 %v3753, %v3704
      %v3855 = vmul.f32 %v3801, %v3705
      %v3856 = vmul.f32 %v3849, %v3706
      %3860 = vrot.lane.b32.xlu0 %v3194, 8
      %v3861 = vpop.permute.xlu0 %3860
      %3862 = vrot.lane.b32.xlu0 %v3195, 8
      %v3863 = vpop.permute.xlu0 %3862
      %3864 = vrot.lane.b32.xlu0 %v3196, 8
      %v3865 = vpop.permute.xlu0 %3864
      %3872 = vrot.lane.b32.xlu0 %v3524, 16
      %v3873 = vpop.permute.xlu0 %3872
      %3874 = vrot.lane.b32.xlu0 %v3525, 16
      %v3875 = vpop.permute.xlu0 %3874
      %3876 = vrot.lane.b32.xlu0 %v3526, 16
      %v3877 = vpop.permute.xlu0 %3876
      %3884 = vrot.lane.b32.xlu0 %v3854, 24
      %v3885 = vpop.permute.xlu0 %3884
      %3886 = vrot.lane.b32.xlu0 %v3855, 24
      %v3887 = vpop.permute.xlu0 %3886
      %3888 = vrot.lane.b32.xlu0 %v3856, 24
      %v3889 = vpop.permute.xlu0 %3888
      %v3893 = vsel %vm684, %v2864, %v3861
      %v3894 = vsel %vm684, %v2865, %v3863
      %v3895 = vsel %vm684, %v2866, %v3865
      %v3896 = vsel %vm2037, %v3893, %v3873
      %v3897 = vsel %vm2037, %v3894, %v3875
      %v3898 = vsel %vm2037, %v3895, %v3877
      %v3899 = vsel %vm2041, %v3896, %v3885
      %v3900 = vsel %vm2041, %v3897, %v3887
      %v3901 = vsel %vm2041, %v3898, %v3889
      %v3902 = vpack.c.bf16 %v3900, %v3899
      %v3903 = vpack.c.bf16 %v3901, %v3901
      %s3904 = scalar_lea.vmem %s6, 16
      %v3905 = vld [vmem:[%s3904] sm:$0xf]
      %v3906 = vld [vmem:[%s3904 + $0x4] sm:$0xf]
      %v3907 = vld [vmem:[%s3904 + $0x8] sm:$0xf]
      %v3908 = vld [vmem:[%s3904 + $0xc] sm:$0xf]
      %s3909 = scalar_lea.vmem %s7, 1
      %v3910 = vld [vmem:[%s3909] sm:$0x1]
      %v3912 = vlaneseq
      %v3913 = vshrl.u32 %v3912, 7
      %v3914 = vsub.s32 0, %v3913
      %v3915 = vrot.slane %v3910, %v3914
      %v3921 = vunpack.c.l.b16 %v3905
      %v3922 = vunpack.c.l.b16 %v3906
      %v3923 = vunpack.c.l.b16 %v3907
      %v3924 = vunpack.c.l.b16 %v3908
      %v3925 = vpack.c.b16 %v3922, %v3921
      %v3926 = vpack.c.b16 %v3924, %v3923
      %v3930 = vsel %vm617, %v3902, 0
      %v3933 = vsel %vm617, %v3903, 0
      %3935 = vmatprep.subr.bf16.mxu0 0
      %3936 = vmatpush1.bf16.msra.mxu0 0
      %3937 = vmatprep.subr.bf16.mxu0 0
      %3938 = vmatpush1.bf16.msra.mxu0 0
      %3939 = vmatprep.subr.bf16.mxu0 0
      %3940 = vmatpush1.bf16.msra.mxu0 0
      %3941 = vmatprep.subr.bf16.mxu0 0
      %3942 = vmatpush1.bf16.msra.mxu0 0
      %3943 = vmatprep.subr.bf16.mxu0 0
      %3944 = vmatpush1.bf16.msra.mxu0 0
      %3945 = vmatprep.subr.bf16.mxu0 0
      %3946 = vmatpush1.bf16.msra.mxu0 0
      %3947 = vmatprep.subr.bf16.mxu0 0
      %3948 = vmatpush1.bf16.msra.mxu0 %v3926
      %3949 = vmatprep.subr.bf16.mxu0 0
      %3950 = vmatpush1.bf16.msra.mxu0 %v3925
      %3951 = vmatprep.subr.bf16.mxu0 0
      %3952 = vmatpush2.bf16.msra.mxu0 0
      %3953 = vmatprep.subr.bf16.mxu0 0
      %3954 = vmatpush2.bf16.msra.mxu0 0
      %3955 = vmatprep.subr.bf16.mxu0 0
      %3956 = vmatpush2.bf16.msra.mxu0 0
      %3957 = vmatprep.subr.bf16.mxu0 0
      %3958 = vmatpush2.bf16.msra.mxu0 0
      %3959 = vmatprep.subr.bf16.mxu0 0
      %3960 = vmatpush2.bf16.msra.mxu0 0
      %3961 = vmatprep.subr.bf16.mxu0 0
      %3962 = vmatpush2.bf16.msra.mxu0 0
      %3963 = vmatprep.subr.bf16.mxu0 0
      %3964 = vmatpush2.bf16.msra.mxu0 0
      %3965 = vmatprep.subr.bf16.mxu0 0
      %3966 = vmatpush2.bf16.msra.mxu0 0
      %3967 = vmatprep.mubr.bf16.mxu0 0
      %3968 = vmatmul.mubr.bf16.gmra.mxu0 %v3930
      %v3969 = vpop.f32.mrf.mxu0
      %v3970 = vadd.f32 %v3915, %v3969
      %v3971 = vpop.f32.mrf.mxu0
      %v3972 = vpop.f32.mrf.mxu0
      %v3973 = vadd.f32 %v3915, %v3972
      %v3974 = vpop.f32.mrf.mxu0
      %3975 = vmatprep.mubr.bf16.mxu0 0
      %3976 = vmatmul.mubr.bf16.gmra.mxu0 %v3933
      %v3977 = vpop.f32.mrf.mxu0
      %v3978 = vadd.f32 %v3915, %v3977
      %v3979 = vpop.f32.mrf.mxu0
      %v3980 = vpop.f32.mrf.mxu0
      %v3981 = vpop.f32.mrf.mxu0
      %3982 = vdwg.mxu0
      %v3983 = vadd.f32 %v2449, %v3970
      %v3984 = vadd.f32 %v2450, %v3973
      %v3985 = vadd.f32 %v2451, %v3978
      %s3986 = scalar_lea.vmem %s12, 1
      %v3987 = vld [vmem:[%s3986] sm:$0x1]
      %s3988 = scalar_lea.vmem %s13, 1
      %v3989 = vld [vmem:[%s3988] sm:$0x1]
      %v3990 = vsel %vm617, %v3983, 0.0
      %3991 = vadd.xlane.f32.xlu0 %v3990
      %v3992 = vpop.xlane.xlu0 %3991
      %v3993 = vsel %vm617, %v3984, 0.0
      %3994 = vadd.xlane.f32.xlu0 %v3993
      %v3995 = vpop.xlane.xlu0 %3994
      %v3996 = vsel %vm617, %v3985, 0.0
      %3997 = vadd.xlane.f32.xlu0 %v3996
      %v3998 = vpop.xlane.xlu0 %3997
      %v3999 = vmul.f32 %v3992, %v2138
      %v4000 = vmul.f32 %v3995, %v2138
      %v4001 = vmul.f32 %v3998, %v2138
      %v4002 = vsub.f32 %v3983, %v3999
      %v4003 = vsub.f32 %v3984, %v4000
      %v4004 = vsub.f32 %v3985, %v4001
      %v4005 = vmul.f32 %v4002, %v4002
      %v4006 = vmul.f32 %v4003, %v4003
      %v4007 = vmul.f32 %v4004, %v4004
      %v4008 = vsel %vm617, %v4005, 0.0
      %4009 = vadd.xlane.f32.xlu0 %v4008
      %v4010 = vpop.xlane.xlu0 %4009
      %v4011 = vsel %vm617, %v4006, 0.0
      %4012 = vadd.xlane.f32.xlu0 %v4011
      %v4013 = vpop.xlane.xlu0 %4012
      %v4014 = vsel %vm617, %v4007, 0.0
      %4015 = vadd.xlane.f32.xlu0 %v4014
      %v4016 = vpop.xlane.xlu0 %4015
      %v4017 = vmul.f32 %v4010, %v2138
      %v4018 = vmul.f32 %v4013, %v2138
      %v4019 = vmul.f32 %v4016, %v2138
      %v4020 = vadd.f32 %v4017, 1e-05
      %v4021 = vadd.f32 %v4018, 1e-05
      %v4022 = vadd.f32 %v4019, 1e-05
      %v4023 = vrsqrt.pop %v4020
      %v4024 = vrsqrt.pop %v4021
      %v4025 = vrsqrt.pop %v4022
      %v4026 = vmul.f32 %v4002, %v4023
      %v4027 = vmul.f32 %v4003, %v4024
      %v4028 = vmul.f32 %v4004, %v4025
      %v4030 = vlaneseq
      %v4031 = vshrl.u32 %v4030, 7
      %v4032 = vsub.s32 0, %v4031
      %v4033 = vrot.slane %v3987, %v4032
      %v4035 = vmul.f32 %v4026, %v4033
      %v4036 = vmul.f32 %v4027, %v4033
      %v4037 = vmul.f32 %v4028, %v4033
      %v4039 = vlaneseq
      %v4040 = vshrl.u32 %v4039, 7
      %v4041 = vsub.s32 0, %v4040
      %v4042 = vrot.slane %v3989, %v4041
      %v4044 = vadd.f32 %v4035, %v4042
      %v4045 = vadd.f32 %v4036, %v4042
      %v4046 = vadd.f32 %v4037, %v4042
      %v4047 = vpack.c.bf16 %v4045, %v4044
      %v4048 = vpack.c.bf16 %v4046, %v4046
      %s4049 = scalar_lea.vmem %s8, 16
      %v4050 = vld [vmem:[%s4049] sm:$0xf]
      %v4051 = vld [vmem:[%s4049 + $0x4] sm:$0xf]
      %v4052 = vld [vmem:[%s4049 + $0x8] sm:$0xf]
      %v4053 = vld [vmem:[%s4049 + $0xc] sm:$0xf]
      %s4054 = scalar_lea.vmem %s9, 1
      %v4055 = vld [vmem:[%s4054] sm:$0x1]
      %v4057 = vlaneseq
      %v4058 = vshrl.u32 %v4057, 7
      %v4059 = vsub.s32 0, %v4058
      %v4060 = vrot.slane %v4055, %v4059
      %v4066 = vunpack.c.l.b16 %v4050
      %v4067 = vunpack.c.l.b16 %v4051
      %v4068 = vunpack.c.l.b16 %v4052
      %v4069 = vunpack.c.l.b16 %v4053
      %v4070 = vpack.c.b16 %v4067, %v4066
      %v4071 = vpack.c.b16 %v4069, %v4068
      %v4075 = vsel %vm617, %v4047, 0
      %v4078 = vsel %vm617, %v4048, 0
      %4080 = vmatprep.subr.bf16.mxu0 0
      %4081 = vmatpush1.bf16.msra.mxu0 0
      %4082 = vmatprep.subr.bf16.mxu0 0
      %4083 = vmatpush1.bf16.msra.mxu0 0
      %4084 = vmatprep.subr.bf16.mxu0 0
      %4085 = vmatpush1.bf16.msra.mxu0 0
      %4086 = vmatprep.subr.bf16.mxu0 0
      %4087 = vmatpush1.bf16.msra.mxu0 0
      %4088 = vmatprep.subr.bf16.mxu0 0
      %4089 = vmatpush1.bf16.msra.mxu0 0
      %4090 = vmatprep.subr.bf16.mxu0 0
      %4091 = vmatpush1.bf16.msra.mxu0 0
      %4092 = vmatprep.subr.bf16.mxu0 0
      %4093 = vmatpush1.bf16.msra.mxu0 %v4071
      %4094 = vmatprep.subr.bf16.mxu0 0
      %4095 = vmatpush1.bf16.msra.mxu0 %v4070
      %4096 = vmatprep.subr.bf16.mxu0 0
      %4097 = vmatpush2.bf16.msra.mxu0 0
      %4098 = vmatprep.subr.bf16.mxu0 0
      %4099 = vmatpush2.bf16.msra.mxu0 0
      %4100 = vmatprep.subr.bf16.mxu0 0
      %4101 = vmatpush2.bf16.msra.mxu0 0
      %4102 = vmatprep.subr.bf16.mxu0 0
      %4103 = vmatpush2.bf16.msra.mxu0 0
      %4104 = vmatprep.subr.bf16.mxu0 0
      %4105 = vmatpush2.bf16.msra.mxu0 0
      %4106 = vmatprep.subr.bf16.mxu0 0
      %4107 = vmatpush2.bf16.msra.mxu0 0
      %4108 = vmatprep.subr.bf16.mxu0 0
      %4109 = vmatpush2.bf16.msra.mxu0 0
      %4110 = vmatprep.subr.bf16.mxu0 0
      %4111 = vmatpush2.bf16.msra.mxu0 0
      %4112 = vmatprep.mubr.bf16.mxu0 0
      %4113 = vmatmul.mubr.bf16.gmra.mxu0 %v4075
      %v4114 = vpop.f32.mrf.mxu0
      %v4115 = vadd.f32 %v4060, %v4114
      %v4116 = vpop.f32.mrf.mxu0
      %v4117 = vpop.f32.mrf.mxu0
      %v4118 = vadd.f32 %v4060, %v4117
      %v4119 = vpop.f32.mrf.mxu0
      %4120 = vmatprep.mubr.bf16.mxu0 0
      %4121 = vmatmul.mubr.bf16.gmra.mxu0 %v4078
      %v4122 = vpop.f32.mrf.mxu0
      %v4123 = vadd.f32 %v4060, %v4122
      %v4124 = vpop.f32.mrf.mxu0
      %v4125 = vpop.f32.mrf.mxu0
      %v4126 = vpop.f32.mrf.mxu0
      %4127 = vdwg.mxu0
      %v4128 = vmax.f32 %v4115, 0.0
      %v4129 = vmax.f32 %v4118, 0.0
      %v4130 = vmax.f32 %v4123, 0.0
      %v4131 = vpack.c.bf16 %v4129, %v4128
      %v4132 = vpack.c.bf16 %v4130, %v4130
      %s4133 = scalar_lea.vmem %s10, 64
      %v4134 = vld [vmem:[%s4133] sm:$0xf]
      %v4135 = vld [vmem:[%s4133 + $0x4] sm:$0xf]
      %v4136 = vld [vmem:[%s4133 + $0x8] sm:$0xf]
      %v4137 = vld [vmem:[%s4133 + $0xc] sm:$0xf]
      %v4138 = vld [vmem:[%s4133 + $0x10] sm:$0xf]
      %v4139 = vld [vmem:[%s4133 + $0x14] sm:$0xf]
      %v4140 = vld [vmem:[%s4133 + $0x18] sm:$0xf]
      %v4141 = vld [vmem:[%s4133 + $0x1c] sm:$0xf]
      %v4142 = vld [vmem:[%s4133 + $0x20] sm:$0xf]
      %v4143 = vld [vmem:[%s4133 + $0x24] sm:$0xf]
      %v4144 = vld [vmem:[%s4133 + $0x28] sm:$0xf]
      %v4145 = vld [vmem:[%s4133 + $0x2c] sm:$0xf]
      %v4146 = vld [vmem:[%s4133 + $0x30] sm:$0xf]
      %v4147 = vld [vmem:[%s4133 + $0x34] sm:$0xf]
      %v4148 = vld [vmem:[%s4133 + $0x38] sm:$0xf]
      %v4149 = vld [vmem:[%s4133 + $0x3c] sm:$0xf]
      %s4150 = scalar_lea.vmem %s11, 1
      %v4151 = vld [vmem:[%s4150] sm:$0x1]
      %v4153 = vlaneseq
      %v4154 = vshrl.u32 %v4153, 7
      %v4155 = vsub.s32 0, %v4154
      %v4156 = vrot.slane %v4151, %v4155
      %v4174 = vunpack.c.l.b16 %v4134
      %v4175 = vunpack.c.l.b16 %v4135
      %v4176 = vunpack.c.l.b16 %v4136
      %v4177 = vunpack.c.l.b16 %v4137
      %v4178 = vunpack.c.l.b16 %v4138
      %v4179 = vunpack.c.l.b16 %v4139
      %v4180 = vunpack.c.l.b16 %v4140
      %v4181 = vunpack.c.l.b16 %v4141
      %v4182 = vunpack.c.l.b16 %v4142
      %v4183 = vunpack.c.l.b16 %v4143
      %v4184 = vunpack.c.l.b16 %v4144
      %v4185 = vunpack.c.l.b16 %v4145
      %v4186 = vunpack.c.l.b16 %v4146
      %v4187 = vunpack.c.l.b16 %v4147
      %v4188 = vunpack.c.l.b16 %v4148
      %v4189 = vunpack.c.l.b16 %v4149
      %v4190 = vpack.c.b16 %v4175, %v4174
      %v4191 = vpack.c.b16 %v4177, %v4176
      %v4192 = vpack.c.b16 %v4179, %v4178
      %v4193 = vpack.c.b16 %v4181, %v4180
      %v4194 = vpack.c.b16 %v4183, %v4182
      %v4195 = vpack.c.b16 %v4185, %v4184
      %v4196 = vpack.c.b16 %v4187, %v4186
      %v4197 = vpack.c.b16 %v4189, %v4188
      %4206 = vmatprep.subr.bf16.mxu0 0
      %4207 = vmatpush1.bf16.msra.mxu0 %v4197
      %4208 = vmatprep.subr.bf16.mxu0 0
      %4209 = vmatpush1.bf16.msra.mxu0 %v4196
      %4210 = vmatprep.subr.bf16.mxu0 0
      %4211 = vmatpush1.bf16.msra.mxu0 %v4195
      %4212 = vmatprep.subr.bf16.mxu0 0
      %4213 = vmatpush1.bf16.msra.mxu0 %v4194
      %4214 = vmatprep.subr.bf16.mxu0 0
      %4215 = vmatpush1.bf16.msra.mxu0 %v4193
      %4216 = vmatprep.subr.bf16.mxu0 0
      %4217 = vmatpush1.bf16.msra.mxu0 %v4192
      %4218 = vmatprep.subr.bf16.mxu0 0
      %4219 = vmatpush1.bf16.msra.mxu0 %v4191
      %4220 = vmatprep.subr.bf16.mxu0 0
      %4221 = vmatpush1.bf16.msra.mxu0 %v4190
      %4222 = vmatprep.subr.bf16.mxu0 0
      %4223 = vmatpush2.bf16.msra.mxu0 0
      %4224 = vmatprep.subr.bf16.mxu0 0
      %4225 = vmatpush2.bf16.msra.mxu0 0
      %4226 = vmatprep.subr.bf16.mxu0 0
      %4227 = vmatpush2.bf16.msra.mxu0 0
      %4228 = vmatprep.subr.bf16.mxu0 0
      %4229 = vmatpush2.bf16.msra.mxu0 0
      %4230 = vmatprep.subr.bf16.mxu0 0
      %4231 = vmatpush2.bf16.msra.mxu0 0
      %4232 = vmatprep.subr.bf16.mxu0 0
      %4233 = vmatpush2.bf16.msra.mxu0 0
      %4234 = vmatprep.subr.bf16.mxu0 0
      %4235 = vmatpush2.bf16.msra.mxu0 0
      %4236 = vmatprep.subr.bf16.mxu0 0
      %4237 = vmatpush2.bf16.msra.mxu0 0
      %4238 = vmatprep.mubr.bf16.mxu0 0
      %4239 = vmatmul.mubr.bf16.gmra.mxu0 %v4131
      %v4240 = vpop.f32.mrf.mxu0
      %v4241 = vadd.f32 %v4156, %v4240
      %v4242 = vpop.f32.mrf.mxu0
      %v4243 = vpop.f32.mrf.mxu0
      %v4244 = vadd.f32 %v4156, %v4243
      %v4245 = vpop.f32.mrf.mxu0
      %4246 = vmatprep.mubr.bf16.mxu0 0
      %4247 = vmatmul.mubr.bf16.gmra.mxu0 %v4132
      %v4248 = vpop.f32.mrf.mxu0
      %v4249 = vadd.f32 %v4156, %v4248
      %v4250 = vpop.f32.mrf.mxu0
      %v4251 = vpop.f32.mrf.mxu0
      %v4252 = vpop.f32.mrf.mxu0
      %4253 = vdwg.mxu0
      %v4254 = vadd.f32 %v4044, %v4241
      %v4255 = vadd.f32 %v4045, %v4244
      %v4256 = vadd.f32 %v4046, %v4249
      %s4257 = scalar_lea.vmem %s14, 1
      %v4258 = vld [vmem:[%s4257] sm:$0x1]
      %s4259 = scalar_lea.vmem %s15, 1
      %v4260 = vld [vmem:[%s4259] sm:$0x1]
      %v4261 = vsel %vm617, %v4254, 0.0
      %4262 = vadd.xlane.f32.xlu0 %v4261
      %v4263 = vpop.xlane.xlu0 %4262
      %v4264 = vsel %vm617, %v4255, 0.0
      %4265 = vadd.xlane.f32.xlu0 %v4264
      %v4266 = vpop.xlane.xlu0 %4265
      %v4267 = vsel %vm617, %v4256, 0.0
      %4268 = vadd.xlane.f32.xlu0 %v4267
      %v4269 = vpop.xlane.xlu0 %4268
      %v4270 = vmul.f32 %v4263, %v2138
      %v4271 = vmul.f32 %v4266, %v2138
      %v4272 = vmul.f32 %v4269, %v2138
      %v4273 = vsub.f32 %v4254, %v4270
      %v4274 = vsub.f32 %v4255, %v4271
      %v4275 = vsub.f32 %v4256, %v4272
      %v4276 = vmul.f32 %v4273, %v4273
      %v4277 = vmul.f32 %v4274, %v4274
      %v4278 = vmul.f32 %v4275, %v4275
      %v4279 = vsel %vm617, %v4276, 0.0
      %4280 = vadd.xlane.f32.xlu0 %v4279
      %v4281 = vpop.xlane.xlu0 %4280
      %v4282 = vsel %vm617, %v4277, 0.0
      %4283 = vadd.xlane.f32.xlu0 %v4282
      %v4284 = vpop.xlane.xlu0 %4283
      %v4285 = vsel %vm617, %v4278, 0.0
      %4286 = vadd.xlane.f32.xlu0 %v4285
      %v4287 = vpop.xlane.xlu0 %4286
      %v4288 = vmul.f32 %v4281, %v2138
      %v4289 = vmul.f32 %v4284, %v2138
      %v4290 = vmul.f32 %v4287, %v2138
      %v4291 = vadd.f32 %v4288, 1e-05
      %v4292 = vadd.f32 %v4289, 1e-05
      %v4293 = vadd.f32 %v4290, 1e-05
      %v4294 = vrsqrt.pop %v4291
      %v4295 = vrsqrt.pop %v4292
      %v4296 = vrsqrt.pop %v4293
      %v4297 = vmul.f32 %v4273, %v4294
      %v4298 = vmul.f32 %v4274, %v4295
      %v4299 = vmul.f32 %v4275, %v4296
      %v4301 = vlaneseq
      %v4302 = vshrl.u32 %v4301, 7
      %v4303 = vsub.s32 0, %v4302
      %v4304 = vrot.slane %v4258, %v4303
      %v4306 = vmul.f32 %v4297, %v4304
      %v4307 = vmul.f32 %v4298, %v4304
      %v4308 = vmul.f32 %v4299, %v4304
      %v4310 = vlaneseq
      %v4311 = vshrl.u32 %v4310, 7
      %v4312 = vsub.s32 0, %v4311
      %v4313 = vrot.slane %v4260, %v4312
      %v4315 = vadd.f32 %v4306, %v4313
      %v4316 = vadd.f32 %v4307, %v4313
      %v4317 = vadd.f32 %v4308, %v4313
      %4318 = vst.msk [vmem:[%s545] sm:$0xff] %vm617, %v4315
      %4319 = vst.msk [vmem:[%s545 + $0x8] sm:$0xff] %vm617, %v4316
      %4320 = vst.msk [vmem:[%s545 + $0x10] sm:$0xff] %vm617, %v4317
      %s4321 = smul.u32 3, %s27
      %p4322 = scmp.lt.s32.totalorder %s4321, 5
      %s4323 = scalar_select %p4322, %s4321, 5
      %s4324 = smul.addr %s4323, 8
      %s4325 = scalar_lea.vmem %s16, %s4324
      // Predicated region
      $region85: #{transformer_network_forward.1} parent=83 // pred_check
        %p4326 = pneg %p391
      $region86: #{transformer_network_forward.1} parent=83 // pred_check_branch
        %4328 = sbr.rel (%p4326) target = $region88
      $region87: #{transformer_network_forward.1} parent=83 // pred_region
        %s4329 = smul.u32 3, %s27
      $region88: #{transformer_network_forward.1} parent=83 // pred_fallthru
        _
    $region84: #{transformer_network_forward.1} parent=5 // pred_fallthru
      _
    %p4330 = scmp.le.s32.totalorder 2, %s22
    // Predicated region
    $region89: #{transformer_network_forward.1} parent=5 // pred_check
      %p4331 = pneg %p4330
    $region90: #{transformer_network_forward.1} parent=5 // pred_check_branch
      %4333 = sbr.rel (%p4331) target = $region92
    $region91: #{transformer_network_forward.1} parent=5 // pred_region
      %s4334 = ssub.s32 %s22, 2
      // Predicated region
      $region93: #{transformer_network_forward.1} parent=91 // pred_check
        %p4335 = pneg %p397
      $region94: #{transformer_network_forward.1} parent=91 // pred_check_branch
        %4337 = sbr.rel (%p4335) target = $region96
      $region95: #{transformer_network_forward.1} parent=91 // pred_region
        %s4338 = smul.u32 3, %s28
        %p4339 = scmp.lt.s32.totalorder %s4338, 5
        %s4340 = scalar_select %p4339, %s4338, 5
        %s4341 = smul.addr %s4340, 8
        %s4342 = scalar_lea.vmem %s16, %s4341
      $region96: #{transformer_network_forward.1} parent=91 // pred_fallthru
        _
    $region92: #{transformer_network_forward.1} parent=5 // pred_fallthru
      _
  $region6: #{transformer_network_forward.1} parent=0 // loop_footer
    %s26 = sadd.s32 1, %s22
  $region7: #{transformer_network_forward.1} parent=0 // loop_footer_branch
    %21 = sbr.rel target = $region3
  $region8: #{transformer_network_forward.1} parent=0 // loop_exit
    _

</llo_original>
